<compile_context>
chip_gen: v5e
topology: v5e:2x2
jax: 0.10.0
libtpu: 0.0.40
codegen_flags: <defaults>
</compile_context>

<pallas_src>
import jax
import jax.numpy as jnp
from jax import lax
from jax.experimental import pallas as pl
from jax.experimental.pallas import tpu as pltpu


# ----------------------------------------------------------------------------
# Per-layer kernel body (grid axis 0 = layer). Gate order: i, f, g, o.
# ----------------------------------------------------------------------------
def _make_lm_layer_kernel(seq_len, batch, hidden):
    T, B, H = seq_len, batch, hidden

    def kernel(x_ref, wih0_ref, wih_ref, whh_ref, b_ref,
               wlin_ref, blin_ref, out_ref, xproj_scr, seq_scr):
        # x_ref     : (T*B, E)   bf16   (resident, constant block index)
        # wih0_ref  : (E, 4H)    bf16   layer-0 input projection
        # wih_ref   : (H, 4H)    bf16   this layer's input projection (layers>0)
        # whh_ref   : (H, 4H)    bf16   this layer's recurrent weights
        # b_ref     : (1, 4H)    f32    this layer's (b_ih + b_hh)
        # wlin_ref  : (H, V)     bf16   vocab projection (resident)
        # blin_ref  : (1, V)     f32
        # out_ref   : (T*B, V)   f32    written only on the last layer
        # xproj_scr : (T*B, 4H)  f32    hoisted x @ W_ih + b for all timesteps
        # seq_scr   : (T*B, H)   bf16   this layer's output sequence
        layer = pl.program_id(0)
        bias = b_ref[...]                                   # (1, 4H) f32

        # Hoisted input projection for ALL timesteps at once (big matmul, off
        # the serial critical path).
        @pl.when(layer == 0)
        def _():
            xproj_scr[...] = (
                jnp.dot(x_ref[...], wih0_ref[...],
                        preferred_element_type=jnp.float32) + bias)

        @pl.when(layer > 0)
        def _():
            xproj_scr[...] = (
                jnp.dot(seq_scr[...], wih_ref[...],
                        preferred_element_type=jnp.float32) + bias)

        whh = whh_ref[...]                                  # resident bf16

        # Constant lane mask for the g-gate quarter; hoisted out of the T loop
        # (JAX does not CSE broadcast_in_dim).
        col = lax.broadcasted_iota(jnp.int32, (B, 4 * H), 1)
        g_mask = jnp.logical_and(col >= 2 * H, col < 3 * H)

        def step(t, carry):
            h, c = carry                                    # f32 (B, H)
            row = t * B
            gates = xproj_scr[pl.ds(row, B), :] + jnp.dot(
                h.astype(jnp.bfloat16), whh,
                preferred_element_type=jnp.float32)         # (B, 4H) f32
            # Single full-vreg EUP pass: tanh(x) = 2*sigmoid(2x) - 1 on the
            # g lanes (pre-scale + fixup are cheap VPU selects/adds).
            pre = jnp.where(g_mask, gates * 2.0, gates)
            s = jax.nn.sigmoid(pre)
            acts = jnp.where(g_mask, s * 2.0 - 1.0, s)
            i_g = acts[:, 0 * H:1 * H]
            f_g = acts[:, 1 * H:2 * H]
            g_g = acts[:, 2 * H:3 * H]
            o_g = acts[:, 3 * H:4 * H]
            c_new = f_g * c + i_g * g_g
            h_new = o_g * jnp.tanh(c_new)                   # quarter-width EUP
            seq_scr[pl.ds(row, B), :] = h_new.astype(jnp.bfloat16)
            return (h_new, c_new)

        zeros = jnp.zeros((B, H), jnp.float32)
        lax.fori_loop(0, T, step, (zeros, zeros), unroll=min(T, 8))

        # Dropout -> identity (eval mode).
        # Vocab projection fused after the last layer: only the lane-dense
        # (T*B, V) logits block hits HBM.
        @pl.when(layer == pl.num_programs(0) - 1)
        def _():
            out_ref[...] = (
                jnp.dot(seq_scr[...], wlin_ref[...],
                        preferred_element_type=jnp.float32) + blin_ref[...])

    return kernel


def language_model_forward(params, x_tokens):
    """x_tokens: (T, B) int32 -> logits (T, B, V) float32."""
    T, B = x_tokens.shape
    num_layers = len(params["lstm"])
    H = params["lstm"][0]["w_hh_t"].shape[0]
    E = params["embedding"].shape[1]
    V = params["linear_w_t"].shape[1]

    # Embedding gather (glue, plain JAX); cast once to the bf16 MXU operand.
    emb = jnp.take(params["embedding"], x_tokens, axis=0)        # (T, B, E)
    x2d = emb.reshape(T * B, E).astype(jnp.bfloat16)

    # Stack per-layer recurrent weights so `layer` is a grid axis and the
    # pipeline prefetches layer L+1's weights during layer L's recurrence.
    # Layer 0's W_ih has a different input width (E), so it stays separate;
    # slot 0 of wih_stack is an unused dummy (keeps index_map trivially l).
    wih0 = params["lstm"][0]["w_ih_t"]                           # (E, 4H) bf16
    wih_stack = jnp.stack(
        [jnp.zeros((H, 4 * H), jnp.bfloat16)]
        + [params["lstm"][l]["w_ih_t"] for l in range(1, num_layers)])
    whh_stack = jnp.stack([lp["w_hh_t"] for lp in params["lstm"]])
    b_stack = jnp.stack([lp["bias"] for lp in params["lstm"]])   # (L, 1, 4H)

    kernel = _make_lm_layer_kernel(T, B, H)

    logits2d = pl.pallas_call(
        kernel,
        out_shape=jax.ShapeDtypeStruct((T * B, V), jnp.float32),
        grid_spec=pltpu.PrefetchScalarGridSpec(
            num_scalar_prefetch=0,
            grid=(num_layers,),
            in_specs=[
                pl.BlockSpec((T * B, E), lambda l: (0, 0)),          # x (resident)
                pl.BlockSpec((E, 4 * H), lambda l: (0, 0)),          # W_ih layer 0
                pl.BlockSpec((None, H, 4 * H), lambda l: (l, 0, 0)),  # W_ih l>0
                pl.BlockSpec((None, H, 4 * H), lambda l: (l, 0, 0)),  # W_hh
                pl.BlockSpec((None, 1, 4 * H), lambda l: (l, 0, 0)),  # bias
                pl.BlockSpec((H, V), lambda l: (0, 0)),              # linear W
                pl.BlockSpec((1, V), lambda l: (0, 0)),              # linear b
            ],
            out_specs=pl.BlockSpec((T * B, V), lambda l: (0, 0)),
            scratch_shapes=[
                pltpu.VMEM((T * B, 4 * H), jnp.float32),   # hoisted x-proj
                pltpu.VMEM((T * B, H), jnp.bfloat16),      # layer output seq
            ]),
        compiler_params=pltpu.CompilerParams(
            dimension_semantics=("arbitrary",),            # serial over layers
            vmem_limit_bytes=64 * 1024 * 1024),
    )(x2d, wih0, wih_stack, whh_stack, b_stack,
      params["linear_w_t"], params["linear_b"])

    # permute(1,0,2) + Linear + permute back == Linear on the last dim.
    return logits2d.reshape(T, B, V)


# ----------------------------------------------------------------------------
# Parameter init (PyTorch-style uniform(-1/sqrt(H), 1/sqrt(H)); bf16 weights).
# ----------------------------------------------------------------------------
def init_params(key, vocab_size, embed_size, hidden_size, num_layers):
    params = {}
    k_emb, key = jax.random.split(key)
    params["embedding"] = jax.random.normal(
        k_emb, (vocab_size, embed_size), jnp.float32)   # nn.Embedding ~ N(0,1)

    stdv = 1.0 / (hidden_size ** 0.5)
    lstm = []
    for layer in range(num_layers):
        in_sz = embed_size if layer == 0 else hidden_size
        key, k1, k2, k3, k4 = jax.random.split(key, 5)
        w_ih = jax.random.uniform(k1, (4 * hidden_size, in_sz), jnp.float32,
                                  -stdv, stdv)
        w_hh = jax.random.uniform(k2, (4 * hidden_size, hidden_size),
                                  jnp.float32, -stdv, stdv)
        b_ih = jax.random.uniform(k3, (4 * hidden_size,), jnp.float32,
                                  -stdv, stdv)
        b_hh = jax.random.uniform(k4, (4 * hidden_size,), jnp.float32,
                                  -stdv, stdv)
        lstm.append({
            "w_ih_t": w_ih.T.astype(jnp.bfloat16),      # (in_sz, 4H) bf16
            "w_hh_t": w_hh.T.astype(jnp.bfloat16),      # (H, 4H)     bf16
            "bias": (b_ih + b_hh)[None, :],             # (1, 4H)     f32
        })
    params["lstm"] = lstm

    k_lw, k_lb = jax.random.split(key)
    w_lin = jax.random.uniform(k_lw, (vocab_size, hidden_size), jnp.float32,
                               -stdv, stdv)
    b_lin = jax.random.uniform(k_lb, (vocab_size,), jnp.float32, -stdv, stdv)
    params["linear_w_t"] = w_lin.T.astype(jnp.bfloat16)  # (H, V) bf16
    params["linear_b"] = b_lin[None, :]                  # (1, V) f32
    return params


# ----------------------------------------------------------------------------
# Pure-JAX reference (same bf16 matmul operands, f32 accumulation/elementwise).
# ----------------------------------------------------------------------------
def reference_forward(params, x_tokens):
    T, B = x_tokens.shape
    H = params["lstm"][0]["w_hh_t"].shape[0]
    V = params["linear_w_t"].shape[1]
    h_seq = jnp.take(params["embedding"], x_tokens, axis=0)   # (T, B, E) f32

    for lp in params["lstm"]:
        w_ih_t, w_hh_t, bias = lp["w_ih_t"], lp["w_hh_t"], lp["bias"]

        def step(carry, x_t, w_ih_t=w_ih_t, w_hh_t=w_hh_t, bias=bias):
            h, c = carry
            gates = (jnp.dot(x_t.astype(jnp.bfloat16), w_ih_t,
                             preferred_element_type=jnp.float32)
                     + jnp.dot(h.astype(jnp.bfloat16), w_hh_t,
                               preferred_element_type=jnp.float32)
                     + bias)
            i_g = jax.nn.sigmoid(gates[:, 0 * H:1 * H])
            f_g = jax.nn.sigmoid(gates[:, 1 * H:2 * H])
            g_g = jnp.tanh(gates[:, 2 * H:3 * H])
            o_g = jax.nn.sigmoid(gates[:, 3 * H:4 * H])
            c_new = f_g * c + i_g * g_g
            h_new = o_g * jnp.tanh(c_new)
            return (h_new, c_new), h_new

        init = (jnp.zeros((B, H), jnp.float32),
                jnp.zeros((B, H), jnp.float32))
        _, h_seq = lax.scan(step, init, h_seq)

    logits = (jnp.dot(h_seq.reshape(T * B, H).astype(jnp.bfloat16),
                      params["linear_w_t"],
                      preferred_element_type=jnp.float32)
              + params["linear_b"])
    return logits.reshape(T, B, V)


if __name__ == "__main__":
    vocab_size = 256      # multiple of 128 -> lane-dense logits store
    embed_size = 128      # lane-aligned
    hidden_size = 128     # lane-aligned gate slices / h,c math / seq stores
    num_layers = 3
    T, B = 8, 8

    key = jax.random.PRNGKey(0)
    k_params, k_tokens = jax.random.split(key)
    params = init_params(k_params, vocab_size, embed_size, hidden_size,
                         num_layers)
    x_tokens = jax.random.randint(k_tokens, (T, B), 0, vocab_size, jnp.int32)

    fwd = jax.jit(language_model_forward)
    out = jax.block_until_ready(fwd(params, x_tokens))

    ref = jax.block_until_ready(reference_forward(params, x_tokens))
    assert out.shape == (T, B, vocab_size), out.shape
    err = float(jnp.max(jnp.abs(out - ref)))
    assert err < 5e-3, err

    print("KERNEL_OK")
</pallas_src>

<mosaic_0001>
module attributes {stable_mosaic.version = 11 : i64} {
  func.func @kernel(%arg0: i32, %arg1: memref<64x128xbf16, #tpu.memory_space<vmem>>, %arg2: memref<128x512xbf16, #tpu.memory_space<vmem>>, %arg3: memref<1x128x512xbf16, #tpu.memory_space<vmem>>, %arg4: memref<1x128x512xbf16, #tpu.memory_space<vmem>>, %arg5: memref<1x1x512xf32, #tpu.memory_space<vmem>>, %arg6: memref<128x256xbf16, #tpu.memory_space<vmem>>, %arg7: memref<1x256xf32, #tpu.memory_space<vmem>>, %arg8: memref<64x256xf32, #tpu.memory_space<vmem>>, %arg9: memref<64x512xf32, #tpu.memory_space<vmem>>, %arg10: memref<64x128xbf16, #tpu.memory_space<vmem>>) attributes {dimension_semantics = [#tpu.dimension_semantics<arbitrary>], iteration_bounds = array<i64: 3>, scalar_prefetch = 0 : i64, scratch_operands = 2 : i64, tpu.core_type = #tpu.core_type<tc>, window_params = [{pipeline_mode = #tpu.pipeline_mode<synchronous>, transform_indices = @transform_0, window_bounds = array<i64: 64, 128>}, {pipeline_mode = #tpu.pipeline_mode<synchronous>, transform_indices = @transform_1, window_bounds = array<i64: 128, 512>}, {transform_indices = @transform_2, window_bounds = array<i64: 1, 128, 512>}, {transform_indices = @transform_3, window_bounds = array<i64: 1, 128, 512>}, {transform_indices = @transform_4, window_bounds = array<i64: 1, 1, 512>}, {pipeline_mode = #tpu.pipeline_mode<synchronous>, transform_indices = @transform_5, window_bounds = array<i64: 128, 256>}, {pipeline_mode = #tpu.pipeline_mode<synchronous>, transform_indices = @transform_6, window_bounds = array<i64: 1, 256>}, {pipeline_mode = #tpu.pipeline_mode<synchronous>, transform_indices = @transform_7, window_bounds = array<i64: 64, 256>}]} {
    %c0 = arith.constant 0 : index
    %c0_0 = arith.constant 0 : index
    %c0_1 = arith.constant 0 : index
    %0 = vector.load %arg5[%c0, %c0_0, %c0_1] : memref<1x1x512xf32, #tpu.memory_space<vmem>>, vector<1x1x512xf32>
    %1 = vector.shape_cast %0 : vector<1x1x512xf32> to vector<1x512xf32>
    %c0_i32 = arith.constant 0 : i32
    %2 = arith.cmpi eq, %arg0, %c0_i32 : i32
    %3 = arith.extui %2 : i1 to i32
    %c0_i32_2 = arith.constant 0 : i32
    %4 = arith.cmpi ne, %3, %c0_i32_2 : i32
    scf.if %4 {
      %c0_75 = arith.constant 0 : index
      %c0_76 = arith.constant 0 : index
      %268 = vector.load %arg1[%c0_75, %c0_76] : memref<64x128xbf16, #tpu.memory_space<vmem>>, vector<64x128xbf16>
      %c0_77 = arith.constant 0 : index
      %c0_78 = arith.constant 0 : index
      %269 = vector.load %arg2[%c0_77, %c0_78] : memref<128x512xbf16, #tpu.memory_space<vmem>>, vector<128x512xbf16>
      %cst_79 = arith.constant dense<0.000000e+00> : vector<64x512xf32>
      %270 = tpu.matmul %268, %269, %cst_79 {dimension_numbers = #tpu.dot_dimension_numbers<[1], [0], [0], [1], [0, 0, 1, 1], [], []>} : vector<64x128xbf16>, vector<128x512xbf16>, vector<64x512xf32> -> vector<64x512xf32>
      %271 = vector.broadcast %1 : vector<1x512xf32> to vector<64x512xf32>
      %272 = arith.addf %270, %271 : vector<64x512xf32>
      %c0_80 = arith.constant 0 : index
      %c0_81 = arith.constant 0 : index
      %273 = vector.load %arg9[%c0_80, %c0_81] : memref<64x512xf32, #tpu.memory_space<vmem>>, vector<64x512xf32>
      tpu.vector_store %arg9[%c0_80, %c0_81], %272 {strides = array<i32>} : memref<64x512xf32, #tpu.memory_space<vmem>>, vector<64x512xf32>,
    } else {
    }
    %c0_i32_3 = arith.constant 0 : i32
    %5 = arith.cmpi sgt, %arg0, %c0_i32_3 : i32
    %6 = arith.extui %5 : i1 to i32
    %c0_i32_4 = arith.constant 0 : i32
    %7 = arith.cmpi ne, %6, %c0_i32_4 : i32
    scf.if %7 {
      %c0_75 = arith.constant 0 : index
      %c0_76 = arith.constant 0 : index
      %268 = vector.load %arg10[%c0_75, %c0_76] : memref<64x128xbf16, #tpu.memory_space<vmem>>, vector<64x128xbf16>
      %c0_77 = arith.constant 0 : index
      %c0_78 = arith.constant 0 : index
      %c0_79 = arith.constant 0 : index
      %269 = vector.load %arg3[%c0_77, %c0_78, %c0_79] : memref<1x128x512xbf16, #tpu.memory_space<vmem>>, vector<1x128x512xbf16>
      %270 = vector.shape_cast %269 : vector<1x128x512xbf16> to vector<128x512xbf16>
      %cst_80 = arith.constant dense<0.000000e+00> : vector<64x512xf32>
      %271 = tpu.matmul %268, %270, %cst_80 {dimension_numbers = #tpu.dot_dimension_numbers<[1], [0], [0], [1], [0, 0, 1, 1], [], []>} : vector<64x128xbf16>, vector<128x512xbf16>, vector<64x512xf32> -> vector<64x512xf32>
      %272 = vector.broadcast %1 : vector<1x512xf32> to vector<64x512xf32>
      %273 = arith.addf %271, %272 : vector<64x512xf32>
      %c0_81 = arith.constant 0 : index
      %c0_82 = arith.constant 0 : index
      %274 = vector.load %arg9[%c0_81, %c0_82] : memref<64x512xf32, #tpu.memory_space<vmem>>, vector<64x512xf32>
      tpu.vector_store %arg9[%c0_81, %c0_82], %273 {strides = array<i32>} : memref<64x512xf32, #tpu.memory_space<vmem>>, vector<64x512xf32>,
    } else {
    }
    %c0_5 = arith.constant 0 : index
    %c0_6 = arith.constant 0 : index
    %c0_7 = arith.constant 0 : index
    %8 = vector.load %arg4[%c0_5, %c0_6, %c0_7] : memref<1x128x512xbf16, #tpu.memory_space<vmem>>, vector<1x128x512xbf16>
    %9 = vector.shape_cast %8 : vector<1x128x512xbf16> to vector<128x512xbf16>
    %10 = tpu.iota {dimensions = array<i32: 1>} : vector<8x512xi32>
    %c256_i32 = arith.constant 256 : i32
    %11 = vector.broadcast %c256_i32 : i32 to vector<8x512xi32>
    %12 = arith.cmpi sge, %10, %11 : vector<8x512xi32>
    %c384_i32 = arith.constant 384 : i32
    %13 = vector.broadcast %c384_i32 : i32 to vector<8x512xi32>
    %14 = arith.cmpi slt, %10, %13 : vector<8x512xi32>
    %15 = arith.andi %12, %14 : vector<8x512xi1>
    %cst = arith.constant 0.000000e+00 : f32
    %16 = vector.broadcast %cst : f32 to vector<8x128xf32>
    %c0_i32_8 = arith.constant 0 : i32
    %c8_i32 = arith.constant 8 : i32
    %17 = arith.muli %c0_i32_8, %c8_i32 : i32
    %18 = arith.index_cast %17 : i32 to index
    %c0_9 = arith.constant 0 : index
    %19 = vector.load %arg9[%18, %c0_9] : memref<64x512xf32, #tpu.memory_space<vmem>>, vector<8x512xf32>
    %20 = arith.truncf %16 : vector<8x128xf32> to vector<8x128xbf16>
    %cst_10 = arith.constant dense<0.000000e+00> : vector<8x512xf32>
    %21 = tpu.matmul %20, %9, %cst_10 {dimension_numbers = #tpu.dot_dimension_numbers<[1], [0], [0], [1], [0, 0, 1, 1], [], []>} : vector<8x128xbf16>, vector<128x512xbf16>, vector<8x512xf32> -> vector<8x512xf32>
    %22 = arith.addf %19, %21 : vector<8x512xf32>
    %cst_11 = arith.constant 2.000000e+00 : f32
    %23 = vector.broadcast %cst_11 : f32 to vector<8x512xf32>
    %24 = arith.mulf %22, %23 : vector<8x512xf32>
    %25 = arith.select %15, %24, %22 : vector<8x512xi1>, vector<8x512xf32>
    %26 = arith.negf %25 : vector<8x512xf32>
    %27 = math.exp %26 : vector<8x512xf32>
    %cst_12 = arith.constant 1.000000e+00 : f32
    %28 = vector.broadcast %cst_12 : f32 to vector<8x512xf32>
    %29 = arith.addf %28, %27 : vector<8x512xf32>
    %30 = arith.divf %28, %29 : vector<8x512xf32>
    %cst_13 = arith.constant 2.000000e+00 : f32
    %31 = vector.broadcast %cst_13 : f32 to vector<8x512xf32>
    %32 = arith.mulf %30, %31 : vector<8x512xf32>
    %cst_14 = arith.constant 1.000000e+00 : f32
    %33 = vector.broadcast %cst_14 : f32 to vector<8x512xf32>
    %34 = arith.subf %32, %33 : vector<8x512xf32>
    %35 = arith.select %15, %34, %30 : vector<8x512xi1>, vector<8x512xf32>
    %36 = vector.extract_strided_slice %35 {offsets = [0, 0], sizes = [8, 128], strides = [1, 1]} : vector<8x512xf32> to vector<8x128xf32>
    %37 = vector.extract_strided_slice %35 {offsets = [0, 128], sizes = [8, 128], strides = [1, 1]} : vector<8x512xf32> to vector<8x128xf32>
    %38 = vector.extract_strided_slice %35 {offsets = [0, 256], sizes = [8, 128], strides = [1, 1]} : vector<8x512xf32> to vector<8x128xf32>
    %39 = vector.extract_strided_slice %35 {offsets = [0, 384], sizes = [8, 128], strides = [1, 1]} : vector<8x512xf32> to vector<8x128xf32>
    %40 = arith.mulf %37, %16 : vector<8x128xf32>
    %41 = arith.mulf %36, %38 : vector<8x128xf32>
    %42 = arith.addf %40, %41 : vector<8x128xf32>
    %43 = math.tanh %42 : vector<8x128xf32>
    %44 = arith.mulf %39, %43 : vector<8x128xf32>
    %45 = arith.truncf %44 : vector<8x128xf32> to vector<8x128xbf16>
    %46 = arith.index_cast %17 : i32 to index
    %c0_15 = arith.constant 0 : index
    %47 = vector.load %arg10[%46, %c0_15] : memref<64x128xbf16, #tpu.memory_space<vmem>>, vector<8x128xbf16>
    tpu.vector_store %arg10[%46, %c0_15], %45 {strides = array<i32>} : memref<64x128xbf16, #tpu.memory_space<vmem>>, vector<8x128xbf16>,
    %c1_i32 = arith.constant 1 : i32
    %c8_i32_16 = arith.constant 8 : i32
    %48 = arith.muli %c1_i32, %c8_i32_16 : i32
    %49 = arith.index_cast %48 : i32 to index
    %c0_17 = arith.constant 0 : index
    %50 = vector.load %arg9[%49, %c0_17] : memref<64x512xf32, #tpu.memory_space<vmem>>, vector<8x512xf32>
    %51 = arith.truncf %44 : vector<8x128xf32> to vector<8x128xbf16>
    %cst_18 = arith.constant dense<0.000000e+00> : vector<8x512xf32>
    %52 = tpu.matmul %51, %9, %cst_18 {dimension_numbers = #tpu.dot_dimension_numbers<[1], [0], [0], [1], [0, 0, 1, 1], [], []>} : vector<8x128xbf16>, vector<128x512xbf16>, vector<8x512xf32> -> vector<8x512xf32>
    %53 = arith.addf %50, %52 : vector<8x512xf32>
    %cst_19 = arith.constant 2.000000e+00 : f32
    %54 = vector.broadcast %cst_19 : f32 to vector<8x512xf32>
    %55 = arith.mulf %53, %54 : vector<8x512xf32>
    %56 = arith.select %15, %55, %53 : vector<8x512xi1>, vector<8x512xf32>
    %57 = arith.negf %56 : vector<8x512xf32>
    %58 = math.exp %57 : vector<8x512xf32>
    %cst_20 = arith.constant 1.000000e+00 : f32
    %59 = vector.broadcast %cst_20 : f32 to vector<8x512xf32>
    %60 = arith.addf %59, %58 : vector<8x512xf32>
    %61 = arith.divf %59, %60 : vector<8x512xf32>
    %cst_21 = arith.constant 2.000000e+00 : f32
    %62 = vector.broadcast %cst_21 : f32 to vector<8x512xf32>
    %63 = arith.mulf %61, %62 : vector<8x512xf32>
    %cst_22 = arith.constant 1.000000e+00 : f32
    %64 = vector.broadcast %cst_22 : f32 to vector<8x512xf32>
    %65 = arith.subf %63, %64 : vector<8x512xf32>
    %66 = arith.select %15, %65, %61 : vector<8x512xi1>, vector<8x512xf32>
    %67 = vector.extract_strided_slice %66 {offsets = [0, 0], sizes = [8, 128], strides = [1, 1]} : vector<8x512xf32> to vector<8x128xf32>
    %68 = vector.extract_strided_slice %66 {offsets = [0, 128], sizes = [8, 128], strides = [1, 1]} : vector<8x512xf32> to vector<8x128xf32>
    %69 = vector.extract_strided_slice %66 {offsets = [0, 256], sizes = [8, 128], strides = [1, 1]} : vector<8x512xf32> to vector<8x128xf32>
    %70 = vector.extract_strided_slice %66 {offsets = [0, 384], sizes = [8, 128], strides = [1, 1]} : vector<8x512xf32> to vector<8x128xf32>
    %71 = arith.mulf %68, %42 : vector<8x128xf32>
    %72 = arith.mulf %67, %69 : vector<8x128xf32>
    %73 = arith.addf %71, %72 : vector<8x128xf32>
    %74 = math.tanh %73 : vector<8x128xf32>
    %75 = arith.mulf %70, %74 : vector<8x128xf32>
    %76 = arith.truncf %75 : vector<8x128xf32> to vector<8x128xbf16>
    %77 = arith.index_cast %48 : i32 to index
    %c0_23 = arith.constant 0 : index
    %78 = vector.load %arg10[%77, %c0_23] : memref<64x128xbf16, #tpu.memory_space<vmem>>, vector<8x128xbf16>
    tpu.vector_store %arg10[%77, %c0_23], %76 {strides = array<i32>} : memref<64x128xbf16, #tpu.memory_space<vmem>>, vector<8x128xbf16>,
    %c2_i32 = arith.constant 2 : i32
    %c8_i32_24 = arith.constant 8 : i32
    %79 = arith.muli %c2_i32, %c8_i32_24 : i32
    %80 = arith.index_cast %79 : i32 to index
    %c0_25 = arith.constant 0 : index
    %81 = vector.load %arg9[%80, %c0_25] : memref<64x512xf32, #tpu.memory_space<vmem>>, vector<8x512xf32>
    %82 = arith.truncf %75 : vector<8x128xf32> to vector<8x128xbf16>
    %cst_26 = arith.constant dense<0.000000e+00> : vector<8x512xf32>
    %83 = tpu.matmul %82, %9, %cst_26 {dimension_numbers = #tpu.dot_dimension_numbers<[1], [0], [0], [1], [0, 0, 1, 1], [], []>} : vector<8x128xbf16>, vector<128x512xbf16>, vector<8x512xf32> -> vector<8x512xf32>
    %84 = arith.addf %81, %83 : vector<8x512xf32>
    %cst_27 = arith.constant 2.000000e+00 : f32
    %85 = vector.broadcast %cst_27 : f32 to vector<8x512xf32>
    %86 = arith.mulf %84, %85 : vector<8x512xf32>
    %87 = arith.select %15, %86, %84 : vector<8x512xi1>, vector<8x512xf32>
    %88 = arith.negf %87 : vector<8x512xf32>
    %89 = math.exp %88 : vector<8x512xf32>
    %cst_28 = arith.constant 1.000000e+00 : f32
    %90 = vector.broadcast %cst_28 : f32 to vector<8x512xf32>
    %91 = arith.addf %90, %89 : vector<8x512xf32>
    %92 = arith.divf %90, %91 : vector<8x512xf32>
    %cst_29 = arith.constant 2.000000e+00 : f32
    %93 = vector.broadcast %cst_29 : f32 to vector<8x512xf32>
    %94 = arith.mulf %92, %93 : vector<8x512xf32>
    %cst_30 = arith.constant 1.000000e+00 : f32
    %95 = vector.broadcast %cst_30 : f32 to vector<8x512xf32>
    %96 = arith.subf %94, %95 : vector<8x512xf32>
    %97 = arith.select %15, %96, %92 : vector<8x512xi1>, vector<8x512xf32>
    %98 = vector.extract_strided_slice %97 {offsets = [0, 0], sizes = [8, 128], strides = [1, 1]} : vector<8x512xf32> to vector<8x128xf32>
    %99 = vector.extract_strided_slice %97 {offsets = [0, 128], sizes = [8, 128], strides = [1, 1]} : vector<8x512xf32> to vector<8x128xf32>
    %100 = vector.extract_strided_slice %97 {offsets = [0, 256], sizes = [8, 128], strides = [1, 1]} : vector<8x512xf32> to vector<8x128xf32>
    %101 = vector.extract_strided_slice %97 {offsets = [0, 384], sizes = [8, 128], strides = [1, 1]} : vector<8x512xf32> to vector<8x128xf32>
    %102 = arith.mulf %99, %73 : vector<8x128xf32>
    %103 = arith.mulf %98, %100 : vector<8x128xf32>
    %104 = arith.addf %102, %103 : vector<8x128xf32>
    %105 = math.tanh %104 : vector<8x128xf32>
    %106 = arith.mulf %101, %105 : vector<8x128xf32>
    %107 = arith.truncf %106 : vector<8x128xf32> to vector<8x128xbf16>
    %108 = arith.index_cast %79 : i32 to index
    %c0_31 = arith.constant 0 : index
    %109 = vector.load %arg10[%108, %c0_31] : memref<64x128xbf16, #tpu.memory_space<vmem>>, vector<8x128xbf16>
    tpu.vector_store %arg10[%108, %c0_31], %107 {strides = array<i32>} : memref<64x128xbf16, #tpu.memory_space<vmem>>, vector<8x128xbf16>,
    %c3_i32 = arith.constant 3 : i32
    %c8_i32_32 = arith.constant 8 : i32
    %110 = arith.muli %c3_i32, %c8_i32_32 : i32
    %111 = arith.index_cast %110 : i32 to index
    %c0_33 = arith.constant 0 : index
    %112 = vector.load %arg9[%111, %c0_33] : memref<64x512xf32, #tpu.memory_space<vmem>>, vector<8x512xf32>
    %113 = arith.truncf %106 : vector<8x128xf32> to vector<8x128xbf16>
    %cst_34 = arith.constant dense<0.000000e+00> : vector<8x512xf32>
    %114 = tpu.matmul %113, %9, %cst_34 {dimension_numbers = #tpu.dot_dimension_numbers<[1], [0], [0], [1], [0, 0, 1, 1], [], []>} : vector<8x128xbf16>, vector<128x512xbf16>, vector<8x512xf32> -> vector<8x512xf32>
    %115 = arith.addf %112, %114 : vector<8x512xf32>
    %cst_35 = arith.constant 2.000000e+00 : f32
    %116 = vector.broadcast %cst_35 : f32 to vector<8x512xf32>
    %117 = arith.mulf %115, %116 : vector<8x512xf32>
    %118 = arith.select %15, %117, %115 : vector<8x512xi1>, vector<8x512xf32>
    %119 = arith.negf %118 : vector<8x512xf32>
    %120 = math.exp %119 : vector<8x512xf32>
    %cst_36 = arith.constant 1.000000e+00 : f32
    %121 = vector.broadcast %cst_36 : f32 to vector<8x512xf32>
    %122 = arith.addf %121, %120 : vector<8x512xf32>
    %123 = arith.divf %121, %122 : vector<8x512xf32>
    %cst_37 = arith.constant 2.000000e+00 : f32
    %124 = vector.broadcast %cst_37 : f32 to vector<8x512xf32>
    %125 = arith.mulf %123, %124 : vector<8x512xf32>
    %cst_38 = arith.constant 1.000000e+00 : f32
    %126 = vector.broadcast %cst_38 : f32 to vector<8x512xf32>
    %127 = arith.subf %125, %126 : vector<8x512xf32>
    %128 = arith.select %15, %127, %123 : vector<8x512xi1>, vector<8x512xf32>
    %129 = vector.extract_strided_slice %128 {offsets = [0, 0], sizes = [8, 128], strides = [1, 1]} : vector<8x512xf32> to vector<8x128xf32>
    %130 = vector.extract_strided_slice %128 {offsets = [0, 128], sizes = [8, 128], strides = [1, 1]} : vector<8x512xf32> to vector<8x128xf32>
    %131 = vector.extract_strided_slice %128 {offsets = [0, 256], sizes = [8, 128], strides = [1, 1]} : vector<8x512xf32> to vector<8x128xf32>
    %132 = vector.extract_strided_slice %128 {offsets = [0, 384], sizes = [8, 128], strides = [1, 1]} : vector<8x512xf32> to vector<8x128xf32>
    %133 = arith.mulf %130, %104 : vector<8x128xf32>
    %134 = arith.mulf %129, %131 : vector<8x128xf32>
    %135 = arith.addf %133, %134 : vector<8x128xf32>
    %136 = math.tanh %135 : vector<8x128xf32>
    %137 = arith.mulf %132, %136 : vector<8x128xf32>
    %138 = arith.truncf %137 : vector<8x128xf32> to vector<8x128xbf16>
    %139 = arith.index_cast %110 : i32 to index
    %c0_39 = arith.constant 0 : index
    %140 = vector.load %arg10[%139, %c0_39] : memref<64x128xbf16, #tpu.memory_space<vmem>>, vector<8x128xbf16>
    tpu.vector_store %arg10[%139, %c0_39], %138 {strides = array<i32>} : memref<64x128xbf16, #tpu.memory_space<vmem>>, vector<8x128xbf16>,
    %c4_i32 = arith.constant 4 : i32
    %c8_i32_40 = arith.constant 8 : i32
    %141 = arith.muli %c4_i32, %c8_i32_40 : i32
    %142 = arith.index_cast %141 : i32 to index
    %c0_41 = arith.constant 0 : index
    %143 = vector.load %arg9[%142, %c0_41] : memref<64x512xf32, #tpu.memory_space<vmem>>, vector<8x512xf32>
    %144 = arith.truncf %137 : vector<8x128xf32> to vector<8x128xbf16>
    %cst_42 = arith.constant dense<0.000000e+00> : vector<8x512xf32>
    %145 = tpu.matmul %144, %9, %cst_42 {dimension_numbers = #tpu.dot_dimension_numbers<[1], [0], [0], [1], [0, 0, 1, 1], [], []>} : vector<8x128xbf16>, vector<128x512xbf16>, vector<8x512xf32> -> vector<8x512xf32>
    %146 = arith.addf %143, %145 : vector<8x512xf32>
    %cst_43 = arith.constant 2.000000e+00 : f32
    %147 = vector.broadcast %cst_43 : f32 to vector<8x512xf32>
    %148 = arith.mulf %146, %147 : vector<8x512xf32>
    %149 = arith.select %15, %148, %146 : vector<8x512xi1>, vector<8x512xf32>
    %150 = arith.negf %149 : vector<8x512xf32>
    %151 = math.exp %150 : vector<8x512xf32>
    %cst_44 = arith.constant 1.000000e+00 : f32
    %152 = vector.broadcast %cst_44 : f32 to vector<8x512xf32>
    %153 = arith.addf %152, %151 : vector<8x512xf32>
    %154 = arith.divf %152, %153 : vector<8x512xf32>
    %cst_45 = arith.constant 2.000000e+00 : f32
    %155 = vector.broadcast %cst_45 : f32 to vector<8x512xf32>
    %156 = arith.mulf %154, %155 : vector<8x512xf32>
    %cst_46 = arith.constant 1.000000e+00 : f32
    %157 = vector.broadcast %cst_46 : f32 to vector<8x512xf32>
    %158 = arith.subf %156, %157 : vector<8x512xf32>
    %159 = arith.select %15, %158, %154 : vector<8x512xi1>, vector<8x512xf32>
    %160 = vector.extract_strided_slice %159 {offsets = [0, 0], sizes = [8, 128], strides = [1, 1]} : vector<8x512xf32> to vector<8x128xf32>
    %161 = vector.extract_strided_slice %159 {offsets = [0, 128], sizes = [8, 128], strides = [1, 1]} : vector<8x512xf32> to vector<8x128xf32>
    %162 = vector.extract_strided_slice %159 {offsets = [0, 256], sizes = [8, 128], strides = [1, 1]} : vector<8x512xf32> to vector<8x128xf32>
    %163 = vector.extract_strided_slice %159 {offsets = [0, 384], sizes = [8, 128], strides = [1, 1]} : vector<8x512xf32> to vector<8x128xf32>
    %164 = arith.mulf %161, %135 : vector<8x128xf32>
    %165 = arith.mulf %160, %162 : vector<8x128xf32>
    %166 = arith.addf %164, %165 : vector<8x128xf32>
    %167 = math.tanh %166 : vector<8x128xf32>
    %168 = arith.mulf %163, %167 : vector<8x128xf32>
    %169 = arith.truncf %168 : vector<8x128xf32> to vector<8x128xbf16>
    %170 = arith.index_cast %141 : i32 to index
    %c0_47 = arith.constant 0 : index
    %171 = vector.load %arg10[%170, %c0_47] : memref<64x128xbf16, #tpu.memory_space<vmem>>, vector<8x128xbf16>
    tpu.vector_store %arg10[%170, %c0_47], %169 {strides = array<i32>} : memref<64x128xbf16, #tpu.memory_space<vmem>>, vector<8x128xbf16>,
    %c5_i32 = arith.constant 5 : i32
    %c8_i32_48 = arith.constant 8 : i32
    %172 = arith.muli %c5_i32, %c8_i32_48 : i32
    %173 = arith.index_cast %172 : i32 to index
    %c0_49 = arith.constant 0 : index
    %174 = vector.load %arg9[%173, %c0_49] : memref<64x512xf32, #tpu.memory_space<vmem>>, vector<8x512xf32>
    %175 = arith.truncf %168 : vector<8x128xf32> to vector<8x128xbf16>
    %cst_50 = arith.constant dense<0.000000e+00> : vector<8x512xf32>
    %176 = tpu.matmul %175, %9, %cst_50 {dimension_numbers = #tpu.dot_dimension_numbers<[1], [0], [0], [1], [0, 0, 1, 1], [], []>} : vector<8x128xbf16>, vector<128x512xbf16>, vector<8x512xf32> -> vector<8x512xf32>
    %177 = arith.addf %174, %176 : vector<8x512xf32>
    %cst_51 = arith.constant 2.000000e+00 : f32
    %178 = vector.broadcast %cst_51 : f32 to vector<8x512xf32>
    %179 = arith.mulf %177, %178 : vector<8x512xf32>
    %180 = arith.select %15, %179, %177 : vector<8x512xi1>, vector<8x512xf32>
    %181 = arith.negf %180 : vector<8x512xf32>
    %182 = math.exp %181 : vector<8x512xf32>
    %cst_52 = arith.constant 1.000000e+00 : f32
    %183 = vector.broadcast %cst_52 : f32 to vector<8x512xf32>
    %184 = arith.addf %183, %182 : vector<8x512xf32>
    %185 = arith.divf %183, %184 : vector<8x512xf32>
    %cst_53 = arith.constant 2.000000e+00 : f32
    %186 = vector.broadcast %cst_53 : f32 to vector<8x512xf32>
    %187 = arith.mulf %185, %186 : vector<8x512xf32>
    %cst_54 = arith.constant 1.000000e+00 : f32
    %188 = vector.broadcast %cst_54 : f32 to vector<8x512xf32>
    %189 = arith.subf %187, %188 : vector<8x512xf32>
    %190 = arith.select %15, %189, %185 : vector<8x512xi1>, vector<8x512xf32>
    %191 = vector.extract_strided_slice %190 {offsets = [0, 0], sizes = [8, 128], strides = [1, 1]} : vector<8x512xf32> to vector<8x128xf32>
    %192 = vector.extract_strided_slice %190 {offsets = [0, 128], sizes = [8, 128], strides = [1, 1]} : vector<8x512xf32> to vector<8x128xf32>
    %193 = vector.extract_strided_slice %190 {offsets = [0, 256], sizes = [8, 128], strides = [1, 1]} : vector<8x512xf32> to vector<8x128xf32>
    %194 = vector.extract_strided_slice %190 {offsets = [0, 384], sizes = [8, 128], strides = [1, 1]} : vector<8x512xf32> to vector<8x128xf32>
    %195 = arith.mulf %192, %166 : vector<8x128xf32>
    %196 = arith.mulf %191, %193 : vector<8x128xf32>
    %197 = arith.addf %195, %196 : vector<8x128xf32>
    %198 = math.tanh %197 : vector<8x128xf32>
    %199 = arith.mulf %194, %198 : vector<8x128xf32>
    %200 = arith.truncf %199 : vector<8x128xf32> to vector<8x128xbf16>
    %201 = arith.index_cast %172 : i32 to index
    %c0_55 = arith.constant 0 : index
    %202 = vector.load %arg10[%201, %c0_55] : memref<64x128xbf16, #tpu.memory_space<vmem>>, vector<8x128xbf16>
    tpu.vector_store %arg10[%201, %c0_55], %200 {strides = array<i32>} : memref<64x128xbf16, #tpu.memory_space<vmem>>, vector<8x128xbf16>,
    %c6_i32 = arith.constant 6 : i32
    %c8_i32_56 = arith.constant 8 : i32
    %203 = arith.muli %c6_i32, %c8_i32_56 : i32
    %204 = arith.index_cast %203 : i32 to index
    %c0_57 = arith.constant 0 : index
    %205 = vector.load %arg9[%204, %c0_57] : memref<64x512xf32, #tpu.memory_space<vmem>>, vector<8x512xf32>
    %206 = arith.truncf %199 : vector<8x128xf32> to vector<8x128xbf16>
    %cst_58 = arith.constant dense<0.000000e+00> : vector<8x512xf32>
    %207 = tpu.matmul %206, %9, %cst_58 {dimension_numbers = #tpu.dot_dimension_numbers<[1], [0], [0], [1], [0, 0, 1, 1], [], []>} : vector<8x128xbf16>, vector<128x512xbf16>, vector<8x512xf32> -> vector<8x512xf32>
    %208 = arith.addf %205, %207 : vector<8x512xf32>
    %cst_59 = arith.constant 2.000000e+00 : f32
    %209 = vector.broadcast %cst_59 : f32 to vector<8x512xf32>
    %210 = arith.mulf %208, %209 : vector<8x512xf32>
    %211 = arith.select %15, %210, %208 : vector<8x512xi1>, vector<8x512xf32>
    %212 = arith.negf %211 : vector<8x512xf32>
    %213 = math.exp %212 : vector<8x512xf32>
    %cst_60 = arith.constant 1.000000e+00 : f32
    %214 = vector.broadcast %cst_60 : f32 to vector<8x512xf32>
    %215 = arith.addf %214, %213 : vector<8x512xf32>
    %216 = arith.divf %214, %215 : vector<8x512xf32>
    %cst_61 = arith.constant 2.000000e+00 : f32
    %217 = vector.broadcast %cst_61 : f32 to vector<8x512xf32>
    %218 = arith.mulf %216, %217 : vector<8x512xf32>
    %cst_62 = arith.constant 1.000000e+00 : f32
    %219 = vector.broadcast %cst_62 : f32 to vector<8x512xf32>
    %220 = arith.subf %218, %219 : vector<8x512xf32>
    %221 = arith.select %15, %220, %216 : vector<8x512xi1>, vector<8x512xf32>
    %222 = vector.extract_strided_slice %221 {offsets = [0, 0], sizes = [8, 128], strides = [1, 1]} : vector<8x512xf32> to vector<8x128xf32>
    %223 = vector.extract_strided_slice %221 {offsets = [0, 128], sizes = [8, 128], strides = [1, 1]} : vector<8x512xf32> to vector<8x128xf32>
    %224 = vector.extract_strided_slice %221 {offsets = [0, 256], sizes = [8, 128], strides = [1, 1]} : vector<8x512xf32> to vector<8x128xf32>
    %225 = vector.extract_strided_slice %221 {offsets = [0, 384], sizes = [8, 128], strides = [1, 1]} : vector<8x512xf32> to vector<8x128xf32>
    %226 = arith.mulf %223, %197 : vector<8x128xf32>
    %227 = arith.mulf %222, %224 : vector<8x128xf32>
    %228 = arith.addf %226, %227 : vector<8x128xf32>
    %229 = math.tanh %228 : vector<8x128xf32>
    %230 = arith.mulf %225, %229 : vector<8x128xf32>
    %231 = arith.truncf %230 : vector<8x128xf32> to vector<8x128xbf16>
    %232 = arith.index_cast %203 : i32 to index
    %c0_63 = arith.constant 0 : index
    %233 = vector.load %arg10[%232, %c0_63] : memref<64x128xbf16, #tpu.memory_space<vmem>>, vector<8x128xbf16>
    tpu.vector_store %arg10[%232, %c0_63], %231 {strides = array<i32>} : memref<64x128xbf16, #tpu.memory_space<vmem>>, vector<8x128xbf16>,
    %c7_i32 = arith.constant 7 : i32
    %c8_i32_64 = arith.constant 8 : i32
    %234 = arith.muli %c7_i32, %c8_i32_64 : i32
    %235 = arith.index_cast %234 : i32 to index
    %c0_65 = arith.constant 0 : index
    %236 = vector.load %arg9[%235, %c0_65] : memref<64x512xf32, #tpu.memory_space<vmem>>, vector<8x512xf32>
    %237 = arith.truncf %230 : vector<8x128xf32> to vector<8x128xbf16>
    %cst_66 = arith.constant dense<0.000000e+00> : vector<8x512xf32>
    %238 = tpu.matmul %237, %9, %cst_66 {dimension_numbers = #tpu.dot_dimension_numbers<[1], [0], [0], [1], [0, 0, 1, 1], [], []>} : vector<8x128xbf16>, vector<128x512xbf16>, vector<8x512xf32> -> vector<8x512xf32>
    %239 = arith.addf %236, %238 : vector<8x512xf32>
    %cst_67 = arith.constant 2.000000e+00 : f32
    %240 = vector.broadcast %cst_67 : f32 to vector<8x512xf32>
    %241 = arith.mulf %239, %240 : vector<8x512xf32>
    %242 = arith.select %15, %241, %239 : vector<8x512xi1>, vector<8x512xf32>
    %243 = arith.negf %242 : vector<8x512xf32>
    %244 = math.exp %243 : vector<8x512xf32>
    %cst_68 = arith.constant 1.000000e+00 : f32
    %245 = vector.broadcast %cst_68 : f32 to vector<8x512xf32>
    %246 = arith.addf %245, %244 : vector<8x512xf32>
    %247 = arith.divf %245, %246 : vector<8x512xf32>
    %cst_69 = arith.constant 2.000000e+00 : f32
    %248 = vector.broadcast %cst_69 : f32 to vector<8x512xf32>
    %249 = arith.mulf %247, %248 : vector<8x512xf32>
    %cst_70 = arith.constant 1.000000e+00 : f32
    %250 = vector.broadcast %cst_70 : f32 to vector<8x512xf32>
    %251 = arith.subf %249, %250 : vector<8x512xf32>
    %252 = arith.select %15, %251, %247 : vector<8x512xi1>, vector<8x512xf32>
    %253 = vector.extract_strided_slice %252 {offsets = [0, 0], sizes = [8, 128], strides = [1, 1]} : vector<8x512xf32> to vector<8x128xf32>
    %254 = vector.extract_strided_slice %252 {offsets = [0, 128], sizes = [8, 128], strides = [1, 1]} : vector<8x512xf32> to vector<8x128xf32>
    %255 = vector.extract_strided_slice %252 {offsets = [0, 256], sizes = [8, 128], strides = [1, 1]} : vector<8x512xf32> to vector<8x128xf32>
    %256 = vector.extract_strided_slice %252 {offsets = [0, 384], sizes = [8, 128], strides = [1, 1]} : vector<8x512xf32> to vector<8x128xf32>
    %257 = arith.mulf %254, %228 : vector<8x128xf32>
    %258 = arith.mulf %253, %255 : vector<8x128xf32>
    %259 = arith.addf %257, %258 : vector<8x128xf32>
    %260 = math.tanh %259 : vector<8x128xf32>
    %261 = arith.mulf %256, %260 : vector<8x128xf32>
    %262 = arith.truncf %261 : vector<8x128xf32> to vector<8x128xbf16>
    %263 = arith.index_cast %234 : i32 to index
    %c0_71 = arith.constant 0 : index
    %264 = vector.load %arg10[%263, %c0_71] : memref<64x128xbf16, #tpu.memory_space<vmem>>, vector<8x128xbf16>
    tpu.vector_store %arg10[%263, %c0_71], %262 {strides = array<i32>} : memref<64x128xbf16, #tpu.memory_space<vmem>>, vector<8x128xbf16>,
    %c8_i32_72 = arith.constant 8 : i32
    %c2_i32_73 = arith.constant 2 : i32
    %265 = arith.cmpi eq, %arg0, %c2_i32_73 : i32
    %266 = arith.extui %265 : i1 to i32
    %c0_i32_74 = arith.constant 0 : i32
    %267 = arith.cmpi ne, %266, %c0_i32_74 : i32
    scf.if %267 {
      %c0_75 = arith.constant 0 : index
      %c0_76 = arith.constant 0 : index
      %268 = vector.load %arg10[%c0_75, %c0_76] : memref<64x128xbf16, #tpu.memory_space<vmem>>, vector<64x128xbf16>
      %c0_77 = arith.constant 0 : index
      %c0_78 = arith.constant 0 : index
      %269 = vector.load %arg6[%c0_77, %c0_78] : memref<128x256xbf16, #tpu.memory_space<vmem>>, vector<128x256xbf16>
      %cst_79 = arith.constant dense<0.000000e+00> : vector<64x256xf32>
      %270 = tpu.matmul %268, %269, %cst_79 {dimension_numbers = #tpu.dot_dimension_numbers<[1], [0], [0], [1], [0, 0, 1, 1], [], []>} : vector<64x128xbf16>, vector<128x256xbf16>, vector<64x256xf32> -> vector<64x256xf32>
      %c0_80 = arith.constant 0 : index
      %c0_81 = arith.constant 0 : index
      %271 = vector.load %arg7[%c0_80, %c0_81] : memref<1x256xf32, #tpu.memory_space<vmem>>, vector<1x256xf32>
      %272 = vector.broadcast %271 : vector<1x256xf32> to vector<64x256xf32>
      %273 = arith.addf %270, %272 : vector<64x256xf32>
      %c0_82 = arith.constant 0 : index
      %c0_83 = arith.constant 0 : index
      %274 = vector.load %arg8[%c0_82, %c0_83] : memref<64x256xf32, #tpu.memory_space<vmem>>, vector<64x256xf32>
      tpu.vector_store %arg8[%c0_82, %c0_83], %273 {strides = array<i32>} : memref<64x256xf32, #tpu.memory_space<vmem>>, vector<64x256xf32>,
    } else {
    }
    return
  }
  func.func @transform_0(%arg0: i32) -> (i32, i32) {
    %c0_i32 = arith.constant 0 : i32
    %c0_i32_0 = arith.constant 0 : i32
    %c0_i32_1 = arith.constant 0 : i32
    return %c0_i32, %c0_i32_0 : i32, i32
  }
  func.func @transform_1(%arg0: i32) -> (i32, i32) {
    %c0_i32 = arith.constant 0 : i32
    %c0_i32_0 = arith.constant 0 : i32
    %c0_i32_1 = arith.constant 0 : i32
    return %c0_i32, %c0_i32_0 : i32, i32
  }
  func.func @transform_2(%arg0: i32) -> (i32, i32, i32) {
    %c0_i32 = arith.constant 0 : i32
    %c0_i32_0 = arith.constant 0 : i32
    %c0_i32_1 = arith.constant 0 : i32
    return %arg0, %c0_i32, %c0_i32_0 : i32, i32, i32
  }
  func.func @transform_3(%arg0: i32) -> (i32, i32, i32) {
    %c0_i32 = arith.constant 0 : i32
    %c0_i32_0 = arith.constant 0 : i32
    %c0_i32_1 = arith.constant 0 : i32
    return %arg0, %c0_i32, %c0_i32_0 : i32, i32, i32
  }
  func.func @transform_4(%arg0: i32) -> (i32, i32, i32) {
    %c0_i32 = arith.constant 0 : i32
    %c0_i32_0 = arith.constant 0 : i32
    %c0_i32_1 = arith.constant 0 : i32
    return %arg0, %c0_i32, %c0_i32_0 : i32, i32, i32
  }
  func.func @transform_5(%arg0: i32) -> (i32, i32) {
    %c0_i32 = arith.constant 0 : i32
    %c0_i32_0 = arith.constant 0 : i32
    %c0_i32_1 = arith.constant 0 : i32
    return %c0_i32, %c0_i32_0 : i32, i32
  }
  func.func @transform_6(%arg0: i32) -> (i32, i32) {
    %c0_i32 = arith.constant 0 : i32
    %c0_i32_0 = arith.constant 0 : i32
    %c0_i32_1 = arith.constant 0 : i32
    return %c0_i32, %c0_i32_0 : i32, i32
  }
  func.func @transform_7(%arg0: i32) -> (i32, i32) {
    %c0_i32 = arith.constant 0 : i32
    %c0_i32_0 = arith.constant 0 : i32
    %c0_i32_1 = arith.constant 0 : i32
    return %c0_i32, %c0_i32_0 : i32, i32
  }
}

</mosaic_0001>

<llo_original>
// kernel: language_model_forward.1
$region0: #{language_model_forward.1}
  #allocation0 [shape = 'u32[]', space=smem, size = 0x4, offset = 0x4, fixed_abs, tag = 'smem constant byte address 0x4 - core index']
  #allocation1 [shape = 'u32[72,128]{1,0:T(1,128)}', space=vmem, size = 0x9000, scoped, tag = 'internal scratch']
  #allocation2 [shape = 'f32[64,512]{1,0:T(8,128)}', space=vmem, size = 0x20000, scoped, tag = 'scratch operand']
  #allocation3 [shape = 'bf16[64,128]{1,0:T(8,128)(2,1)}', space=vmem, size = 0x4000, scoped, tag = 'scratch operand']
  %s0 = inlined_call_operand.vmem [shape: bf16[64,128], index: 0, kind: input, shape index: {}]
  %s1 = inlined_call_operand.vmem [shape: bf16[128,512], index: 1, kind: input, shape index: {}]
  %s2 = inlined_call_operand.vmem [shape: bf16[3,128,512], index: 2, kind: input, shape index: {}]
  %s3 = inlined_call_operand.vmem [shape: bf16[3,128,512], index: 3, kind: input, shape index: {}]
  %s4 = inlined_call_operand.vmem [shape: f32[3,1,512], index: 4, kind: input, shape index: {}]
  %s5 = inlined_call_operand.vmem [shape: bf16[128,256], index: 5, kind: input, shape index: {}]
  %s6 = inlined_call_operand.vmem [shape: f32[1,256], index: 6, kind: input, shape index: {}]
  %s7 = inlined_call_operand.hbm [shape: f32[64,256], index: 7, kind: output, shape index: {}]
  %s8 = sld [smem:[#allocation0]]
  $region73: #{language_model_forward.1} parent=0
    _
  %s10 = ssub.s32 1, %s8
  %s11 = scalar_select 0, %s10, %s8
  $region1: #{language_model_forward.1} parent=0
    #allocation4 [shape = 'u8[65536]{0}', space=vmem, size = 0x10000, scoped, tag = 'output window, operand 0, single buffered']
    #allocation5 [shape = 's32[2]{0}', space=sflag, size = 0x8, scoped, tag = 'scoped memory for language_model_forward.1']
    %12 = vsyncpa [#allocation5], 0
    loop: start=0, step=1, limit=5
    $region2: #{language_model_forward.1} parent=1 // loop_pre_header
      _
    $region3: #{language_model_forward.1} parent=1 // loop_header
      %s14 = sphi 0, %s18
      %p15 = scmp.ge.s32.totalorder %s14, 5
      %s22 = sphi 0, %s22
      %s24 = sphi 0, %s22
      %s25 = sphi 0, %s24
      %s39 = sphi 0, %s25
      %s43 = sphi 0, %s43
      %s45 = sphi 0, %s43
      %s46 = sphi 0, %s45
      %s60 = sphi 0, %s46
      %s66 = sphi 0, %s68
      %s69 = sphi 0, %s66
      %s70 = sphi 0, %s69
      %s86 = sphi 0, %s70
      %s92 = sphi 0, %s94
      %s95 = sphi 0, %s92
      %s96 = sphi 0, %s95
      %s112 = sphi 0, %s96
      %s118 = sphi 0, %s120
      %s121 = sphi 0, %s118
      %s122 = sphi 0, %s121
      %s138 = sphi 0, %s122
      %s142 = sphi 0, %s142
      %s144 = sphi 0, %s142
      %s145 = sphi 0, %s144
      %s159 = sphi 0, %s145
      %s163 = sphi 0, %s163
      %s165 = sphi 0, %s163
      %s166 = sphi 0, %s165
      %s180 = sphi 0, %s166
      %s184 = sphi 0, %s184
      %s186 = sphi 0, %s184
      %s187 = sphi 0, %s186
      %s201 = sphi 0, %s187
    $region4: #{language_model_forward.1} parent=1 // loop_header_branch
      %17 = sbr.rel (%p15) target = $region8
    $region5: #{language_model_forward.1} parent=1 // loop_body
      %s19 = ssub.s32 %s14, 1
      %s20 = ssub.s32 %s14, 2
      %s21 = sadd.s32 %s14, 1
      %s23 = sadd.s32 %s22, 1
      %p26 = scmp.eq.s32.totalorder %s14, 2
      %p27 = scmp.ne.s32.totalorder %s22, %s24
      %p28 = scmp.eq.s32.totalorder %s14, 0
      %p29 = por %p27, %p28
      %p30 = scmp.ne.s32.totalorder %s22, %s24
      %p31 = scmp.eq.s32.totalorder %s19, 2
      %p32 = por %p30, %p31
      %p33 = scmp.ne.s32.totalorder %s24, %s25
      %p34 = scmp.eq.s32.totalorder %s19, 0
      %p35 = por %p33, %p34
      %p36 = scmp.ne.s32.totalorder %s24, %s25
      %p37 = scmp.eq.s32.totalorder %s20, 2
      %p38 = por %p36, %p37
      %p40 = scmp.ne.s32.totalorder %s25, %s39
      %p41 = scmp.eq.s32.totalorder %s20, 0
      %p42 = por %p40, %p41
      %s44 = sadd.s32 %s43, 1
      %p47 = scmp.eq.s32.totalorder %s14, 2
      %p48 = scmp.ne.s32.totalorder %s43, %s45
      %p49 = scmp.eq.s32.totalorder %s14, 0
      %p50 = por %p48, %p49
      %p51 = scmp.ne.s32.totalorder %s43, %s45
      %p52 = scmp.eq.s32.totalorder %s19, 2
      %p53 = por %p51, %p52
      %p54 = scmp.ne.s32.totalorder %s45, %s46
      %p55 = scmp.eq.s32.totalorder %s19, 0
      %p56 = por %p54, %p55
      %p57 = scmp.ne.s32.totalorder %s45, %s46
      %p58 = scmp.eq.s32.totalorder %s20, 2
      %p59 = por %p57, %p58
      %p61 = scmp.ne.s32.totalorder %s46, %s60
      %p62 = scmp.eq.s32.totalorder %s20, 0
      %p63 = por %p61, %p62
      %s64 = ssub.s32 %s14, %s21
      %p65 = scmp.eq.s32.totalorder %s64, 0
      %s67 = sadd.s32 %s66, 1
      %s68 = scalar_select %p65, %s66, %s67
      %p71 = pneg %p65
      %p72 = scmp.eq.s32.totalorder %s14, 2
      %p73 = por %p71, %p72
      %p74 = scmp.ne.s32.totalorder %s66, %s69
      %p75 = scmp.eq.s32.totalorder %s14, 0
      %p76 = por %p74, %p75
      %p77 = scmp.ne.s32.totalorder %s66, %s69
      %p78 = scmp.eq.s32.totalorder %s19, 2
      %p79 = por %p77, %p78
      %p80 = scmp.ne.s32.totalorder %s69, %s70
      %p81 = scmp.eq.s32.totalorder %s19, 0
      %p82 = por %p80, %p81
      %p83 = scmp.ne.s32.totalorder %s69, %s70
      %p84 = scmp.eq.s32.totalorder %s20, 2
      %p85 = por %p83, %p84
      %p87 = scmp.ne.s32.totalorder %s70, %s86
      %p88 = scmp.eq.s32.totalorder %s20, 0
      %p89 = por %p87, %p88
      %s90 = ssub.s32 %s14, %s21
      %p91 = scmp.eq.s32.totalorder %s90, 0
      %s93 = sadd.s32 %s92, 1
      %s94 = scalar_select %p91, %s92, %s93
      %p97 = pneg %p91
      %p98 = scmp.eq.s32.totalorder %s14, 2
      %p99 = por %p97, %p98
      %p100 = scmp.ne.s32.totalorder %s92, %s95
      %p101 = scmp.eq.s32.totalorder %s14, 0
      %p102 = por %p100, %p101
      %p103 = scmp.ne.s32.totalorder %s92, %s95
      %p104 = scmp.eq.s32.totalorder %s19, 2
      %p105 = por %p103, %p104
      %p106 = scmp.ne.s32.totalorder %s95, %s96
      %p107 = scmp.eq.s32.totalorder %s19, 0
      %p108 = por %p106, %p107
      %p109 = scmp.ne.s32.totalorder %s95, %s96
      %p110 = scmp.eq.s32.totalorder %s20, 2
      %p111 = por %p109, %p110
      %p113 = scmp.ne.s32.totalorder %s96, %s112
      %p114 = scmp.eq.s32.totalorder %s20, 0
      %p115 = por %p113, %p114
      %s116 = ssub.s32 %s14, %s21
      %p117 = scmp.eq.s32.totalorder %s116, 0
      %s119 = sadd.s32 %s118, 1
      %s120 = scalar_select %p117, %s118, %s119
      %p123 = pneg %p117
      %p124 = scmp.eq.s32.totalorder %s14, 2
      %p125 = por %p123, %p124
      %p126 = scmp.ne.s32.totalorder %s118, %s121
      %p127 = scmp.eq.s32.totalorder %s14, 0
      %p128 = por %p126, %p127
      %p129 = scmp.ne.s32.totalorder %s118, %s121
      %p130 = scmp.eq.s32.totalorder %s19, 2
      %p131 = por %p129, %p130
      %p132 = scmp.ne.s32.totalorder %s121, %s122
      %p133 = scmp.eq.s32.totalorder %s19, 0
      %p134 = por %p132, %p133
      %p135 = scmp.ne.s32.totalorder %s121, %s122
      %p136 = scmp.eq.s32.totalorder %s20, 2
      %p137 = por %p135, %p136
      %p139 = scmp.ne.s32.totalorder %s122, %s138
      %p140 = scmp.eq.s32.totalorder %s20, 0
      %p141 = por %p139, %p140
      %s143 = sadd.s32 %s142, 1
      %p146 = scmp.eq.s32.totalorder %s14, 2
      %p147 = scmp.ne.s32.totalorder %s142, %s144
      %p148 = scmp.eq.s32.totalorder %s14, 0
      %p149 = por %p147, %p148
      %p150 = scmp.ne.s32.totalorder %s142, %s144
      %p151 = scmp.eq.s32.totalorder %s19, 2
      %p152 = por %p150, %p151
      %p153 = scmp.ne.s32.totalorder %s144, %s145
      %p154 = scmp.eq.s32.totalorder %s19, 0
      %p155 = por %p153, %p154
      %p156 = scmp.ne.s32.totalorder %s144, %s145
      %p157 = scmp.eq.s32.totalorder %s20, 2
      %p158 = por %p156, %p157
      %p160 = scmp.ne.s32.totalorder %s145, %s159
      %p161 = scmp.eq.s32.totalorder %s20, 0
      %p162 = por %p160, %p161
      %s164 = sadd.s32 %s163, 1
      %p167 = scmp.eq.s32.totalorder %s14, 2
      %p168 = scmp.ne.s32.totalorder %s163, %s165
      %p169 = scmp.eq.s32.totalorder %s14, 0
      %p170 = por %p168, %p169
      %p171 = scmp.ne.s32.totalorder %s163, %s165
      %p172 = scmp.eq.s32.totalorder %s19, 2
      %p173 = por %p171, %p172
      %p174 = scmp.ne.s32.totalorder %s165, %s166
      %p175 = scmp.eq.s32.totalorder %s19, 0
      %p176 = por %p174, %p175
      %p177 = scmp.ne.s32.totalorder %s165, %s166
      %p178 = scmp.eq.s32.totalorder %s20, 2
      %p179 = por %p177, %p178
      %p181 = scmp.ne.s32.totalorder %s166, %s180
      %p182 = scmp.eq.s32.totalorder %s20, 0
      %p183 = por %p181, %p182
      %s185 = sadd.s32 %s184, 1
      %p188 = scmp.eq.s32.totalorder %s14, 2
      %p189 = scmp.ne.s32.totalorder %s184, %s186
      %p190 = scmp.eq.s32.totalorder %s14, 0
      %p191 = por %p189, %p190
      %p192 = scmp.ne.s32.totalorder %s184, %s186
      %p193 = scmp.eq.s32.totalorder %s19, 2
      %p194 = por %p192, %p193
      %p195 = scmp.ne.s32.totalorder %s186, %s187
      %p196 = scmp.eq.s32.totalorder %s19, 0
      %p197 = por %p195, %p196
      %p198 = scmp.ne.s32.totalorder %s186, %s187
      %p199 = scmp.eq.s32.totalorder %s20, 2
      %p200 = por %p198, %p199
      %p202 = scmp.ne.s32.totalorder %s187, %s201
      %p203 = scmp.eq.s32.totalorder %s20, 0
      %p204 = por %p202, %p203
      %p205 = scmp.le.s32.totalorder 1, %s14
      %p206 = scmp.lt.s32.totalorder %s14, 4
      %p207 = pnand %p205, %p206
      %p208 = pneg %p207
      // Predicated region
      $region9: #{language_model_forward.1} parent=5 // pred_check
        _
      $region10: #{language_model_forward.1} parent=5 // pred_check_branch
        %210 = sbr.rel (%p207) target = $region12
      $region11: #{language_model_forward.1} parent=5 // pred_region
        %s211 = ssub.s32 %s14, 1
        // Predicated region
        $region13: #{language_model_forward.1} parent=11 // pred_check
          %p212 = pneg %p35
        $region14: #{language_model_forward.1} parent=11 // pred_check_branch
          %214 = sbr.rel (%p212) target = $region16
        $region15: #{language_model_forward.1} parent=11 // pred_region
          _
        $region16: #{language_model_forward.1} parent=11 // pred_fallthru
          _
        // Predicated region
        $region17: #{language_model_forward.1} parent=11 // pred_check
          %p215 = pneg %p56
        $region18: #{language_model_forward.1} parent=11 // pred_check_branch
          %217 = sbr.rel (%p215) target = $region20
        $region19: #{language_model_forward.1} parent=11 // pred_region
          _
        $region20: #{language_model_forward.1} parent=11 // pred_fallthru
          _
        // Predicated region
        $region21: #{language_model_forward.1} parent=11 // pred_check
          %p218 = pneg %p155
        $region22: #{language_model_forward.1} parent=11 // pred_check_branch
          %220 = sbr.rel (%p218) target = $region24
        $region23: #{language_model_forward.1} parent=11 // pred_region
          _
        $region24: #{language_model_forward.1} parent=11 // pred_fallthru
          _
        // Predicated region
        $region25: #{language_model_forward.1} parent=11 // pred_check
          %p221 = pneg %p176
        $region26: #{language_model_forward.1} parent=11 // pred_check_branch
          %223 = sbr.rel (%p221) target = $region28
        $region27: #{language_model_forward.1} parent=11 // pred_region
          _
        $region28: #{language_model_forward.1} parent=11 // pred_fallthru
          _
      $region12: #{language_model_forward.1} parent=5 // pred_fallthru
        _
      %p224 = scmp.lt.s32.totalorder %s14, 3
      // Predicated region
      $region29: #{language_model_forward.1} parent=5 // pred_check
        %p225 = pneg %p224
      $region30: #{language_model_forward.1} parent=5 // pred_check_branch
        %227 = sbr.rel (%p225) target = $region32
      $region31: #{language_model_forward.1} parent=5 // pred_region
        // Predicated region
        $region33: #{language_model_forward.1} parent=31 // pred_check
          %p228 = pneg %p76
        $region34: #{language_model_forward.1} parent=31 // pred_check_branch
          %230 = sbr.rel (%p228) target = $region36
        $region35: #{language_model_forward.1} parent=31 // pred_region
          %p231 = scmp.lt.s32.totalorder %s14, 2
          %s232 = scalar_select %p231, %s14, 2
          %s233 = smul.addr %s232, 64
          %s234 = smul.addr %s233, 4
          %s235 = scalar_lea.vmem %s2, %s234
        $region36: #{language_model_forward.1} parent=31 // pred_fallthru
          _
        // Predicated region
        $region37: #{language_model_forward.1} parent=31 // pred_check
          %p236 = pneg %p102
        $region38: #{language_model_forward.1} parent=31 // pred_check_branch
          %238 = sbr.rel (%p236) target = $region40
        $region39: #{language_model_forward.1} parent=31 // pred_region
          %p239 = scmp.lt.s32.totalorder %s14, 2
          %s240 = scalar_select %p239, %s14, 2
          %s241 = smul.addr %s240, 64
          %s242 = smul.addr %s241, 4
          %s243 = scalar_lea.vmem %s3, %s242
        $region40: #{language_model_forward.1} parent=31 // pred_fallthru
          _
        // Predicated region
        $region41: #{language_model_forward.1} parent=31 // pred_check
          %p244 = pneg %p128
        $region42: #{language_model_forward.1} parent=31 // pred_check_branch
          %246 = sbr.rel (%p244) target = $region44
        $region43: #{language_model_forward.1} parent=31 // pred_region
          %p247 = scmp.lt.s32.totalorder %s14, 2
          %s248 = scalar_select %p247, %s14, 2
          %s249 = smul.addr %s248, 4
          %s250 = scalar_lea.vmem %s4, %s249
        $region44: #{language_model_forward.1} parent=31 // pred_fallthru
          _
      $region32: #{language_model_forward.1} parent=5 // pred_fallthru
        _
      %p251 = scmp.le.s32.totalorder 1, %s14
      %p252 = scmp.lt.s32.totalorder %s14, 4
      %p253 = pnand %p251, %p252
      %p254 = pneg %p253
      // Predicated region
      $region45: #{language_model_forward.1} parent=5 // pred_check
        _
      $region46: #{language_model_forward.1} parent=5 // pred_check_branch
        %256 = sbr.rel (%p253) target = $region48
      $region47: #{language_model_forward.1} parent=5 // pred_region
        %s257 = ssub.s32 %s14, 1
        %p258 = pneg %p35
        %p259 = pneg %p32
        %p260 = pneg %p56
        %p261 = pneg %p53
        %p262 = scmp.lt.s32.totalorder %s19, 2
        %s263 = scalar_select %p262, %s19, 2
        %s264 = smul.addr %s263, 64
        %s265 = smul.addr %s264, 4
        %s266 = scalar_lea.vmem %s2, %s265
        %p267 = pneg %p82
        %p268 = pneg %p79
        %p269 = scmp.lt.s32.totalorder %s19, 2
        %s270 = scalar_select %p269, %s19, 2
        %s271 = smul.addr %s270, 64
        %s272 = smul.addr %s271, 4
        %s273 = scalar_lea.vmem %s3, %s272
        %p274 = pneg %p108
        %p275 = pneg %p105
        %p276 = scmp.lt.s32.totalorder %s19, 2
        %s277 = scalar_select %p276, %s19, 2
        %s278 = smul.addr %s277, 4
        %s279 = scalar_lea.vmem %s4, %s278
        %p280 = pneg %p134
        %p281 = pneg %p131
        %p282 = pneg %p155
        %p283 = pneg %p152
        %p284 = pneg %p176
        %p285 = pneg %p173
        %p286 = pneg %p197
        %p287 = pneg %p194
        %p288 = scmp.lt.s32.totalorder %s19, 2
        %s289 = scalar_select %p288, %s19, 2
        %s290 = smul.addr %s289, 64
        %s291 = smul.addr %s290, 4
        %s292 = scalar_lea.vmem %s2, %s291
        %p293 = scmp.lt.s32.totalorder %s19, 2
        %s294 = scalar_select %p293, %s19, 2
        %s295 = smul.addr %s294, 64
        %s296 = smul.addr %s295, 4
        %s297 = scalar_lea.vmem %s3, %s296
        %p298 = scmp.lt.s32.totalorder %s19, 2
        %s299 = scalar_select %p298, %s19, 2
        %s300 = smul.addr %s299, 4
        %s301 = scalar_lea.vmem %s4, %s300
        %v303 = vld [vmem:[%s301] sm:$0xf]
        %p304 = scmp.eq.s32.totalorder %s19, 0
        // Predicated region
        $region49: #{language_model_forward.1} parent=47 // pred_check
          %p305 = pneg %p304
        $region50: #{language_model_forward.1} parent=47 // pred_check_branch
          %307 = sbr.rel (%p305) target = $region52
        $region51: #{language_model_forward.1} parent=47 // pred_region
          %v308 = vld [vmem:[%s0] sm:$0xf]
          %v309 = vld [vmem:[%s0 + $0x4] sm:$0xf]
          %v310 = vld [vmem:[%s0 + $0x8] sm:$0xf]
          %v311 = vld [vmem:[%s0 + $0xc] sm:$0xf]
          %v312 = vld [vmem:[%s0 + $0x10] sm:$0xf]
          %v313 = vld [vmem:[%s0 + $0x14] sm:$0xf]
          %v314 = vld [vmem:[%s0 + $0x18] sm:$0xf]
          %v315 = vld [vmem:[%s0 + $0x1c] sm:$0xf]
          %v316 = vld [vmem:[%s1] sm:$0xff]
          %v317 = vld [vmem:[%s1 + $0x8] sm:$0xff]
          %v318 = vld [vmem:[%s1 + $0x10] sm:$0xff]
          %v319 = vld [vmem:[%s1 + $0x18] sm:$0xff]
          %v320 = vld [vmem:[%s1 + $0x20] sm:$0xff]
          %v321 = vld [vmem:[%s1 + $0x28] sm:$0xff]
          %v322 = vld [vmem:[%s1 + $0x30] sm:$0xff]
          %v323 = vld [vmem:[%s1 + $0x38] sm:$0xff]
          %v324 = vld [vmem:[%s1 + $0x40] sm:$0xff]
          %v325 = vld [vmem:[%s1 + $0x48] sm:$0xff]
          %v326 = vld [vmem:[%s1 + $0x50] sm:$0xff]
          %v327 = vld [vmem:[%s1 + $0x58] sm:$0xff]
          %v328 = vld [vmem:[%s1 + $0x60] sm:$0xff]
          %v329 = vld [vmem:[%s1 + $0x68] sm:$0xff]
          %v330 = vld [vmem:[%s1 + $0x70] sm:$0xff]
          %v331 = vld [vmem:[%s1 + $0x78] sm:$0xff]
          %v332 = vld [vmem:[%s1 + $0x80] sm:$0xff]
          %v333 = vld [vmem:[%s1 + $0x88] sm:$0xff]
          %v334 = vld [vmem:[%s1 + $0x90] sm:$0xff]
          %v335 = vld [vmem:[%s1 + $0x98] sm:$0xff]
          %v336 = vld [vmem:[%s1 + $0xa0] sm:$0xff]
          %v337 = vld [vmem:[%s1 + $0xa8] sm:$0xff]
          %v338 = vld [vmem:[%s1 + $0xb0] sm:$0xff]
          %v339 = vld [vmem:[%s1 + $0xb8] sm:$0xff]
          %v340 = vld [vmem:[%s1 + $0xc0] sm:$0xff]
          %v341 = vld [vmem:[%s1 + $0xc8] sm:$0xff]
          %v342 = vld [vmem:[%s1 + $0xd0] sm:$0xff]
          %v343 = vld [vmem:[%s1 + $0xd8] sm:$0xff]
          %v344 = vld [vmem:[%s1 + $0xe0] sm:$0xff]
          %v345 = vld [vmem:[%s1 + $0xe8] sm:$0xff]
          %v346 = vld [vmem:[%s1 + $0xf0] sm:$0xff]
          %v347 = vld [vmem:[%s1 + $0xf8] sm:$0xff]
          %v349 = vperm.slane %v303, 0
          %v350 = vperm.slane %v303, 1
          %v351 = vperm.slane %v303, 2
          %v352 = vperm.slane %v303, 3
          %v365 = vunpack.c.l.b16 %v308
          %v366 = vunpack.c.l.b16 %v309
          %v367 = vunpack.c.l.b16 %v310
          %v368 = vunpack.c.l.b16 %v311
          %v369 = vunpack.c.l.b16 %v312
          %v370 = vunpack.c.l.b16 %v313
          %v371 = vunpack.c.l.b16 %v314
          %v372 = vunpack.c.l.b16 %v315
          %v373 = vpack.c.b16 %v366, %v365
          %v374 = vpack.c.b16 %v368, %v367
          %v375 = vpack.c.b16 %v370, %v369
          %v376 = vpack.c.b16 %v372, %v371
          %v413 = vunpack.c.l.b16 %v316
          %v414 = vunpack.c.h.b16 %v316
          %v415 = vunpack.c.l.b16 %v317
          %v416 = vunpack.c.h.b16 %v317
          %v417 = vunpack.c.l.b16 %v318
          %v418 = vunpack.c.h.b16 %v318
          %v419 = vunpack.c.l.b16 %v319
          %v420 = vunpack.c.h.b16 %v319
          %v421 = vunpack.c.l.b16 %v320
          %v422 = vunpack.c.h.b16 %v320
          %v423 = vunpack.c.l.b16 %v321
          %v424 = vunpack.c.h.b16 %v321
          %v425 = vunpack.c.l.b16 %v322
          %v426 = vunpack.c.h.b16 %v322
          %v427 = vunpack.c.l.b16 %v323
          %v428 = vunpack.c.h.b16 %v323
          %v429 = vunpack.c.l.b16 %v324
          %v430 = vunpack.c.h.b16 %v324
          %v431 = vunpack.c.l.b16 %v325
          %v432 = vunpack.c.h.b16 %v325
          %v433 = vunpack.c.l.b16 %v326
          %v434 = vunpack.c.h.b16 %v326
          %v435 = vunpack.c.l.b16 %v327
          %v436 = vunpack.c.h.b16 %v327
          %v437 = vunpack.c.l.b16 %v328
          %v438 = vunpack.c.h.b16 %v328
          %v439 = vunpack.c.l.b16 %v329
          %v440 = vunpack.c.h.b16 %v329
          %v441 = vunpack.c.l.b16 %v330
          %v442 = vunpack.c.h.b16 %v330
          %v443 = vunpack.c.l.b16 %v331
          %v444 = vunpack.c.h.b16 %v331
          %v445 = vunpack.c.l.b16 %v332
          %v446 = vunpack.c.h.b16 %v332
          %v447 = vunpack.c.l.b16 %v333
          %v448 = vunpack.c.h.b16 %v333
          %v449 = vunpack.c.l.b16 %v334
          %v450 = vunpack.c.h.b16 %v334
          %v451 = vunpack.c.l.b16 %v335
          %v452 = vunpack.c.h.b16 %v335
          %v453 = vunpack.c.l.b16 %v336
          %v454 = vunpack.c.h.b16 %v336
          %v455 = vunpack.c.l.b16 %v337
          %v456 = vunpack.c.h.b16 %v337
          %v457 = vunpack.c.l.b16 %v338
          %v458 = vunpack.c.h.b16 %v338
          %v459 = vunpack.c.l.b16 %v339
          %v460 = vunpack.c.h.b16 %v339
          %v461 = vunpack.c.l.b16 %v340
          %v462 = vunpack.c.h.b16 %v340
          %v463 = vunpack.c.l.b16 %v341
          %v464 = vunpack.c.h.b16 %v341
          %v465 = vunpack.c.l.b16 %v342
          %v466 = vunpack.c.h.b16 %v342
          %v467 = vunpack.c.l.b16 %v343
          %v468 = vunpack.c.h.b16 %v343
          %v469 = vunpack.c.l.b16 %v344
          %v470 = vunpack.c.h.b16 %v344
          %v471 = vunpack.c.l.b16 %v345
          %v472 = vunpack.c.h.b16 %v345
          %v473 = vunpack.c.l.b16 %v346
          %v474 = vunpack.c.h.b16 %v346
          %v475 = vunpack.c.l.b16 %v347
          %v476 = vunpack.c.h.b16 %v347
          %v477 = vpack.c.b16 %v417, %v413
          %v478 = vpack.c.b16 %v418, %v414
          %v479 = vpack.c.b16 %v419, %v415
          %v480 = vpack.c.b16 %v420, %v416
          %v481 = vpack.c.b16 %v425, %v421
          %v482 = vpack.c.b16 %v426, %v422
          %v483 = vpack.c.b16 %v427, %v423
          %v484 = vpack.c.b16 %v428, %v424
          %v485 = vpack.c.b16 %v433, %v429
          %v486 = vpack.c.b16 %v434, %v430
          %v487 = vpack.c.b16 %v435, %v431
          %v488 = vpack.c.b16 %v436, %v432
          %v489 = vpack.c.b16 %v441, %v437
          %v490 = vpack.c.b16 %v442, %v438
          %v491 = vpack.c.b16 %v443, %v439
          %v492 = vpack.c.b16 %v444, %v440
          %v493 = vpack.c.b16 %v449, %v445
          %v494 = vpack.c.b16 %v450, %v446
          %v495 = vpack.c.b16 %v451, %v447
          %v496 = vpack.c.b16 %v452, %v448
          %v497 = vpack.c.b16 %v457, %v453
          %v498 = vpack.c.b16 %v458, %v454
          %v499 = vpack.c.b16 %v459, %v455
          %v500 = vpack.c.b16 %v460, %v456
          %v501 = vpack.c.b16 %v465, %v461
          %v502 = vpack.c.b16 %v466, %v462
          %v503 = vpack.c.b16 %v467, %v463
          %v504 = vpack.c.b16 %v468, %v464
          %v505 = vpack.c.b16 %v473, %v469
          %v506 = vpack.c.b16 %v474, %v470
          %v507 = vpack.c.b16 %v475, %v471
          %v508 = vpack.c.b16 %v476, %v472
          %541 = vmatpush.bf16.msra.mxu0 %v505
          %542 = vmatpush.bf16.msra.mxu0 %v501
          %543 = vmatpush.bf16.msra.mxu0 %v497
          %544 = vmatpush.bf16.msra.mxu0 %v493
          %545 = vmatpush.bf16.msra.mxu0 %v489
          %546 = vmatpush.bf16.msra.mxu0 %v485
          %547 = vmatpush.bf16.msra.mxu0 %v481
          %548 = vmatpush.bf16.msra.mxu0 %v477
          %549 = vmatmul.bf16.gmra.mxu0 %v373
          %v550 = vpop.f32.mrf.mxu0
          %v551 = vadd.f32 %v349, %v550
          %v552 = vpop.f32.mrf.mxu0
          %v553 = vadd.f32 %v349, %v552
          %554 = vmatmul.bf16.gmra.mxu0 %v374
          %v555 = vpop.f32.mrf.mxu0
          %v556 = vadd.f32 %v349, %v555
          %v557 = vpop.f32.mrf.mxu0
          %v558 = vadd.f32 %v349, %v557
          %559 = vmatmul.bf16.gmra.mxu0 %v375
          %v560 = vpop.f32.mrf.mxu0
          %v561 = vadd.f32 %v349, %v560
          %v562 = vpop.f32.mrf.mxu0
          %v563 = vadd.f32 %v349, %v562
          %564 = vmatmul.bf16.gmra.mxu0 %v376
          %v565 = vpop.f32.mrf.mxu0
          %v566 = vadd.f32 %v349, %v565
          %v567 = vpop.f32.mrf.mxu0
          %v568 = vadd.f32 %v349, %v567
          %569 = vdwg.mxu0
          %570 = vmatpush.bf16.msra.mxu0 %v506
          %571 = vmatpush.bf16.msra.mxu0 %v502
          %572 = vmatpush.bf16.msra.mxu0 %v498
          %573 = vmatpush.bf16.msra.mxu0 %v494
          %574 = vmatpush.bf16.msra.mxu0 %v490
          %575 = vmatpush.bf16.msra.mxu0 %v486
          %576 = vmatpush.bf16.msra.mxu0 %v482
          %577 = vmatpush.bf16.msra.mxu0 %v478
          %578 = vmatmul.bf16.gmra.mxu0 %v373
          %v579 = vpop.f32.mrf.mxu0
          %v580 = vadd.f32 %v350, %v579
          %v581 = vpop.f32.mrf.mxu0
          %v582 = vadd.f32 %v350, %v581
          %583 = vmatmul.bf16.gmra.mxu0 %v374
          %v584 = vpop.f32.mrf.mxu0
          %v585 = vadd.f32 %v350, %v584
          %v586 = vpop.f32.mrf.mxu0
          %v587 = vadd.f32 %v350, %v586
          %588 = vmatmul.bf16.gmra.mxu0 %v375
          %v589 = vpop.f32.mrf.mxu0
          %v590 = vadd.f32 %v350, %v589
          %v591 = vpop.f32.mrf.mxu0
          %v592 = vadd.f32 %v350, %v591
          %593 = vmatmul.bf16.gmra.mxu0 %v376
          %v594 = vpop.f32.mrf.mxu0
          %v595 = vadd.f32 %v350, %v594
          %v596 = vpop.f32.mrf.mxu0
          %v597 = vadd.f32 %v350, %v596
          %598 = vdwg.mxu0
          %599 = vmatpush.bf16.msra.mxu0 %v507
          %600 = vmatpush.bf16.msra.mxu0 %v503
          %601 = vmatpush.bf16.msra.mxu0 %v499
          %602 = vmatpush.bf16.msra.mxu0 %v495
          %603 = vmatpush.bf16.msra.mxu0 %v491
          %604 = vmatpush.bf16.msra.mxu0 %v487
          %605 = vmatpush.bf16.msra.mxu0 %v483
          %606 = vmatpush.bf16.msra.mxu0 %v479
          %607 = vmatmul.bf16.gmra.mxu0 %v373
          %v608 = vpop.f32.mrf.mxu0
          %v609 = vadd.f32 %v351, %v608
          %v610 = vpop.f32.mrf.mxu0
          %v611 = vadd.f32 %v351, %v610
          %612 = vmatmul.bf16.gmra.mxu0 %v374
          %v613 = vpop.f32.mrf.mxu0
          %v614 = vadd.f32 %v351, %v613
          %v615 = vpop.f32.mrf.mxu0
          %v616 = vadd.f32 %v351, %v615
          %617 = vmatmul.bf16.gmra.mxu0 %v375
          %v618 = vpop.f32.mrf.mxu0
          %v619 = vadd.f32 %v351, %v618
          %v620 = vpop.f32.mrf.mxu0
          %v621 = vadd.f32 %v351, %v620
          %622 = vmatmul.bf16.gmra.mxu0 %v376
          %v623 = vpop.f32.mrf.mxu0
          %v624 = vadd.f32 %v351, %v623
          %v625 = vpop.f32.mrf.mxu0
          %v626 = vadd.f32 %v351, %v625
          %627 = vdwg.mxu0
          %628 = vmatpush.bf16.msra.mxu0 %v508
          %629 = vmatpush.bf16.msra.mxu0 %v504
          %630 = vmatpush.bf16.msra.mxu0 %v500
          %631 = vmatpush.bf16.msra.mxu0 %v496
          %632 = vmatpush.bf16.msra.mxu0 %v492
          %633 = vmatpush.bf16.msra.mxu0 %v488
          %634 = vmatpush.bf16.msra.mxu0 %v484
          %635 = vmatpush.bf16.msra.mxu0 %v480
          %636 = vmatmul.bf16.gmra.mxu0 %v373
          %v637 = vpop.f32.mrf.mxu0
          %v638 = vadd.f32 %v352, %v637
          %v639 = vpop.f32.mrf.mxu0
          %v640 = vadd.f32 %v352, %v639
          %641 = vmatmul.bf16.gmra.mxu0 %v374
          %v642 = vpop.f32.mrf.mxu0
          %v643 = vadd.f32 %v352, %v642
          %v644 = vpop.f32.mrf.mxu0
          %v645 = vadd.f32 %v352, %v644
          %646 = vmatmul.bf16.gmra.mxu0 %v375
          %v647 = vpop.f32.mrf.mxu0
          %v648 = vadd.f32 %v352, %v647
          %v649 = vpop.f32.mrf.mxu0
          %v650 = vadd.f32 %v352, %v649
          %651 = vmatmul.bf16.gmra.mxu0 %v376
          %v652 = vpop.f32.mrf.mxu0
          %v653 = vadd.f32 %v352, %v652
          %v654 = vpop.f32.mrf.mxu0
          %v655 = vadd.f32 %v352, %v654
          %656 = vdwg.mxu0
          %657 = vst [vmem:[#allocation2] sm:$0xff] %v551
          %658 = vst [vmem:[#allocation2 + $0x8] sm:$0xff] %v580
          %659 = vst [vmem:[#allocation2 + $0x10] sm:$0xff] %v609
          %660 = vst [vmem:[#allocation2 + $0x18] sm:$0xff] %v638
          %661 = vst [vmem:[#allocation2 + $0x20] sm:$0xff] %v553
          %662 = vst [vmem:[#allocation2 + $0x28] sm:$0xff] %v582
          %663 = vst [vmem:[#allocation2 + $0x30] sm:$0xff] %v611
          %664 = vst [vmem:[#allocation2 + $0x38] sm:$0xff] %v640
          %665 = vst [vmem:[#allocation2 + $0x40] sm:$0xff] %v556
          %666 = vst [vmem:[#allocation2 + $0x48] sm:$0xff] %v585
          %667 = vst [vmem:[#allocation2 + $0x50] sm:$0xff] %v614
          %668 = vst [vmem:[#allocation2 + $0x58] sm:$0xff] %v643
          %669 = vst [vmem:[#allocation2 + $0x60] sm:$0xff] %v558
          %670 = vst [vmem:[#allocation2 + $0x68] sm:$0xff] %v587
          %671 = vst [vmem:[#allocation2 + $0x70] sm:$0xff] %v616
          %672 = vst [vmem:[#allocation2 + $0x78] sm:$0xff] %v645
          %673 = vst [vmem:[#allocation2 + $0x80] sm:$0xff] %v561
          %674 = vst [vmem:[#allocation2 + $0x88] sm:$0xff] %v590
          %675 = vst [vmem:[#allocation2 + $0x90] sm:$0xff] %v619
          %676 = vst [vmem:[#allocation2 + $0x98] sm:$0xff] %v648
          %677 = vst [vmem:[#allocation2 + $0xa0] sm:$0xff] %v563
          %678 = vst [vmem:[#allocation2 + $0xa8] sm:$0xff] %v592
          %679 = vst [vmem:[#allocation2 + $0xb0] sm:$0xff] %v621
          %680 = vst [vmem:[#allocation2 + $0xb8] sm:$0xff] %v650
          %681 = vst [vmem:[#allocation2 + $0xc0] sm:$0xff] %v566
          %682 = vst [vmem:[#allocation2 + $0xc8] sm:$0xff] %v595
          %683 = vst [vmem:[#allocation2 + $0xd0] sm:$0xff] %v624
          %684 = vst [vmem:[#allocation2 + $0xd8] sm:$0xff] %v653
          %685 = vst [vmem:[#allocation2 + $0xe0] sm:$0xff] %v568
          %686 = vst [vmem:[#allocation2 + $0xe8] sm:$0xff] %v597
          %687 = vst [vmem:[#allocation2 + $0xf0] sm:$0xff] %v626
          %688 = vst [vmem:[#allocation2 + $0xf8] sm:$0xff] %v655
        $region52: #{language_model_forward.1} parent=47 // pred_fallthru
          _
        %p689 = scmp.gt.s32.totalorder %s19, 0
        // Predicated region
        $region53: #{language_model_forward.1} parent=47 // pred_check
          %p690 = pneg %p689
        $region54: #{language_model_forward.1} parent=47 // pred_check_branch
          %692 = sbr.rel (%p690) target = $region56
        $region55: #{language_model_forward.1} parent=47 // pred_region
          %v693 = vld [vmem:[#allocation3] sm:$0xf]
          %v694 = vld [vmem:[#allocation3 + $0x4] sm:$0xf]
          %v695 = vld [vmem:[#allocation3 + $0x8] sm:$0xf]
          %v696 = vld [vmem:[#allocation3 + $0xc] sm:$0xf]
          %v697 = vld [vmem:[#allocation3 + $0x10] sm:$0xf]
          %v698 = vld [vmem:[#allocation3 + $0x14] sm:$0xf]
          %v699 = vld [vmem:[#allocation3 + $0x18] sm:$0xf]
          %v700 = vld [vmem:[#allocation3 + $0x1c] sm:$0xf]
          %v701 = vld [vmem:[%s292] sm:$0xff]
          %v702 = vld [vmem:[%s292 + $0x8] sm:$0xff]
          %v703 = vld [vmem:[%s292 + $0x10] sm:$0xff]
          %v704 = vld [vmem:[%s292 + $0x18] sm:$0xff]
          %v705 = vld [vmem:[%s292 + $0x20] sm:$0xff]
          %v706 = vld [vmem:[%s292 + $0x28] sm:$0xff]
          %v707 = vld [vmem:[%s292 + $0x30] sm:$0xff]
          %v708 = vld [vmem:[%s292 + $0x38] sm:$0xff]
          %v709 = vld [vmem:[%s292 + $0x40] sm:$0xff]
          %v710 = vld [vmem:[%s292 + $0x48] sm:$0xff]
          %v711 = vld [vmem:[%s292 + $0x50] sm:$0xff]
          %v712 = vld [vmem:[%s292 + $0x58] sm:$0xff]
          %v713 = vld [vmem:[%s292 + $0x60] sm:$0xff]
          %v714 = vld [vmem:[%s292 + $0x68] sm:$0xff]
          %v715 = vld [vmem:[%s292 + $0x70] sm:$0xff]
          %v716 = vld [vmem:[%s292 + $0x78] sm:$0xff]
          %v717 = vld [vmem:[%s292 + $0x80] sm:$0xff]
          %v718 = vld [vmem:[%s292 + $0x88] sm:$0xff]
          %v719 = vld [vmem:[%s292 + $0x90] sm:$0xff]
          %v720 = vld [vmem:[%s292 + $0x98] sm:$0xff]
          %v721 = vld [vmem:[%s292 + $0xa0] sm:$0xff]
          %v722 = vld [vmem:[%s292 + $0xa8] sm:$0xff]
          %v723 = vld [vmem:[%s292 + $0xb0] sm:$0xff]
          %v724 = vld [vmem:[%s292 + $0xb8] sm:$0xff]
          %v725 = vld [vmem:[%s292 + $0xc0] sm:$0xff]
          %v726 = vld [vmem:[%s292 + $0xc8] sm:$0xff]
          %v727 = vld [vmem:[%s292 + $0xd0] sm:$0xff]
          %v728 = vld [vmem:[%s292 + $0xd8] sm:$0xff]
          %v729 = vld [vmem:[%s292 + $0xe0] sm:$0xff]
          %v730 = vld [vmem:[%s292 + $0xe8] sm:$0xff]
          %v731 = vld [vmem:[%s292 + $0xf0] sm:$0xff]
          %v732 = vld [vmem:[%s292 + $0xf8] sm:$0xff]
          %v734 = vperm.slane %v303, 0
          %v735 = vperm.slane %v303, 1
          %v736 = vperm.slane %v303, 2
          %v737 = vperm.slane %v303, 3
          %v750 = vunpack.c.l.b16 %v693
          %v751 = vunpack.c.l.b16 %v694
          %v752 = vunpack.c.l.b16 %v695
          %v753 = vunpack.c.l.b16 %v696
          %v754 = vunpack.c.l.b16 %v697
          %v755 = vunpack.c.l.b16 %v698
          %v756 = vunpack.c.l.b16 %v699
          %v757 = vunpack.c.l.b16 %v700
          %v758 = vpack.c.b16 %v751, %v750
          %v759 = vpack.c.b16 %v753, %v752
          %v760 = vpack.c.b16 %v755, %v754
          %v761 = vpack.c.b16 %v757, %v756
          %v798 = vunpack.c.l.b16 %v701
          %v799 = vunpack.c.h.b16 %v701
          %v800 = vunpack.c.l.b16 %v702
          %v801 = vunpack.c.h.b16 %v702
          %v802 = vunpack.c.l.b16 %v703
          %v803 = vunpack.c.h.b16 %v703
          %v804 = vunpack.c.l.b16 %v704
          %v805 = vunpack.c.h.b16 %v704
          %v806 = vunpack.c.l.b16 %v705
          %v807 = vunpack.c.h.b16 %v705
          %v808 = vunpack.c.l.b16 %v706
          %v809 = vunpack.c.h.b16 %v706
          %v810 = vunpack.c.l.b16 %v707
          %v811 = vunpack.c.h.b16 %v707
          %v812 = vunpack.c.l.b16 %v708
          %v813 = vunpack.c.h.b16 %v708
          %v814 = vunpack.c.l.b16 %v709
          %v815 = vunpack.c.h.b16 %v709
          %v816 = vunpack.c.l.b16 %v710
          %v817 = vunpack.c.h.b16 %v710
          %v818 = vunpack.c.l.b16 %v711
          %v819 = vunpack.c.h.b16 %v711
          %v820 = vunpack.c.l.b16 %v712
          %v821 = vunpack.c.h.b16 %v712
          %v822 = vunpack.c.l.b16 %v713
          %v823 = vunpack.c.h.b16 %v713
          %v824 = vunpack.c.l.b16 %v714
          %v825 = vunpack.c.h.b16 %v714
          %v826 = vunpack.c.l.b16 %v715
          %v827 = vunpack.c.h.b16 %v715
          %v828 = vunpack.c.l.b16 %v716
          %v829 = vunpack.c.h.b16 %v716
          %v830 = vunpack.c.l.b16 %v717
          %v831 = vunpack.c.h.b16 %v717
          %v832 = vunpack.c.l.b16 %v718
          %v833 = vunpack.c.h.b16 %v718
          %v834 = vunpack.c.l.b16 %v719
          %v835 = vunpack.c.h.b16 %v719
          %v836 = vunpack.c.l.b16 %v720
          %v837 = vunpack.c.h.b16 %v720
          %v838 = vunpack.c.l.b16 %v721
          %v839 = vunpack.c.h.b16 %v721
          %v840 = vunpack.c.l.b16 %v722
          %v841 = vunpack.c.h.b16 %v722
          %v842 = vunpack.c.l.b16 %v723
          %v843 = vunpack.c.h.b16 %v723
          %v844 = vunpack.c.l.b16 %v724
          %v845 = vunpack.c.h.b16 %v724
          %v846 = vunpack.c.l.b16 %v725
          %v847 = vunpack.c.h.b16 %v725
          %v848 = vunpack.c.l.b16 %v726
          %v849 = vunpack.c.h.b16 %v726
          %v850 = vunpack.c.l.b16 %v727
          %v851 = vunpack.c.h.b16 %v727
          %v852 = vunpack.c.l.b16 %v728
          %v853 = vunpack.c.h.b16 %v728
          %v854 = vunpack.c.l.b16 %v729
          %v855 = vunpack.c.h.b16 %v729
          %v856 = vunpack.c.l.b16 %v730
          %v857 = vunpack.c.h.b16 %v730
          %v858 = vunpack.c.l.b16 %v731
          %v859 = vunpack.c.h.b16 %v731
          %v860 = vunpack.c.l.b16 %v732
          %v861 = vunpack.c.h.b16 %v732
          %v862 = vpack.c.b16 %v802, %v798
          %v863 = vpack.c.b16 %v803, %v799
          %v864 = vpack.c.b16 %v804, %v800
          %v865 = vpack.c.b16 %v805, %v801
          %v866 = vpack.c.b16 %v810, %v806
          %v867 = vpack.c.b16 %v811, %v807
          %v868 = vpack.c.b16 %v812, %v808
          %v869 = vpack.c.b16 %v813, %v809
          %v870 = vpack.c.b16 %v818, %v814
          %v871 = vpack.c.b16 %v819, %v815
          %v872 = vpack.c.b16 %v820, %v816
          %v873 = vpack.c.b16 %v821, %v817
          %v874 = vpack.c.b16 %v826, %v822
          %v875 = vpack.c.b16 %v827, %v823
          %v876 = vpack.c.b16 %v828, %v824
          %v877 = vpack.c.b16 %v829, %v825
          %v878 = vpack.c.b16 %v834, %v830
          %v879 = vpack.c.b16 %v835, %v831
          %v880 = vpack.c.b16 %v836, %v832
          %v881 = vpack.c.b16 %v837, %v833
          %v882 = vpack.c.b16 %v842, %v838
          %v883 = vpack.c.b16 %v843, %v839
          %v884 = vpack.c.b16 %v844, %v840
          %v885 = vpack.c.b16 %v845, %v841
          %v886 = vpack.c.b16 %v850, %v846
          %v887 = vpack.c.b16 %v851, %v847
          %v888 = vpack.c.b16 %v852, %v848
          %v889 = vpack.c.b16 %v853, %v849
          %v890 = vpack.c.b16 %v858, %v854
          %v891 = vpack.c.b16 %v859, %v855
          %v892 = vpack.c.b16 %v860, %v856
          %v893 = vpack.c.b16 %v861, %v857
          %926 = vmatpush.bf16.msra.mxu0 %v890
          %927 = vmatpush.bf16.msra.mxu0 %v886
          %928 = vmatpush.bf16.msra.mxu0 %v882
          %929 = vmatpush.bf16.msra.mxu0 %v878
          %930 = vmatpush.bf16.msra.mxu0 %v874
          %931 = vmatpush.bf16.msra.mxu0 %v870
          %932 = vmatpush.bf16.msra.mxu0 %v866
          %933 = vmatpush.bf16.msra.mxu0 %v862
          %934 = vmatmul.bf16.gmra.mxu0 %v758
          %v935 = vpop.f32.mrf.mxu0
          %v936 = vadd.f32 %v734, %v935
          %v937 = vpop.f32.mrf.mxu0
          %v938 = vadd.f32 %v734, %v937
          %939 = vmatmul.bf16.gmra.mxu0 %v759
          %v940 = vpop.f32.mrf.mxu0
          %v941 = vadd.f32 %v734, %v940
          %v942 = vpop.f32.mrf.mxu0
          %v943 = vadd.f32 %v734, %v942
          %944 = vmatmul.bf16.gmra.mxu0 %v760
          %v945 = vpop.f32.mrf.mxu0
          %v946 = vadd.f32 %v734, %v945
          %v947 = vpop.f32.mrf.mxu0
          %v948 = vadd.f32 %v734, %v947
          %949 = vmatmul.bf16.gmra.mxu0 %v761
          %v950 = vpop.f32.mrf.mxu0
          %v951 = vadd.f32 %v734, %v950
          %v952 = vpop.f32.mrf.mxu0
          %v953 = vadd.f32 %v734, %v952
          %954 = vdwg.mxu0
          %955 = vmatpush.bf16.msra.mxu0 %v891
          %956 = vmatpush.bf16.msra.mxu0 %v887
          %957 = vmatpush.bf16.msra.mxu0 %v883
          %958 = vmatpush.bf16.msra.mxu0 %v879
          %959 = vmatpush.bf16.msra.mxu0 %v875
          %960 = vmatpush.bf16.msra.mxu0 %v871
          %961 = vmatpush.bf16.msra.mxu0 %v867
          %962 = vmatpush.bf16.msra.mxu0 %v863
          %963 = vmatmul.bf16.gmra.mxu0 %v758
          %v964 = vpop.f32.mrf.mxu0
          %v965 = vadd.f32 %v735, %v964
          %v966 = vpop.f32.mrf.mxu0
          %v967 = vadd.f32 %v735, %v966
          %968 = vmatmul.bf16.gmra.mxu0 %v759
          %v969 = vpop.f32.mrf.mxu0
          %v970 = vadd.f32 %v735, %v969
          %v971 = vpop.f32.mrf.mxu0
          %v972 = vadd.f32 %v735, %v971
          %973 = vmatmul.bf16.gmra.mxu0 %v760
          %v974 = vpop.f32.mrf.mxu0
          %v975 = vadd.f32 %v735, %v974
          %v976 = vpop.f32.mrf.mxu0
          %v977 = vadd.f32 %v735, %v976
          %978 = vmatmul.bf16.gmra.mxu0 %v761
          %v979 = vpop.f32.mrf.mxu0
          %v980 = vadd.f32 %v735, %v979
          %v981 = vpop.f32.mrf.mxu0
          %v982 = vadd.f32 %v735, %v981
          %983 = vdwg.mxu0
          %984 = vmatpush.bf16.msra.mxu0 %v892
          %985 = vmatpush.bf16.msra.mxu0 %v888
          %986 = vmatpush.bf16.msra.mxu0 %v884
          %987 = vmatpush.bf16.msra.mxu0 %v880
          %988 = vmatpush.bf16.msra.mxu0 %v876
          %989 = vmatpush.bf16.msra.mxu0 %v872
          %990 = vmatpush.bf16.msra.mxu0 %v868
          %991 = vmatpush.bf16.msra.mxu0 %v864
          %992 = vmatmul.bf16.gmra.mxu0 %v758
          %v993 = vpop.f32.mrf.mxu0
          %v994 = vadd.f32 %v736, %v993
          %v995 = vpop.f32.mrf.mxu0
          %v996 = vadd.f32 %v736, %v995
          %997 = vmatmul.bf16.gmra.mxu0 %v759
          %v998 = vpop.f32.mrf.mxu0
          %v999 = vadd.f32 %v736, %v998
          %v1000 = vpop.f32.mrf.mxu0
          %v1001 = vadd.f32 %v736, %v1000
          %1002 = vmatmul.bf16.gmra.mxu0 %v760
          %v1003 = vpop.f32.mrf.mxu0
          %v1004 = vadd.f32 %v736, %v1003
          %v1005 = vpop.f32.mrf.mxu0
          %v1006 = vadd.f32 %v736, %v1005
          %1007 = vmatmul.bf16.gmra.mxu0 %v761
          %v1008 = vpop.f32.mrf.mxu0
          %v1009 = vadd.f32 %v736, %v1008
          %v1010 = vpop.f32.mrf.mxu0
          %v1011 = vadd.f32 %v736, %v1010
          %1012 = vdwg.mxu0
          %1013 = vmatpush.bf16.msra.mxu0 %v893
          %1014 = vmatpush.bf16.msra.mxu0 %v889
          %1015 = vmatpush.bf16.msra.mxu0 %v885
          %1016 = vmatpush.bf16.msra.mxu0 %v881
          %1017 = vmatpush.bf16.msra.mxu0 %v877
          %1018 = vmatpush.bf16.msra.mxu0 %v873
          %1019 = vmatpush.bf16.msra.mxu0 %v869
          %1020 = vmatpush.bf16.msra.mxu0 %v865
          %1021 = vmatmul.bf16.gmra.mxu0 %v758
          %v1022 = vpop.f32.mrf.mxu0
          %v1023 = vadd.f32 %v737, %v1022
          %v1024 = vpop.f32.mrf.mxu0
          %v1025 = vadd.f32 %v737, %v1024
          %1026 = vmatmul.bf16.gmra.mxu0 %v759
          %v1027 = vpop.f32.mrf.mxu0
          %v1028 = vadd.f32 %v737, %v1027
          %v1029 = vpop.f32.mrf.mxu0
          %v1030 = vadd.f32 %v737, %v1029
          %1031 = vmatmul.bf16.gmra.mxu0 %v760
          %v1032 = vpop.f32.mrf.mxu0
          %v1033 = vadd.f32 %v737, %v1032
          %v1034 = vpop.f32.mrf.mxu0
          %v1035 = vadd.f32 %v737, %v1034
          %1036 = vmatmul.bf16.gmra.mxu0 %v761
          %v1037 = vpop.f32.mrf.mxu0
          %v1038 = vadd.f32 %v737, %v1037
          %v1039 = vpop.f32.mrf.mxu0
          %v1040 = vadd.f32 %v737, %v1039
          %1041 = vdwg.mxu0
          %1042 = vst [vmem:[#allocation2] sm:$0xff] %v936
          %1043 = vst [vmem:[#allocation2 + $0x8] sm:$0xff] %v965
          %1044 = vst [vmem:[#allocation2 + $0x10] sm:$0xff] %v994
          %1045 = vst [vmem:[#allocation2 + $0x18] sm:$0xff] %v1023
          %1046 = vst [vmem:[#allocation2 + $0x20] sm:$0xff] %v938
          %1047 = vst [vmem:[#allocation2 + $0x28] sm:$0xff] %v967
          %1048 = vst [vmem:[#allocation2 + $0x30] sm:$0xff] %v996
          %1049 = vst [vmem:[#allocation2 + $0x38] sm:$0xff] %v1025
          %1050 = vst [vmem:[#allocation2 + $0x40] sm:$0xff] %v941
          %1051 = vst [vmem:[#allocation2 + $0x48] sm:$0xff] %v970
          %1052 = vst [vmem:[#allocation2 + $0x50] sm:$0xff] %v999
          %1053 = vst [vmem:[#allocation2 + $0x58] sm:$0xff] %v1028
          %1054 = vst [vmem:[#allocation2 + $0x60] sm:$0xff] %v943
          %1055 = vst [vmem:[#allocation2 + $0x68] sm:$0xff] %v972
          %1056 = vst [vmem:[#allocation2 + $0x70] sm:$0xff] %v1001
          %1057 = vst [vmem:[#allocation2 + $0x78] sm:$0xff] %v1030
          %1058 = vst [vmem:[#allocation2 + $0x80] sm:$0xff] %v946
          %1059 = vst [vmem:[#allocation2 + $0x88] sm:$0xff] %v975
          %1060 = vst [vmem:[#allocation2 + $0x90] sm:$0xff] %v1004
          %1061 = vst [vmem:[#allocation2 + $0x98] sm:$0xff] %v1033
          %1062 = vst [vmem:[#allocation2 + $0xa0] sm:$0xff] %v948
          %1063 = vst [vmem:[#allocation2 + $0xa8] sm:$0xff] %v977
          %1064 = vst [vmem:[#allocation2 + $0xb0] sm:$0xff] %v1006
          %1065 = vst [vmem:[#allocation2 + $0xb8] sm:$0xff] %v1035
          %1066 = vst [vmem:[#allocation2 + $0xc0] sm:$0xff] %v951
          %1067 = vst [vmem:[#allocation2 + $0xc8] sm:$0xff] %v980
          %1068 = vst [vmem:[#allocation2 + $0xd0] sm:$0xff] %v1009
          %1069 = vst [vmem:[#allocation2 + $0xd8] sm:$0xff] %v1038
          %1070 = vst [vmem:[#allocation2 + $0xe0] sm:$0xff] %v953
          %1071 = vst [vmem:[#allocation2 + $0xe8] sm:$0xff] %v982
          %1072 = vst [vmem:[#allocation2 + $0xf0] sm:$0xff] %v1011
          %1073 = vst [vmem:[#allocation2 + $0xf8] sm:$0xff] %v1040
        $region56: #{language_model_forward.1} parent=47 // pred_fallthru
          _
        %v1074 = vld [vmem:[%s297] sm:$0xff]
        %v1075 = vld [vmem:[%s297 + $0x8] sm:$0xff]
        %v1076 = vld [vmem:[%s297 + $0x10] sm:$0xff]
        %v1077 = vld [vmem:[%s297 + $0x18] sm:$0xff]
        %v1078 = vld [vmem:[%s297 + $0x20] sm:$0xff]
        %v1079 = vld [vmem:[%s297 + $0x28] sm:$0xff]
        %v1080 = vld [vmem:[%s297 + $0x30] sm:$0xff]
        %v1081 = vld [vmem:[%s297 + $0x38] sm:$0xff]
        %v1082 = vld [vmem:[%s297 + $0x40] sm:$0xff]
        %v1083 = vld [vmem:[%s297 + $0x48] sm:$0xff]
        %v1084 = vld [vmem:[%s297 + $0x50] sm:$0xff]
        %v1085 = vld [vmem:[%s297 + $0x58] sm:$0xff]
        %v1086 = vld [vmem:[%s297 + $0x60] sm:$0xff]
        %v1087 = vld [vmem:[%s297 + $0x68] sm:$0xff]
        %v1088 = vld [vmem:[%s297 + $0x70] sm:$0xff]
        %v1089 = vld [vmem:[%s297 + $0x78] sm:$0xff]
        %v1090 = vld [vmem:[%s297 + $0x80] sm:$0xff]
        %v1091 = vld [vmem:[%s297 + $0x88] sm:$0xff]
        %v1092 = vld [vmem:[%s297 + $0x90] sm:$0xff]
        %v1093 = vld [vmem:[%s297 + $0x98] sm:$0xff]
        %v1094 = vld [vmem:[%s297 + $0xa0] sm:$0xff]
        %v1095 = vld [vmem:[%s297 + $0xa8] sm:$0xff]
        %v1096 = vld [vmem:[%s297 + $0xb0] sm:$0xff]
        %v1097 = vld [vmem:[%s297 + $0xb8] sm:$0xff]
        %v1098 = vld [vmem:[%s297 + $0xc0] sm:$0xff]
        %v1099 = vld [vmem:[%s297 + $0xc8] sm:$0xff]
        %v1100 = vld [vmem:[%s297 + $0xd0] sm:$0xff]
        %v1101 = vld [vmem:[%s297 + $0xd8] sm:$0xff]
        %v1102 = vld [vmem:[%s297 + $0xe0] sm:$0xff]
        %v1103 = vld [vmem:[%s297 + $0xe8] sm:$0xff]
        %v1104 = vld [vmem:[%s297 + $0xf0] sm:$0xff]
        %v1105 = vld [vmem:[%s297 + $0xf8] sm:$0xff]
        %v1106 = vlaneseq
        %v1107 = vand.u32 %v1106, 127
        %v1108 = vadd.s32 %v1107, 128
        %v1109 = vadd.s32 %v1107, 256
        %v1110 = vadd.s32 %v1107, 384
        %vm1111 = vcmp.ge.s32.totalorder %v1107, 256
        %vm1112 = vcmp.ge.s32.totalorder %v1108, 256
        %vm1113 = vcmp.ge.s32.totalorder %v1109, 256
        %vm1114 = vcmp.ge.s32.totalorder %v1110, 256
        %vm1115 = vcmp.lt.s32.totalorder %v1107, 384
        %vm1116 = vcmp.lt.s32.totalorder %v1108, 384
        %vm1117 = vcmp.lt.s32.totalorder %v1109, 384
        %vm1118 = vcmp.lt.s32.totalorder %v1110, 384
        %vm1119 = vmand %vm1111, %vm1115
        %vm1120 = vmand %vm1112, %vm1116
        %vm1121 = vmand %vm1113, %vm1117
        %vm1122 = vmand %vm1114, %vm1118
        %v1123 = vld [vmem:[#allocation2] sm:$0xff]
        %v1124 = vld [vmem:[#allocation2 + $0x8] sm:$0xff]
        %v1125 = vld [vmem:[#allocation2 + $0x10] sm:$0xff]
        %v1126 = vld [vmem:[#allocation2 + $0x18] sm:$0xff]
        %v1159 = vunpack.c.l.b16 %v1074
        %v1160 = vunpack.c.h.b16 %v1074
        %v1161 = vunpack.c.l.b16 %v1075
        %v1162 = vunpack.c.h.b16 %v1075
        %v1163 = vunpack.c.l.b16 %v1076
        %v1164 = vunpack.c.h.b16 %v1076
        %v1165 = vunpack.c.l.b16 %v1077
        %v1166 = vunpack.c.h.b16 %v1077
        %v1167 = vunpack.c.l.b16 %v1078
        %v1168 = vunpack.c.h.b16 %v1078
        %v1169 = vunpack.c.l.b16 %v1079
        %v1170 = vunpack.c.h.b16 %v1079
        %v1171 = vunpack.c.l.b16 %v1080
        %v1172 = vunpack.c.h.b16 %v1080
        %v1173 = vunpack.c.l.b16 %v1081
        %v1174 = vunpack.c.h.b16 %v1081
        %v1175 = vunpack.c.l.b16 %v1082
        %v1176 = vunpack.c.h.b16 %v1082
        %v1177 = vunpack.c.l.b16 %v1083
        %v1178 = vunpack.c.h.b16 %v1083
        %v1179 = vunpack.c.l.b16 %v1084
        %v1180 = vunpack.c.h.b16 %v1084
        %v1181 = vunpack.c.l.b16 %v1085
        %v1182 = vunpack.c.h.b16 %v1085
        %v1183 = vunpack.c.l.b16 %v1086
        %v1184 = vunpack.c.h.b16 %v1086
        %v1185 = vunpack.c.l.b16 %v1087
        %v1186 = vunpack.c.h.b16 %v1087
        %v1187 = vunpack.c.l.b16 %v1088
        %v1188 = vunpack.c.h.b16 %v1088
        %v1189 = vunpack.c.l.b16 %v1089
        %v1190 = vunpack.c.h.b16 %v1089
        %v1191 = vunpack.c.l.b16 %v1090
        %v1192 = vunpack.c.h.b16 %v1090
        %v1193 = vunpack.c.l.b16 %v1091
        %v1194 = vunpack.c.h.b16 %v1091
        %v1195 = vunpack.c.l.b16 %v1092
        %v1196 = vunpack.c.h.b16 %v1092
        %v1197 = vunpack.c.l.b16 %v1093
        %v1198 = vunpack.c.h.b16 %v1093
        %v1199 = vunpack.c.l.b16 %v1094
        %v1200 = vunpack.c.h.b16 %v1094
        %v1201 = vunpack.c.l.b16 %v1095
        %v1202 = vunpack.c.h.b16 %v1095
        %v1203 = vunpack.c.l.b16 %v1096
        %v1204 = vunpack.c.h.b16 %v1096
        %v1205 = vunpack.c.l.b16 %v1097
        %v1206 = vunpack.c.h.b16 %v1097
        %v1207 = vunpack.c.l.b16 %v1098
        %v1208 = vunpack.c.h.b16 %v1098
        %v1209 = vunpack.c.l.b16 %v1099
        %v1210 = vunpack.c.h.b16 %v1099
        %v1211 = vunpack.c.l.b16 %v1100
        %v1212 = vunpack.c.h.b16 %v1100
        %v1213 = vunpack.c.l.b16 %v1101
        %v1214 = vunpack.c.h.b16 %v1101
        %v1215 = vunpack.c.l.b16 %v1102
        %v1216 = vunpack.c.h.b16 %v1102
        %v1217 = vunpack.c.l.b16 %v1103
        %v1218 = vunpack.c.h.b16 %v1103
        %v1219 = vunpack.c.l.b16 %v1104
        %v1220 = vunpack.c.h.b16 %v1104
        %v1221 = vunpack.c.l.b16 %v1105
        %v1222 = vunpack.c.h.b16 %v1105
        %v1223 = vpack.c.b16 %v1163, %v1159
        %v1224 = vpack.c.b16 %v1164, %v1160
        %v1225 = vpack.c.b16 %v1165, %v1161
        %v1226 = vpack.c.b16 %v1166, %v1162
        %v1227 = vpack.c.b16 %v1171, %v1167
        %v1228 = vpack.c.b16 %v1172, %v1168
        %v1229 = vpack.c.b16 %v1173, %v1169
        %v1230 = vpack.c.b16 %v1174, %v1170
        %v1231 = vpack.c.b16 %v1179, %v1175
        %v1232 = vpack.c.b16 %v1180, %v1176
        %v1233 = vpack.c.b16 %v1181, %v1177
        %v1234 = vpack.c.b16 %v1182, %v1178
        %v1235 = vpack.c.b16 %v1187, %v1183
        %v1236 = vpack.c.b16 %v1188, %v1184
        %v1237 = vpack.c.b16 %v1189, %v1185
        %v1238 = vpack.c.b16 %v1190, %v1186
        %v1239 = vpack.c.b16 %v1195, %v1191
        %v1240 = vpack.c.b16 %v1196, %v1192
        %v1241 = vpack.c.b16 %v1197, %v1193
        %v1242 = vpack.c.b16 %v1198, %v1194
        %v1243 = vpack.c.b16 %v1203, %v1199
        %v1244 = vpack.c.b16 %v1204, %v1200
        %v1245 = vpack.c.b16 %v1205, %v1201
        %v1246 = vpack.c.b16 %v1206, %v1202
        %v1247 = vpack.c.b16 %v1211, %v1207
        %v1248 = vpack.c.b16 %v1212, %v1208
        %v1249 = vpack.c.b16 %v1213, %v1209
        %v1250 = vpack.c.b16 %v1214, %v1210
        %v1251 = vpack.c.b16 %v1219, %v1215
        %v1252 = vpack.c.b16 %v1220, %v1216
        %v1253 = vpack.c.b16 %v1221, %v1217
        %v1254 = vpack.c.b16 %v1222, %v1218
        %1287 = vmatpush.bf16.msra.mxu0 %v1251
        %1288 = vmatpush.bf16.msra.mxu0 %v1247
        %1289 = vmatpush.bf16.msra.mxu0 %v1243
        %1290 = vmatpush.bf16.msra.mxu0 %v1239
        %1291 = vmatpush.bf16.msra.mxu0 %v1235
        %1292 = vmatpush.bf16.msra.mxu0 %v1231
        %1293 = vmatpush.bf16.msra.mxu0 %v1227
        %1294 = vmatpush.bf16.msra.mxu0 %v1223
        %1295 = vmatmul.bf16.gmra.mxu0 0
        %v1296 = vpop.f32.mrf.mxu0
        %v1297 = vadd.f32 0.0, %v1296
        %v1298 = vpop.f32.mrf.mxu0
        %1299 = vdwg.mxu0
        %1300 = vmatpush.bf16.msra.mxu0 %v1252
        %1301 = vmatpush.bf16.msra.mxu0 %v1248
        %1302 = vmatpush.bf16.msra.mxu0 %v1244
        %1303 = vmatpush.bf16.msra.mxu0 %v1240
        %1304 = vmatpush.bf16.msra.mxu0 %v1236
        %1305 = vmatpush.bf16.msra.mxu0 %v1232
        %1306 = vmatpush.bf16.msra.mxu0 %v1228
        %1307 = vmatpush.bf16.msra.mxu0 %v1224
        %1308 = vmatmul.bf16.gmra.mxu0 0
        %v1309 = vpop.f32.mrf.mxu0
        %v1310 = vadd.f32 0.0, %v1309
        %v1311 = vpop.f32.mrf.mxu0
        %1312 = vdwg.mxu0
        %1313 = vmatpush.bf16.msra.mxu0 %v1253
        %1314 = vmatpush.bf16.msra.mxu0 %v1249
        %1315 = vmatpush.bf16.msra.mxu0 %v1245
        %1316 = vmatpush.bf16.msra.mxu0 %v1241
        %1317 = vmatpush.bf16.msra.mxu0 %v1237
        %1318 = vmatpush.bf16.msra.mxu0 %v1233
        %1319 = vmatpush.bf16.msra.mxu0 %v1229
        %1320 = vmatpush.bf16.msra.mxu0 %v1225
        %1321 = vmatmul.bf16.gmra.mxu0 0
        %v1322 = vpop.f32.mrf.mxu0
        %v1323 = vadd.f32 0.0, %v1322
        %v1324 = vpop.f32.mrf.mxu0
        %1325 = vdwg.mxu0
        %1326 = vmatpush.bf16.msra.mxu0 %v1254
        %1327 = vmatpush.bf16.msra.mxu0 %v1250
        %1328 = vmatpush.bf16.msra.mxu0 %v1246
        %1329 = vmatpush.bf16.msra.mxu0 %v1242
        %1330 = vmatpush.bf16.msra.mxu0 %v1238
        %1331 = vmatpush.bf16.msra.mxu0 %v1234
        %1332 = vmatpush.bf16.msra.mxu0 %v1230
        %1333 = vmatpush.bf16.msra.mxu0 %v1226
        %1334 = vmatmul.bf16.gmra.mxu0 0
        %v1335 = vpop.f32.mrf.mxu0
        %v1336 = vadd.f32 0.0, %v1335
        %v1337 = vpop.f32.mrf.mxu0
        %1338 = vdwg.mxu0
        %v1339 = vadd.f32 %v1123, %v1297
        %v1340 = vadd.f32 %v1124, %v1310
        %v1341 = vadd.f32 %v1125, %v1323
        %v1342 = vadd.f32 %v1126, %v1336
        %v1343 = vmul.f32 %v1339, 2.0
        %v1344 = vmul.f32 %v1340, 2.0
        %v1345 = vmul.f32 %v1341, 2.0
        %v1346 = vmul.f32 %v1342, 2.0
        %v1347 = vsel %vm1119, %v1343, %v1339
        %v1348 = vsel %vm1120, %v1344, %v1340
        %v1349 = vsel %vm1121, %v1345, %v1341
        %v1350 = vsel %vm1122, %v1346, %v1342
        %v1351 = vxor.u32 %v1347, 2147483648
        %v1352 = vxor.u32 %v1348, 2147483648
        %v1353 = vxor.u32 %v1349, 2147483648
        %v1354 = vxor.u32 %v1350, 2147483648
        %v1355 = vmul.f32 %v1351, 1.442695
        %v1356 = vpow.pop %v1355
        %v1357 = vmul.f32 %v1352, 1.442695
        %v1358 = vpow.pop %v1357
        %v1359 = vmul.f32 %v1353, 1.442695
        %v1360 = vpow.pop %v1359
        %v1361 = vmul.f32 %v1354, 1.442695
        %v1362 = vpow.pop %v1361
        %v1363 = vadd.f32 %v1356, 1.0
        %v1364 = vadd.f32 %v1358, 1.0
        %v1365 = vadd.f32 %v1360, 1.0
        %v1366 = vadd.f32 %v1362, 1.0
        %v1367 = vrcp.pop %v1363
        %v1368 = vmul.f32 %v1363, %v1367
        %v1369 = vsub.f32 1.0, %v1368
        %v1370 = vmul.f32 %v1367, %v1369
        %v1371 = vadd.f32 %v1367, %v1370
        %vm1372 = vweird.f32 %v1363
        %vm1373 = vweird.f32 %v1367
        %vm1374 = vmor %vm1372, %vm1373
        %v1375 = vsel %vm1374, %v1367, %v1371
        %v1376 = vand.u32 2147483647, %v1363
        %vm1377 = vcmp.eq.f32.partialorder %v1376, 8.507059e+37
        %v1378 = vand.u32 %v1363, 2147483648
        %v1379 = vor.u32 1.1754944e-38, %v1378
        %v1380 = vsel %vm1377, %v1379, %v1375
        %v1381 = vmul.f32 1.0, %v1380
        %v1382 = vrcp.pop %v1364
        %v1383 = vmul.f32 %v1364, %v1382
        %v1384 = vsub.f32 1.0, %v1383
        %v1385 = vmul.f32 %v1382, %v1384
        %v1386 = vadd.f32 %v1382, %v1385
        %vm1387 = vweird.f32 %v1364
        %vm1388 = vweird.f32 %v1382
        %vm1389 = vmor %vm1387, %vm1388
        %v1390 = vsel %vm1389, %v1382, %v1386
        %v1391 = vand.u32 2147483647, %v1364
        %vm1392 = vcmp.eq.f32.partialorder %v1391, 8.507059e+37
        %v1393 = vand.u32 %v1364, 2147483648
        %v1394 = vor.u32 1.1754944e-38, %v1393
        %v1395 = vsel %vm1392, %v1394, %v1390
        %v1396 = vmul.f32 1.0, %v1395
        %v1397 = vrcp.pop %v1365
        %v1398 = vmul.f32 %v1365, %v1397
        %v1399 = vsub.f32 1.0, %v1398
        %v1400 = vmul.f32 %v1397, %v1399
        %v1401 = vadd.f32 %v1397, %v1400
        %vm1402 = vweird.f32 %v1365
        %vm1403 = vweird.f32 %v1397
        %vm1404 = vmor %vm1402, %vm1403
        %v1405 = vsel %vm1404, %v1397, %v1401
        %v1406 = vand.u32 2147483647, %v1365
        %vm1407 = vcmp.eq.f32.partialorder %v1406, 8.507059e+37
        %v1408 = vand.u32 %v1365, 2147483648
        %v1409 = vor.u32 1.1754944e-38, %v1408
        %v1410 = vsel %vm1407, %v1409, %v1405
        %v1411 = vmul.f32 1.0, %v1410
        %v1412 = vrcp.pop %v1366
        %v1413 = vmul.f32 %v1366, %v1412
        %v1414 = vsub.f32 1.0, %v1413
        %v1415 = vmul.f32 %v1412, %v1414
        %v1416 = vadd.f32 %v1412, %v1415
        %vm1417 = vweird.f32 %v1366
        %vm1418 = vweird.f32 %v1412
        %vm1419 = vmor %vm1417, %vm1418
        %v1420 = vsel %vm1419, %v1412, %v1416
        %v1421 = vand.u32 2147483647, %v1366
        %vm1422 = vcmp.eq.f32.partialorder %v1421, 8.507059e+37
        %v1423 = vand.u32 %v1366, 2147483648
        %v1424 = vor.u32 1.1754944e-38, %v1423
        %v1425 = vsel %vm1422, %v1424, %v1420
        %v1426 = vmul.f32 1.0, %v1425
        %v1427 = vmul.f32 %v1381, 2.0
        %v1428 = vmul.f32 %v1396, 2.0
        %v1429 = vmul.f32 %v1411, 2.0
        %v1430 = vmul.f32 %v1426, 2.0
        %v1431 = vsub.f32 %v1427, 1.0
        %v1432 = vsub.f32 %v1428, 1.0
        %v1433 = vsub.f32 %v1429, 1.0
        %v1434 = vsub.f32 %v1430, 1.0
        %v1435 = vsel %vm1119, %v1431, %v1381
        %v1436 = vsel %vm1120, %v1432, %v1396
        %v1437 = vsel %vm1121, %v1433, %v1411
        %v1438 = vsel %vm1122, %v1434, %v1426
        %v1439 = vmul.f32 %v1436, 0.0
        %v1440 = vmul.f32 %v1435, %v1437
        %v1441 = vadd.f32 %v1439, %v1440
        %v1442 = vtanh.pop %v1441
        %v1443 = vmul.f32 %v1438, %v1442
        %v1444 = vpack.c.bf16 %v1443, %v1443
        %1445 = vst [vmem:[#allocation3] sm:$0xf] %v1444
        %v1446 = vld [vmem:[#allocation2 + $0x20] sm:$0xff]
        %v1447 = vld [vmem:[#allocation2 + $0x28] sm:$0xff]
        %v1448 = vld [vmem:[#allocation2 + $0x30] sm:$0xff]
        %v1449 = vld [vmem:[#allocation2 + $0x38] sm:$0xff]
        %1450 = vmatpush.bf16.msra.mxu0 %v1251
        %1451 = vmatpush.bf16.msra.mxu0 %v1247
        %1452 = vmatpush.bf16.msra.mxu0 %v1243
        %1453 = vmatpush.bf16.msra.mxu0 %v1239
        %1454 = vmatpush.bf16.msra.mxu0 %v1235
        %1455 = vmatpush.bf16.msra.mxu0 %v1231
        %1456 = vmatpush.bf16.msra.mxu0 %v1227
        %1457 = vmatpush.bf16.msra.mxu0 %v1223
        %1458 = vmatmul.bf16.gmra.mxu0 %v1444
        %v1459 = vpop.f32.mrf.mxu0
        %v1460 = vadd.f32 0.0, %v1459
        %v1461 = vpop.f32.mrf.mxu0
        %1462 = vdwg.mxu0
        %1463 = vmatpush.bf16.msra.mxu0 %v1252
        %1464 = vmatpush.bf16.msra.mxu0 %v1248
        %1465 = vmatpush.bf16.msra.mxu0 %v1244
        %1466 = vmatpush.bf16.msra.mxu0 %v1240
        %1467 = vmatpush.bf16.msra.mxu0 %v1236
        %1468 = vmatpush.bf16.msra.mxu0 %v1232
        %1469 = vmatpush.bf16.msra.mxu0 %v1228
        %1470 = vmatpush.bf16.msra.mxu0 %v1224
        %1471 = vmatmul.bf16.gmra.mxu0 %v1444
        %v1472 = vpop.f32.mrf.mxu0
        %v1473 = vadd.f32 0.0, %v1472
        %v1474 = vpop.f32.mrf.mxu0
        %1475 = vdwg.mxu0
        %1476 = vmatpush.bf16.msra.mxu0 %v1253
        %1477 = vmatpush.bf16.msra.mxu0 %v1249
        %1478 = vmatpush.bf16.msra.mxu0 %v1245
        %1479 = vmatpush.bf16.msra.mxu0 %v1241
        %1480 = vmatpush.bf16.msra.mxu0 %v1237
        %1481 = vmatpush.bf16.msra.mxu0 %v1233
        %1482 = vmatpush.bf16.msra.mxu0 %v1229
        %1483 = vmatpush.bf16.msra.mxu0 %v1225
        %1484 = vmatmul.bf16.gmra.mxu0 %v1444
        %v1485 = vpop.f32.mrf.mxu0
        %v1486 = vadd.f32 0.0, %v1485
        %v1487 = vpop.f32.mrf.mxu0
        %1488 = vdwg.mxu0
        %1489 = vmatpush.bf16.msra.mxu0 %v1254
        %1490 = vmatpush.bf16.msra.mxu0 %v1250
        %1491 = vmatpush.bf16.msra.mxu0 %v1246
        %1492 = vmatpush.bf16.msra.mxu0 %v1242
        %1493 = vmatpush.bf16.msra.mxu0 %v1238
        %1494 = vmatpush.bf16.msra.mxu0 %v1234
        %1495 = vmatpush.bf16.msra.mxu0 %v1230
        %1496 = vmatpush.bf16.msra.mxu0 %v1226
        %1497 = vmatmul.bf16.gmra.mxu0 %v1444
        %v1498 = vpop.f32.mrf.mxu0
        %v1499 = vadd.f32 0.0, %v1498
        %v1500 = vpop.f32.mrf.mxu0
        %1501 = vdwg.mxu0
        %v1502 = vadd.f32 %v1446, %v1460
        %v1503 = vadd.f32 %v1447, %v1473
        %v1504 = vadd.f32 %v1448, %v1486
        %v1505 = vadd.f32 %v1449, %v1499
        %v1506 = vmul.f32 %v1502, 2.0
        %v1507 = vmul.f32 %v1503, 2.0
        %v1508 = vmul.f32 %v1504, 2.0
        %v1509 = vmul.f32 %v1505, 2.0
        %v1510 = vsel %vm1119, %v1506, %v1502
        %v1511 = vsel %vm1120, %v1507, %v1503
        %v1512 = vsel %vm1121, %v1508, %v1504
        %v1513 = vsel %vm1122, %v1509, %v1505
        %v1514 = vxor.u32 %v1510, 2147483648
        %v1515 = vxor.u32 %v1511, 2147483648
        %v1516 = vxor.u32 %v1512, 2147483648
        %v1517 = vxor.u32 %v1513, 2147483648
        %v1518 = vmul.f32 %v1514, 1.442695
        %v1519 = vpow.pop %v1518
        %v1520 = vmul.f32 %v1515, 1.442695
        %v1521 = vpow.pop %v1520
        %v1522 = vmul.f32 %v1516, 1.442695
        %v1523 = vpow.pop %v1522
        %v1524 = vmul.f32 %v1517, 1.442695
        %v1525 = vpow.pop %v1524
        %v1526 = vadd.f32 %v1519, 1.0
        %v1527 = vadd.f32 %v1521, 1.0
        %v1528 = vadd.f32 %v1523, 1.0
        %v1529 = vadd.f32 %v1525, 1.0
        %v1530 = vrcp.pop %v1526
        %v1531 = vmul.f32 %v1526, %v1530
        %v1532 = vsub.f32 1.0, %v1531
        %v1533 = vmul.f32 %v1530, %v1532
        %v1534 = vadd.f32 %v1530, %v1533
        %vm1535 = vweird.f32 %v1526
        %vm1536 = vweird.f32 %v1530
        %vm1537 = vmor %vm1535, %vm1536
        %v1538 = vsel %vm1537, %v1530, %v1534
        %v1539 = vand.u32 2147483647, %v1526
        %vm1540 = vcmp.eq.f32.partialorder %v1539, 8.507059e+37
        %v1541 = vand.u32 %v1526, 2147483648
        %v1542 = vor.u32 1.1754944e-38, %v1541
        %v1543 = vsel %vm1540, %v1542, %v1538
        %v1544 = vmul.f32 1.0, %v1543
        %v1545 = vrcp.pop %v1527
        %v1546 = vmul.f32 %v1527, %v1545
        %v1547 = vsub.f32 1.0, %v1546
        %v1548 = vmul.f32 %v1545, %v1547
        %v1549 = vadd.f32 %v1545, %v1548
        %vm1550 = vweird.f32 %v1527
        %vm1551 = vweird.f32 %v1545
        %vm1552 = vmor %vm1550, %vm1551
        %v1553 = vsel %vm1552, %v1545, %v1549
        %v1554 = vand.u32 2147483647, %v1527
        %vm1555 = vcmp.eq.f32.partialorder %v1554, 8.507059e+37
        %v1556 = vand.u32 %v1527, 2147483648
        %v1557 = vor.u32 1.1754944e-38, %v1556
        %v1558 = vsel %vm1555, %v1557, %v1553
        %v1559 = vmul.f32 1.0, %v1558
        %v1560 = vrcp.pop %v1528
        %v1561 = vmul.f32 %v1528, %v1560
        %v1562 = vsub.f32 1.0, %v1561
        %v1563 = vmul.f32 %v1560, %v1562
        %v1564 = vadd.f32 %v1560, %v1563
        %vm1565 = vweird.f32 %v1528
        %vm1566 = vweird.f32 %v1560
        %vm1567 = vmor %vm1565, %vm1566
        %v1568 = vsel %vm1567, %v1560, %v1564
        %v1569 = vand.u32 2147483647, %v1528
        %vm1570 = vcmp.eq.f32.partialorder %v1569, 8.507059e+37
        %v1571 = vand.u32 %v1528, 2147483648
        %v1572 = vor.u32 1.1754944e-38, %v1571
        %v1573 = vsel %vm1570, %v1572, %v1568
        %v1574 = vmul.f32 1.0, %v1573
        %v1575 = vrcp.pop %v1529
        %v1576 = vmul.f32 %v1529, %v1575
        %v1577 = vsub.f32 1.0, %v1576
        %v1578 = vmul.f32 %v1575, %v1577
        %v1579 = vadd.f32 %v1575, %v1578
        %vm1580 = vweird.f32 %v1529
        %vm1581 = vweird.f32 %v1575
        %vm1582 = vmor %vm1580, %vm1581
        %v1583 = vsel %vm1582, %v1575, %v1579
        %v1584 = vand.u32 2147483647, %v1529
        %vm1585 = vcmp.eq.f32.partialorder %v1584, 8.507059e+37
        %v1586 = vand.u32 %v1529, 2147483648
        %v1587 = vor.u32 1.1754944e-38, %v1586
        %v1588 = vsel %vm1585, %v1587, %v1583
        %v1589 = vmul.f32 1.0, %v1588
        %v1590 = vmul.f32 %v1544, 2.0
        %v1591 = vmul.f32 %v1559, 2.0
        %v1592 = vmul.f32 %v1574, 2.0
        %v1593 = vmul.f32 %v1589, 2.0
        %v1594 = vsub.f32 %v1590, 1.0
        %v1595 = vsub.f32 %v1591, 1.0
        %v1596 = vsub.f32 %v1592, 1.0
        %v1597 = vsub.f32 %v1593, 1.0
        %v1598 = vsel %vm1119, %v1594, %v1544
        %v1599 = vsel %vm1120, %v1595, %v1559
        %v1600 = vsel %vm1121, %v1596, %v1574
        %v1601 = vsel %vm1122, %v1597, %v1589
        %v1602 = vmul.f32 %v1599, %v1441
        %v1603 = vmul.f32 %v1598, %v1600
        %v1604 = vadd.f32 %v1602, %v1603
        %v1605 = vtanh.pop %v1604
        %v1606 = vmul.f32 %v1601, %v1605
        %v1607 = vpack.c.bf16 %v1606, %v1606
        %1608 = vst [vmem:[#allocation3 + $0x4] sm:$0xf] %v1607
        %v1609 = vld [vmem:[#allocation2 + $0x40] sm:$0xff]
        %v1610 = vld [vmem:[#allocation2 + $0x48] sm:$0xff]
        %v1611 = vld [vmem:[#allocation2 + $0x50] sm:$0xff]
        %v1612 = vld [vmem:[#allocation2 + $0x58] sm:$0xff]
        %1613 = vmatpush.bf16.msra.mxu0 %v1251
        %1614 = vmatpush.bf16.msra.mxu0 %v1247
        %1615 = vmatpush.bf16.msra.mxu0 %v1243
        %1616 = vmatpush.bf16.msra.mxu0 %v1239
        %1617 = vmatpush.bf16.msra.mxu0 %v1235
        %1618 = vmatpush.bf16.msra.mxu0 %v1231
        %1619 = vmatpush.bf16.msra.mxu0 %v1227
        %1620 = vmatpush.bf16.msra.mxu0 %v1223
        %1621 = vmatmul.bf16.gmra.mxu0 %v1607
        %v1622 = vpop.f32.mrf.mxu0
        %v1623 = vadd.f32 0.0, %v1622
        %v1624 = vpop.f32.mrf.mxu0
        %1625 = vdwg.mxu0
        %1626 = vmatpush.bf16.msra.mxu0 %v1252
        %1627 = vmatpush.bf16.msra.mxu0 %v1248
        %1628 = vmatpush.bf16.msra.mxu0 %v1244
        %1629 = vmatpush.bf16.msra.mxu0 %v1240
        %1630 = vmatpush.bf16.msra.mxu0 %v1236
        %1631 = vmatpush.bf16.msra.mxu0 %v1232
        %1632 = vmatpush.bf16.msra.mxu0 %v1228
        %1633 = vmatpush.bf16.msra.mxu0 %v1224
        %1634 = vmatmul.bf16.gmra.mxu0 %v1607
        %v1635 = vpop.f32.mrf.mxu0
        %v1636 = vadd.f32 0.0, %v1635
        %v1637 = vpop.f32.mrf.mxu0
        %1638 = vdwg.mxu0
        %1639 = vmatpush.bf16.msra.mxu0 %v1253
        %1640 = vmatpush.bf16.msra.mxu0 %v1249
        %1641 = vmatpush.bf16.msra.mxu0 %v1245
        %1642 = vmatpush.bf16.msra.mxu0 %v1241
        %1643 = vmatpush.bf16.msra.mxu0 %v1237
        %1644 = vmatpush.bf16.msra.mxu0 %v1233
        %1645 = vmatpush.bf16.msra.mxu0 %v1229
        %1646 = vmatpush.bf16.msra.mxu0 %v1225
        %1647 = vmatmul.bf16.gmra.mxu0 %v1607
        %v1648 = vpop.f32.mrf.mxu0
        %v1649 = vadd.f32 0.0, %v1648
        %v1650 = vpop.f32.mrf.mxu0
        %1651 = vdwg.mxu0
        %1652 = vmatpush.bf16.msra.mxu0 %v1254
        %1653 = vmatpush.bf16.msra.mxu0 %v1250
        %1654 = vmatpush.bf16.msra.mxu0 %v1246
        %1655 = vmatpush.bf16.msra.mxu0 %v1242
        %1656 = vmatpush.bf16.msra.mxu0 %v1238
        %1657 = vmatpush.bf16.msra.mxu0 %v1234
        %1658 = vmatpush.bf16.msra.mxu0 %v1230
        %1659 = vmatpush.bf16.msra.mxu0 %v1226
        %1660 = vmatmul.bf16.gmra.mxu0 %v1607
        %v1661 = vpop.f32.mrf.mxu0
        %v1662 = vadd.f32 0.0, %v1661
        %v1663 = vpop.f32.mrf.mxu0
        %1664 = vdwg.mxu0
        %v1665 = vadd.f32 %v1609, %v1623
        %v1666 = vadd.f32 %v1610, %v1636
        %v1667 = vadd.f32 %v1611, %v1649
        %v1668 = vadd.f32 %v1612, %v1662
        %v1669 = vmul.f32 %v1665, 2.0
        %v1670 = vmul.f32 %v1666, 2.0
        %v1671 = vmul.f32 %v1667, 2.0
        %v1672 = vmul.f32 %v1668, 2.0
        %v1673 = vsel %vm1119, %v1669, %v1665
        %v1674 = vsel %vm1120, %v1670, %v1666
        %v1675 = vsel %vm1121, %v1671, %v1667
        %v1676 = vsel %vm1122, %v1672, %v1668
        %v1677 = vxor.u32 %v1673, 2147483648
        %v1678 = vxor.u32 %v1674, 2147483648
        %v1679 = vxor.u32 %v1675, 2147483648
        %v1680 = vxor.u32 %v1676, 2147483648
        %v1681 = vmul.f32 %v1677, 1.442695
        %v1682 = vpow.pop %v1681
        %v1683 = vmul.f32 %v1678, 1.442695
        %v1684 = vpow.pop %v1683
        %v1685 = vmul.f32 %v1679, 1.442695
        %v1686 = vpow.pop %v1685
        %v1687 = vmul.f32 %v1680, 1.442695
        %v1688 = vpow.pop %v1687
        %v1689 = vadd.f32 %v1682, 1.0
        %v1690 = vadd.f32 %v1684, 1.0
        %v1691 = vadd.f32 %v1686, 1.0
        %v1692 = vadd.f32 %v1688, 1.0
        %v1693 = vrcp.pop %v1689
        %v1694 = vmul.f32 %v1689, %v1693
        %v1695 = vsub.f32 1.0, %v1694
        %v1696 = vmul.f32 %v1693, %v1695
        %v1697 = vadd.f32 %v1693, %v1696
        %vm1698 = vweird.f32 %v1689
        %vm1699 = vweird.f32 %v1693
        %vm1700 = vmor %vm1698, %vm1699
        %v1701 = vsel %vm1700, %v1693, %v1697
        %v1702 = vand.u32 2147483647, %v1689
        %vm1703 = vcmp.eq.f32.partialorder %v1702, 8.507059e+37
        %v1704 = vand.u32 %v1689, 2147483648
        %v1705 = vor.u32 1.1754944e-38, %v1704
        %v1706 = vsel %vm1703, %v1705, %v1701
        %v1707 = vmul.f32 1.0, %v1706
        %v1708 = vrcp.pop %v1690
        %v1709 = vmul.f32 %v1690, %v1708
        %v1710 = vsub.f32 1.0, %v1709
        %v1711 = vmul.f32 %v1708, %v1710
        %v1712 = vadd.f32 %v1708, %v1711
        %vm1713 = vweird.f32 %v1690
        %vm1714 = vweird.f32 %v1708
        %vm1715 = vmor %vm1713, %vm1714
        %v1716 = vsel %vm1715, %v1708, %v1712
        %v1717 = vand.u32 2147483647, %v1690
        %vm1718 = vcmp.eq.f32.partialorder %v1717, 8.507059e+37
        %v1719 = vand.u32 %v1690, 2147483648
        %v1720 = vor.u32 1.1754944e-38, %v1719
        %v1721 = vsel %vm1718, %v1720, %v1716
        %v1722 = vmul.f32 1.0, %v1721
        %v1723 = vrcp.pop %v1691
        %v1724 = vmul.f32 %v1691, %v1723
        %v1725 = vsub.f32 1.0, %v1724
        %v1726 = vmul.f32 %v1723, %v1725
        %v1727 = vadd.f32 %v1723, %v1726
        %vm1728 = vweird.f32 %v1691
        %vm1729 = vweird.f32 %v1723
        %vm1730 = vmor %vm1728, %vm1729
        %v1731 = vsel %vm1730, %v1723, %v1727
        %v1732 = vand.u32 2147483647, %v1691
        %vm1733 = vcmp.eq.f32.partialorder %v1732, 8.507059e+37
        %v1734 = vand.u32 %v1691, 2147483648
        %v1735 = vor.u32 1.1754944e-38, %v1734
        %v1736 = vsel %vm1733, %v1735, %v1731
        %v1737 = vmul.f32 1.0, %v1736
        %v1738 = vrcp.pop %v1692
        %v1739 = vmul.f32 %v1692, %v1738
        %v1740 = vsub.f32 1.0, %v1739
        %v1741 = vmul.f32 %v1738, %v1740
        %v1742 = vadd.f32 %v1738, %v1741
        %vm1743 = vweird.f32 %v1692
        %vm1744 = vweird.f32 %v1738
        %vm1745 = vmor %vm1743, %vm1744
        %v1746 = vsel %vm1745, %v1738, %v1742
        %v1747 = vand.u32 2147483647, %v1692
        %vm1748 = vcmp.eq.f32.partialorder %v1747, 8.507059e+37
        %v1749 = vand.u32 %v1692, 2147483648
        %v1750 = vor.u32 1.1754944e-38, %v1749
        %v1751 = vsel %vm1748, %v1750, %v1746
        %v1752 = vmul.f32 1.0, %v1751
        %v1753 = vmul.f32 %v1707, 2.0
        %v1754 = vmul.f32 %v1722, 2.0
        %v1755 = vmul.f32 %v1737, 2.0
        %v1756 = vmul.f32 %v1752, 2.0
        %v1757 = vsub.f32 %v1753, 1.0
        %v1758 = vsub.f32 %v1754, 1.0
        %v1759 = vsub.f32 %v1755, 1.0
        %v1760 = vsub.f32 %v1756, 1.0
        %v1761 = vsel %vm1119, %v1757, %v1707
        %v1762 = vsel %vm1120, %v1758, %v1722
        %v1763 = vsel %vm1121, %v1759, %v1737
        %v1764 = vsel %vm1122, %v1760, %v1752
        %v1765 = vmul.f32 %v1762, %v1604
        %v1766 = vmul.f32 %v1761, %v1763
        %v1767 = vadd.f32 %v1765, %v1766
        %v1768 = vtanh.pop %v1767
        %v1769 = vmul.f32 %v1764, %v1768
        %v1770 = vpack.c.bf16 %v1769, %v1769
        %1771 = vst [vmem:[#allocation3 + $0x8] sm:$0xf] %v1770
        %v1772 = vld [vmem:[#allocation2 + $0x60] sm:$0xff]
        %v1773 = vld [vmem:[#allocation2 + $0x68] sm:$0xff]
        %v1774 = vld [vmem:[#allocation2 + $0x70] sm:$0xff]
        %v1775 = vld [vmem:[#allocation2 + $0x78] sm:$0xff]
        %1776 = vmatpush.bf16.msra.mxu0 %v1251
        %1777 = vmatpush.bf16.msra.mxu0 %v1247
        %1778 = vmatpush.bf16.msra.mxu0 %v1243
        %1779 = vmatpush.bf16.msra.mxu0 %v1239
        %1780 = vmatpush.bf16.msra.mxu0 %v1235
        %1781 = vmatpush.bf16.msra.mxu0 %v1231
        %1782 = vmatpush.bf16.msra.mxu0 %v1227
        %1783 = vmatpush.bf16.msra.mxu0 %v1223
        %1784 = vmatmul.bf16.gmra.mxu0 %v1770
        %v1785 = vpop.f32.mrf.mxu0
        %v1786 = vadd.f32 0.0, %v1785
        %v1787 = vpop.f32.mrf.mxu0
        %1788 = vdwg.mxu0
        %1789 = vmatpush.bf16.msra.mxu0 %v1252
        %1790 = vmatpush.bf16.msra.mxu0 %v1248
        %1791 = vmatpush.bf16.msra.mxu0 %v1244
        %1792 = vmatpush.bf16.msra.mxu0 %v1240
        %1793 = vmatpush.bf16.msra.mxu0 %v1236
        %1794 = vmatpush.bf16.msra.mxu0 %v1232
        %1795 = vmatpush.bf16.msra.mxu0 %v1228
        %1796 = vmatpush.bf16.msra.mxu0 %v1224
        %1797 = vmatmul.bf16.gmra.mxu0 %v1770
        %v1798 = vpop.f32.mrf.mxu0
        %v1799 = vadd.f32 0.0, %v1798
        %v1800 = vpop.f32.mrf.mxu0
        %1801 = vdwg.mxu0
        %1802 = vmatpush.bf16.msra.mxu0 %v1253
        %1803 = vmatpush.bf16.msra.mxu0 %v1249
        %1804 = vmatpush.bf16.msra.mxu0 %v1245
        %1805 = vmatpush.bf16.msra.mxu0 %v1241
        %1806 = vmatpush.bf16.msra.mxu0 %v1237
        %1807 = vmatpush.bf16.msra.mxu0 %v1233
        %1808 = vmatpush.bf16.msra.mxu0 %v1229
        %1809 = vmatpush.bf16.msra.mxu0 %v1225
        %1810 = vmatmul.bf16.gmra.mxu0 %v1770
        %v1811 = vpop.f32.mrf.mxu0
        %v1812 = vadd.f32 0.0, %v1811
        %v1813 = vpop.f32.mrf.mxu0
        %1814 = vdwg.mxu0
        %1815 = vmatpush.bf16.msra.mxu0 %v1254
        %1816 = vmatpush.bf16.msra.mxu0 %v1250
        %1817 = vmatpush.bf16.msra.mxu0 %v1246
        %1818 = vmatpush.bf16.msra.mxu0 %v1242
        %1819 = vmatpush.bf16.msra.mxu0 %v1238
        %1820 = vmatpush.bf16.msra.mxu0 %v1234
        %1821 = vmatpush.bf16.msra.mxu0 %v1230
        %1822 = vmatpush.bf16.msra.mxu0 %v1226
        %1823 = vmatmul.bf16.gmra.mxu0 %v1770
        %v1824 = vpop.f32.mrf.mxu0
        %v1825 = vadd.f32 0.0, %v1824
        %v1826 = vpop.f32.mrf.mxu0
        %1827 = vdwg.mxu0
        %v1828 = vadd.f32 %v1772, %v1786
        %v1829 = vadd.f32 %v1773, %v1799
        %v1830 = vadd.f32 %v1774, %v1812
        %v1831 = vadd.f32 %v1775, %v1825
        %v1832 = vmul.f32 %v1828, 2.0
        %v1833 = vmul.f32 %v1829, 2.0
        %v1834 = vmul.f32 %v1830, 2.0
        %v1835 = vmul.f32 %v1831, 2.0
        %v1836 = vsel %vm1119, %v1832, %v1828
        %v1837 = vsel %vm1120, %v1833, %v1829
        %v1838 = vsel %vm1121, %v1834, %v1830
        %v1839 = vsel %vm1122, %v1835, %v1831
        %v1840 = vxor.u32 %v1836, 2147483648
        %v1841 = vxor.u32 %v1837, 2147483648
        %v1842 = vxor.u32 %v1838, 2147483648
        %v1843 = vxor.u32 %v1839, 2147483648
        %v1844 = vmul.f32 %v1840, 1.442695
        %v1845 = vpow.pop %v1844
        %v1846 = vmul.f32 %v1841, 1.442695
        %v1847 = vpow.pop %v1846
        %v1848 = vmul.f32 %v1842, 1.442695
        %v1849 = vpow.pop %v1848
        %v1850 = vmul.f32 %v1843, 1.442695
        %v1851 = vpow.pop %v1850
        %v1852 = vadd.f32 %v1845, 1.0
        %v1853 = vadd.f32 %v1847, 1.0
        %v1854 = vadd.f32 %v1849, 1.0
        %v1855 = vadd.f32 %v1851, 1.0
        %v1856 = vrcp.pop %v1852
        %v1857 = vmul.f32 %v1852, %v1856
        %v1858 = vsub.f32 1.0, %v1857
        %v1859 = vmul.f32 %v1856, %v1858
        %v1860 = vadd.f32 %v1856, %v1859
        %vm1861 = vweird.f32 %v1852
        %vm1862 = vweird.f32 %v1856
        %vm1863 = vmor %vm1861, %vm1862
        %v1864 = vsel %vm1863, %v1856, %v1860
        %v1865 = vand.u32 2147483647, %v1852
        %vm1866 = vcmp.eq.f32.partialorder %v1865, 8.507059e+37
        %v1867 = vand.u32 %v1852, 2147483648
        %v1868 = vor.u32 1.1754944e-38, %v1867
        %v1869 = vsel %vm1866, %v1868, %v1864
        %v1870 = vmul.f32 1.0, %v1869
        %v1871 = vrcp.pop %v1853
        %v1872 = vmul.f32 %v1853, %v1871
        %v1873 = vsub.f32 1.0, %v1872
        %v1874 = vmul.f32 %v1871, %v1873
        %v1875 = vadd.f32 %v1871, %v1874
        %vm1876 = vweird.f32 %v1853
        %vm1877 = vweird.f32 %v1871
        %vm1878 = vmor %vm1876, %vm1877
        %v1879 = vsel %vm1878, %v1871, %v1875
        %v1880 = vand.u32 2147483647, %v1853
        %vm1881 = vcmp.eq.f32.partialorder %v1880, 8.507059e+37
        %v1882 = vand.u32 %v1853, 2147483648
        %v1883 = vor.u32 1.1754944e-38, %v1882
        %v1884 = vsel %vm1881, %v1883, %v1879
        %v1885 = vmul.f32 1.0, %v1884
        %v1886 = vrcp.pop %v1854
        %v1887 = vmul.f32 %v1854, %v1886
        %v1888 = vsub.f32 1.0, %v1887
        %v1889 = vmul.f32 %v1886, %v1888
        %v1890 = vadd.f32 %v1886, %v1889
        %vm1891 = vweird.f32 %v1854
        %vm1892 = vweird.f32 %v1886
        %vm1893 = vmor %vm1891, %vm1892
        %v1894 = vsel %vm1893, %v1886, %v1890
        %v1895 = vand.u32 2147483647, %v1854
        %vm1896 = vcmp.eq.f32.partialorder %v1895, 8.507059e+37
        %v1897 = vand.u32 %v1854, 2147483648
        %v1898 = vor.u32 1.1754944e-38, %v1897
        %v1899 = vsel %vm1896, %v1898, %v1894
        %v1900 = vmul.f32 1.0, %v1899
        %v1901 = vrcp.pop %v1855
        %v1902 = vmul.f32 %v1855, %v1901
        %v1903 = vsub.f32 1.0, %v1902
        %v1904 = vmul.f32 %v1901, %v1903
        %v1905 = vadd.f32 %v1901, %v1904
        %vm1906 = vweird.f32 %v1855
        %vm1907 = vweird.f32 %v1901
        %vm1908 = vmor %vm1906, %vm1907
        %v1909 = vsel %vm1908, %v1901, %v1905
        %v1910 = vand.u32 2147483647, %v1855
        %vm1911 = vcmp.eq.f32.partialorder %v1910, 8.507059e+37
        %v1912 = vand.u32 %v1855, 2147483648
        %v1913 = vor.u32 1.1754944e-38, %v1912
        %v1914 = vsel %vm1911, %v1913, %v1909
        %v1915 = vmul.f32 1.0, %v1914
        %v1916 = vmul.f32 %v1870, 2.0
        %v1917 = vmul.f32 %v1885, 2.0
        %v1918 = vmul.f32 %v1900, 2.0
        %v1919 = vmul.f32 %v1915, 2.0
        %v1920 = vsub.f32 %v1916, 1.0
        %v1921 = vsub.f32 %v1917, 1.0
        %v1922 = vsub.f32 %v1918, 1.0
        %v1923 = vsub.f32 %v1919, 1.0
        %v1924 = vsel %vm1119, %v1920, %v1870
        %v1925 = vsel %vm1120, %v1921, %v1885
        %v1926 = vsel %vm1121, %v1922, %v1900
        %v1927 = vsel %vm1122, %v1923, %v1915
        %v1928 = vmul.f32 %v1925, %v1767
        %v1929 = vmul.f32 %v1924, %v1926
        %v1930 = vadd.f32 %v1928, %v1929
        %v1931 = vtanh.pop %v1930
        %v1932 = vmul.f32 %v1927, %v1931
        %v1933 = vpack.c.bf16 %v1932, %v1932
        %1934 = vst [vmem:[#allocation3 + $0xc] sm:$0xf] %v1933
        %v1935 = vld [vmem:[#allocation2 + $0x80] sm:$0xff]
        %v1936 = vld [vmem:[#allocation2 + $0x88] sm:$0xff]
        %v1937 = vld [vmem:[#allocation2 + $0x90] sm:$0xff]
        %v1938 = vld [vmem:[#allocation2 + $0x98] sm:$0xff]
        %1939 = vmatpush.bf16.msra.mxu0 %v1251
        %1940 = vmatpush.bf16.msra.mxu0 %v1247
        %1941 = vmatpush.bf16.msra.mxu0 %v1243
        %1942 = vmatpush.bf16.msra.mxu0 %v1239
        %1943 = vmatpush.bf16.msra.mxu0 %v1235
        %1944 = vmatpush.bf16.msra.mxu0 %v1231
        %1945 = vmatpush.bf16.msra.mxu0 %v1227
        %1946 = vmatpush.bf16.msra.mxu0 %v1223
        %1947 = vmatmul.bf16.gmra.mxu0 %v1933
        %v1948 = vpop.f32.mrf.mxu0
        %v1949 = vadd.f32 0.0, %v1948
        %v1950 = vpop.f32.mrf.mxu0
        %1951 = vdwg.mxu0
        %1952 = vmatpush.bf16.msra.mxu0 %v1252
        %1953 = vmatpush.bf16.msra.mxu0 %v1248
        %1954 = vmatpush.bf16.msra.mxu0 %v1244
        %1955 = vmatpush.bf16.msra.mxu0 %v1240
        %1956 = vmatpush.bf16.msra.mxu0 %v1236
        %1957 = vmatpush.bf16.msra.mxu0 %v1232
        %1958 = vmatpush.bf16.msra.mxu0 %v1228
        %1959 = vmatpush.bf16.msra.mxu0 %v1224
        %1960 = vmatmul.bf16.gmra.mxu0 %v1933
        %v1961 = vpop.f32.mrf.mxu0
        %v1962 = vadd.f32 0.0, %v1961
        %v1963 = vpop.f32.mrf.mxu0
        %1964 = vdwg.mxu0
        %1965 = vmatpush.bf16.msra.mxu0 %v1253
        %1966 = vmatpush.bf16.msra.mxu0 %v1249
        %1967 = vmatpush.bf16.msra.mxu0 %v1245
        %1968 = vmatpush.bf16.msra.mxu0 %v1241
        %1969 = vmatpush.bf16.msra.mxu0 %v1237
        %1970 = vmatpush.bf16.msra.mxu0 %v1233
        %1971 = vmatpush.bf16.msra.mxu0 %v1229
        %1972 = vmatpush.bf16.msra.mxu0 %v1225
        %1973 = vmatmul.bf16.gmra.mxu0 %v1933
        %v1974 = vpop.f32.mrf.mxu0
        %v1975 = vadd.f32 0.0, %v1974
        %v1976 = vpop.f32.mrf.mxu0
        %1977 = vdwg.mxu0
        %1978 = vmatpush.bf16.msra.mxu0 %v1254
        %1979 = vmatpush.bf16.msra.mxu0 %v1250
        %1980 = vmatpush.bf16.msra.mxu0 %v1246
        %1981 = vmatpush.bf16.msra.mxu0 %v1242
        %1982 = vmatpush.bf16.msra.mxu0 %v1238
        %1983 = vmatpush.bf16.msra.mxu0 %v1234
        %1984 = vmatpush.bf16.msra.mxu0 %v1230
        %1985 = vmatpush.bf16.msra.mxu0 %v1226
        %1986 = vmatmul.bf16.gmra.mxu0 %v1933
        %v1987 = vpop.f32.mrf.mxu0
        %v1988 = vadd.f32 0.0, %v1987
        %v1989 = vpop.f32.mrf.mxu0
        %1990 = vdwg.mxu0
        %v1991 = vadd.f32 %v1935, %v1949
        %v1992 = vadd.f32 %v1936, %v1962
        %v1993 = vadd.f32 %v1937, %v1975
        %v1994 = vadd.f32 %v1938, %v1988
        %v1995 = vmul.f32 %v1991, 2.0
        %v1996 = vmul.f32 %v1992, 2.0
        %v1997 = vmul.f32 %v1993, 2.0
        %v1998 = vmul.f32 %v1994, 2.0
        %v1999 = vsel %vm1119, %v1995, %v1991
        %v2000 = vsel %vm1120, %v1996, %v1992
        %v2001 = vsel %vm1121, %v1997, %v1993
        %v2002 = vsel %vm1122, %v1998, %v1994
        %v2003 = vxor.u32 %v1999, 2147483648
        %v2004 = vxor.u32 %v2000, 2147483648
        %v2005 = vxor.u32 %v2001, 2147483648
        %v2006 = vxor.u32 %v2002, 2147483648
        %v2007 = vmul.f32 %v2003, 1.442695
        %v2008 = vpow.pop %v2007
        %v2009 = vmul.f32 %v2004, 1.442695
        %v2010 = vpow.pop %v2009
        %v2011 = vmul.f32 %v2005, 1.442695
        %v2012 = vpow.pop %v2011
        %v2013 = vmul.f32 %v2006, 1.442695
        %v2014 = vpow.pop %v2013
        %v2015 = vadd.f32 %v2008, 1.0
        %v2016 = vadd.f32 %v2010, 1.0
        %v2017 = vadd.f32 %v2012, 1.0
        %v2018 = vadd.f32 %v2014, 1.0
        %v2019 = vrcp.pop %v2015
        %v2020 = vmul.f32 %v2015, %v2019
        %v2021 = vsub.f32 1.0, %v2020
        %v2022 = vmul.f32 %v2019, %v2021
        %v2023 = vadd.f32 %v2019, %v2022
        %vm2024 = vweird.f32 %v2015
        %vm2025 = vweird.f32 %v2019
        %vm2026 = vmor %vm2024, %vm2025
        %v2027 = vsel %vm2026, %v2019, %v2023
        %v2028 = vand.u32 2147483647, %v2015
        %vm2029 = vcmp.eq.f32.partialorder %v2028, 8.507059e+37
        %v2030 = vand.u32 %v2015, 2147483648
        %v2031 = vor.u32 1.1754944e-38, %v2030
        %v2032 = vsel %vm2029, %v2031, %v2027
        %v2033 = vmul.f32 1.0, %v2032
        %v2034 = vrcp.pop %v2016
        %v2035 = vmul.f32 %v2016, %v2034
        %v2036 = vsub.f32 1.0, %v2035
        %v2037 = vmul.f32 %v2034, %v2036
        %v2038 = vadd.f32 %v2034, %v2037
        %vm2039 = vweird.f32 %v2016
        %vm2040 = vweird.f32 %v2034
        %vm2041 = vmor %vm2039, %vm2040
        %v2042 = vsel %vm2041, %v2034, %v2038
        %v2043 = vand.u32 2147483647, %v2016
        %vm2044 = vcmp.eq.f32.partialorder %v2043, 8.507059e+37
        %v2045 = vand.u32 %v2016, 2147483648
        %v2046 = vor.u32 1.1754944e-38, %v2045
        %v2047 = vsel %vm2044, %v2046, %v2042
        %v2048 = vmul.f32 1.0, %v2047
        %v2049 = vrcp.pop %v2017
        %v2050 = vmul.f32 %v2017, %v2049
        %v2051 = vsub.f32 1.0, %v2050
        %v2052 = vmul.f32 %v2049, %v2051
        %v2053 = vadd.f32 %v2049, %v2052
        %vm2054 = vweird.f32 %v2017
        %vm2055 = vweird.f32 %v2049
        %vm2056 = vmor %vm2054, %vm2055
        %v2057 = vsel %vm2056, %v2049, %v2053
        %v2058 = vand.u32 2147483647, %v2017
        %vm2059 = vcmp.eq.f32.partialorder %v2058, 8.507059e+37
        %v2060 = vand.u32 %v2017, 2147483648
        %v2061 = vor.u32 1.1754944e-38, %v2060
        %v2062 = vsel %vm2059, %v2061, %v2057
        %v2063 = vmul.f32 1.0, %v2062
        %v2064 = vrcp.pop %v2018
        %v2065 = vmul.f32 %v2018, %v2064
        %v2066 = vsub.f32 1.0, %v2065
        %v2067 = vmul.f32 %v2064, %v2066
        %v2068 = vadd.f32 %v2064, %v2067
        %vm2069 = vweird.f32 %v2018
        %vm2070 = vweird.f32 %v2064
        %vm2071 = vmor %vm2069, %vm2070
        %v2072 = vsel %vm2071, %v2064, %v2068
        %v2073 = vand.u32 2147483647, %v2018
        %vm2074 = vcmp.eq.f32.partialorder %v2073, 8.507059e+37
        %v2075 = vand.u32 %v2018, 2147483648
        %v2076 = vor.u32 1.1754944e-38, %v2075
        %v2077 = vsel %vm2074, %v2076, %v2072
        %v2078 = vmul.f32 1.0, %v2077
        %v2079 = vmul.f32 %v2033, 2.0
        %v2080 = vmul.f32 %v2048, 2.0
        %v2081 = vmul.f32 %v2063, 2.0
        %v2082 = vmul.f32 %v2078, 2.0
        %v2083 = vsub.f32 %v2079, 1.0
        %v2084 = vsub.f32 %v2080, 1.0
        %v2085 = vsub.f32 %v2081, 1.0
        %v2086 = vsub.f32 %v2082, 1.0
        %v2087 = vsel %vm1119, %v2083, %v2033
        %v2088 = vsel %vm1120, %v2084, %v2048
        %v2089 = vsel %vm1121, %v2085, %v2063
        %v2090 = vsel %vm1122, %v2086, %v2078
        %v2091 = vmul.f32 %v2088, %v1930
        %v2092 = vmul.f32 %v2087, %v2089
        %v2093 = vadd.f32 %v2091, %v2092
        %v2094 = vtanh.pop %v2093
        %v2095 = vmul.f32 %v2090, %v2094
        %v2096 = vpack.c.bf16 %v2095, %v2095
        %2097 = vst [vmem:[#allocation3 + $0x10] sm:$0xf] %v2096
        %v2098 = vld [vmem:[#allocation2 + $0xa0] sm:$0xff]
        %v2099 = vld [vmem:[#allocation2 + $0xa8] sm:$0xff]
        %v2100 = vld [vmem:[#allocation2 + $0xb0] sm:$0xff]
        %v2101 = vld [vmem:[#allocation2 + $0xb8] sm:$0xff]
        %2102 = vmatpush.bf16.msra.mxu0 %v1251
        %2103 = vmatpush.bf16.msra.mxu0 %v1247
        %2104 = vmatpush.bf16.msra.mxu0 %v1243
        %2105 = vmatpush.bf16.msra.mxu0 %v1239
        %2106 = vmatpush.bf16.msra.mxu0 %v1235
        %2107 = vmatpush.bf16.msra.mxu0 %v1231
        %2108 = vmatpush.bf16.msra.mxu0 %v1227
        %2109 = vmatpush.bf16.msra.mxu0 %v1223
        %2110 = vmatmul.bf16.gmra.mxu0 %v2096
        %v2111 = vpop.f32.mrf.mxu0
        %v2112 = vadd.f32 0.0, %v2111
        %v2113 = vpop.f32.mrf.mxu0
        %2114 = vdwg.mxu0
        %2115 = vmatpush.bf16.msra.mxu0 %v1252
        %2116 = vmatpush.bf16.msra.mxu0 %v1248
        %2117 = vmatpush.bf16.msra.mxu0 %v1244
        %2118 = vmatpush.bf16.msra.mxu0 %v1240
        %2119 = vmatpush.bf16.msra.mxu0 %v1236
        %2120 = vmatpush.bf16.msra.mxu0 %v1232
        %2121 = vmatpush.bf16.msra.mxu0 %v1228
        %2122 = vmatpush.bf16.msra.mxu0 %v1224
        %2123 = vmatmul.bf16.gmra.mxu0 %v2096
        %v2124 = vpop.f32.mrf.mxu0
        %v2125 = vadd.f32 0.0, %v2124
        %v2126 = vpop.f32.mrf.mxu0
        %2127 = vdwg.mxu0
        %2128 = vmatpush.bf16.msra.mxu0 %v1253
        %2129 = vmatpush.bf16.msra.mxu0 %v1249
        %2130 = vmatpush.bf16.msra.mxu0 %v1245
        %2131 = vmatpush.bf16.msra.mxu0 %v1241
        %2132 = vmatpush.bf16.msra.mxu0 %v1237
        %2133 = vmatpush.bf16.msra.mxu0 %v1233
        %2134 = vmatpush.bf16.msra.mxu0 %v1229
        %2135 = vmatpush.bf16.msra.mxu0 %v1225
        %2136 = vmatmul.bf16.gmra.mxu0 %v2096
        %v2137 = vpop.f32.mrf.mxu0
        %v2138 = vadd.f32 0.0, %v2137
        %v2139 = vpop.f32.mrf.mxu0
        %2140 = vdwg.mxu0
        %2141 = vmatpush.bf16.msra.mxu0 %v1254
        %2142 = vmatpush.bf16.msra.mxu0 %v1250
        %2143 = vmatpush.bf16.msra.mxu0 %v1246
        %2144 = vmatpush.bf16.msra.mxu0 %v1242
        %2145 = vmatpush.bf16.msra.mxu0 %v1238
        %2146 = vmatpush.bf16.msra.mxu0 %v1234
        %2147 = vmatpush.bf16.msra.mxu0 %v1230
        %2148 = vmatpush.bf16.msra.mxu0 %v1226
        %2149 = vmatmul.bf16.gmra.mxu0 %v2096
        %v2150 = vpop.f32.mrf.mxu0
        %v2151 = vadd.f32 0.0, %v2150
        %v2152 = vpop.f32.mrf.mxu0
        %2153 = vdwg.mxu0
        %v2154 = vadd.f32 %v2098, %v2112
        %v2155 = vadd.f32 %v2099, %v2125
        %v2156 = vadd.f32 %v2100, %v2138
        %v2157 = vadd.f32 %v2101, %v2151
        %v2158 = vmul.f32 %v2154, 2.0
        %v2159 = vmul.f32 %v2155, 2.0
        %v2160 = vmul.f32 %v2156, 2.0
        %v2161 = vmul.f32 %v2157, 2.0
        %v2162 = vsel %vm1119, %v2158, %v2154
        %v2163 = vsel %vm1120, %v2159, %v2155
        %v2164 = vsel %vm1121, %v2160, %v2156
        %v2165 = vsel %vm1122, %v2161, %v2157
        %v2166 = vxor.u32 %v2162, 2147483648
        %v2167 = vxor.u32 %v2163, 2147483648
        %v2168 = vxor.u32 %v2164, 2147483648
        %v2169 = vxor.u32 %v2165, 2147483648
        %v2170 = vmul.f32 %v2166, 1.442695
        %v2171 = vpow.pop %v2170
        %v2172 = vmul.f32 %v2167, 1.442695
        %v2173 = vpow.pop %v2172
        %v2174 = vmul.f32 %v2168, 1.442695
        %v2175 = vpow.pop %v2174
        %v2176 = vmul.f32 %v2169, 1.442695
        %v2177 = vpow.pop %v2176
        %v2178 = vadd.f32 %v2171, 1.0
        %v2179 = vadd.f32 %v2173, 1.0
        %v2180 = vadd.f32 %v2175, 1.0
        %v2181 = vadd.f32 %v2177, 1.0
        %v2182 = vrcp.pop %v2178
        %v2183 = vmul.f32 %v2178, %v2182
        %v2184 = vsub.f32 1.0, %v2183
        %v2185 = vmul.f32 %v2182, %v2184
        %v2186 = vadd.f32 %v2182, %v2185
        %vm2187 = vweird.f32 %v2178
        %vm2188 = vweird.f32 %v2182
        %vm2189 = vmor %vm2187, %vm2188
        %v2190 = vsel %vm2189, %v2182, %v2186
        %v2191 = vand.u32 2147483647, %v2178
        %vm2192 = vcmp.eq.f32.partialorder %v2191, 8.507059e+37
        %v2193 = vand.u32 %v2178, 2147483648
        %v2194 = vor.u32 1.1754944e-38, %v2193
        %v2195 = vsel %vm2192, %v2194, %v2190
        %v2196 = vmul.f32 1.0, %v2195
        %v2197 = vrcp.pop %v2179
        %v2198 = vmul.f32 %v2179, %v2197
        %v2199 = vsub.f32 1.0, %v2198
        %v2200 = vmul.f32 %v2197, %v2199
        %v2201 = vadd.f32 %v2197, %v2200
        %vm2202 = vweird.f32 %v2179
        %vm2203 = vweird.f32 %v2197
        %vm2204 = vmor %vm2202, %vm2203
        %v2205 = vsel %vm2204, %v2197, %v2201
        %v2206 = vand.u32 2147483647, %v2179
        %vm2207 = vcmp.eq.f32.partialorder %v2206, 8.507059e+37
        %v2208 = vand.u32 %v2179, 2147483648
        %v2209 = vor.u32 1.1754944e-38, %v2208
        %v2210 = vsel %vm2207, %v2209, %v2205
        %v2211 = vmul.f32 1.0, %v2210
        %v2212 = vrcp.pop %v2180
        %v2213 = vmul.f32 %v2180, %v2212
        %v2214 = vsub.f32 1.0, %v2213
        %v2215 = vmul.f32 %v2212, %v2214
        %v2216 = vadd.f32 %v2212, %v2215
        %vm2217 = vweird.f32 %v2180
        %vm2218 = vweird.f32 %v2212
        %vm2219 = vmor %vm2217, %vm2218
        %v2220 = vsel %vm2219, %v2212, %v2216
        %v2221 = vand.u32 2147483647, %v2180
        %vm2222 = vcmp.eq.f32.partialorder %v2221, 8.507059e+37
        %v2223 = vand.u32 %v2180, 2147483648
        %v2224 = vor.u32 1.1754944e-38, %v2223
        %v2225 = vsel %vm2222, %v2224, %v2220
        %v2226 = vmul.f32 1.0, %v2225
        %v2227 = vrcp.pop %v2181
        %v2228 = vmul.f32 %v2181, %v2227
        %v2229 = vsub.f32 1.0, %v2228
        %v2230 = vmul.f32 %v2227, %v2229
        %v2231 = vadd.f32 %v2227, %v2230
        %vm2232 = vweird.f32 %v2181
        %vm2233 = vweird.f32 %v2227
        %vm2234 = vmor %vm2232, %vm2233
        %v2235 = vsel %vm2234, %v2227, %v2231
        %v2236 = vand.u32 2147483647, %v2181
        %vm2237 = vcmp.eq.f32.partialorder %v2236, 8.507059e+37
        %v2238 = vand.u32 %v2181, 2147483648
        %v2239 = vor.u32 1.1754944e-38, %v2238
        %v2240 = vsel %vm2237, %v2239, %v2235
        %v2241 = vmul.f32 1.0, %v2240
        %v2242 = vmul.f32 %v2196, 2.0
        %v2243 = vmul.f32 %v2211, 2.0
        %v2244 = vmul.f32 %v2226, 2.0
        %v2245 = vmul.f32 %v2241, 2.0
        %v2246 = vsub.f32 %v2242, 1.0
        %v2247 = vsub.f32 %v2243, 1.0
        %v2248 = vsub.f32 %v2244, 1.0
        %v2249 = vsub.f32 %v2245, 1.0
        %v2250 = vsel %vm1119, %v2246, %v2196
        %v2251 = vsel %vm1120, %v2247, %v2211
        %v2252 = vsel %vm1121, %v2248, %v2226
        %v2253 = vsel %vm1122, %v2249, %v2241
        %v2254 = vmul.f32 %v2251, %v2093
        %v2255 = vmul.f32 %v2250, %v2252
        %v2256 = vadd.f32 %v2254, %v2255
        %v2257 = vtanh.pop %v2256
        %v2258 = vmul.f32 %v2253, %v2257
        %v2259 = vpack.c.bf16 %v2258, %v2258
        %2260 = vst [vmem:[#allocation3 + $0x14] sm:$0xf] %v2259
        %v2261 = vld [vmem:[#allocation2 + $0xc0] sm:$0xff]
        %v2262 = vld [vmem:[#allocation2 + $0xc8] sm:$0xff]
        %v2263 = vld [vmem:[#allocation2 + $0xd0] sm:$0xff]
        %v2264 = vld [vmem:[#allocation2 + $0xd8] sm:$0xff]
        %2265 = vmatpush.bf16.msra.mxu0 %v1251
        %2266 = vmatpush.bf16.msra.mxu0 %v1247
        %2267 = vmatpush.bf16.msra.mxu0 %v1243
        %2268 = vmatpush.bf16.msra.mxu0 %v1239
        %2269 = vmatpush.bf16.msra.mxu0 %v1235
        %2270 = vmatpush.bf16.msra.mxu0 %v1231
        %2271 = vmatpush.bf16.msra.mxu0 %v1227
        %2272 = vmatpush.bf16.msra.mxu0 %v1223
        %2273 = vmatmul.bf16.gmra.mxu0 %v2259
        %v2274 = vpop.f32.mrf.mxu0
        %v2275 = vadd.f32 0.0, %v2274
        %v2276 = vpop.f32.mrf.mxu0
        %2277 = vdwg.mxu0
        %2278 = vmatpush.bf16.msra.mxu0 %v1252
        %2279 = vmatpush.bf16.msra.mxu0 %v1248
        %2280 = vmatpush.bf16.msra.mxu0 %v1244
        %2281 = vmatpush.bf16.msra.mxu0 %v1240
        %2282 = vmatpush.bf16.msra.mxu0 %v1236
        %2283 = vmatpush.bf16.msra.mxu0 %v1232
        %2284 = vmatpush.bf16.msra.mxu0 %v1228
        %2285 = vmatpush.bf16.msra.mxu0 %v1224
        %2286 = vmatmul.bf16.gmra.mxu0 %v2259
        %v2287 = vpop.f32.mrf.mxu0
        %v2288 = vadd.f32 0.0, %v2287
        %v2289 = vpop.f32.mrf.mxu0
        %2290 = vdwg.mxu0
        %2291 = vmatpush.bf16.msra.mxu0 %v1253
        %2292 = vmatpush.bf16.msra.mxu0 %v1249
        %2293 = vmatpush.bf16.msra.mxu0 %v1245
        %2294 = vmatpush.bf16.msra.mxu0 %v1241
        %2295 = vmatpush.bf16.msra.mxu0 %v1237
        %2296 = vmatpush.bf16.msra.mxu0 %v1233
        %2297 = vmatpush.bf16.msra.mxu0 %v1229
        %2298 = vmatpush.bf16.msra.mxu0 %v1225
        %2299 = vmatmul.bf16.gmra.mxu0 %v2259
        %v2300 = vpop.f32.mrf.mxu0
        %v2301 = vadd.f32 0.0, %v2300
        %v2302 = vpop.f32.mrf.mxu0
        %2303 = vdwg.mxu0
        %2304 = vmatpush.bf16.msra.mxu0 %v1254
        %2305 = vmatpush.bf16.msra.mxu0 %v1250
        %2306 = vmatpush.bf16.msra.mxu0 %v1246
        %2307 = vmatpush.bf16.msra.mxu0 %v1242
        %2308 = vmatpush.bf16.msra.mxu0 %v1238
        %2309 = vmatpush.bf16.msra.mxu0 %v1234
        %2310 = vmatpush.bf16.msra.mxu0 %v1230
        %2311 = vmatpush.bf16.msra.mxu0 %v1226
        %2312 = vmatmul.bf16.gmra.mxu0 %v2259
        %v2313 = vpop.f32.mrf.mxu0
        %v2314 = vadd.f32 0.0, %v2313
        %v2315 = vpop.f32.mrf.mxu0
        %2316 = vdwg.mxu0
        %v2317 = vadd.f32 %v2261, %v2275
        %v2318 = vadd.f32 %v2262, %v2288
        %v2319 = vadd.f32 %v2263, %v2301
        %v2320 = vadd.f32 %v2264, %v2314
        %v2321 = vmul.f32 %v2317, 2.0
        %v2322 = vmul.f32 %v2318, 2.0
        %v2323 = vmul.f32 %v2319, 2.0
        %v2324 = vmul.f32 %v2320, 2.0
        %v2325 = vsel %vm1119, %v2321, %v2317
        %v2326 = vsel %vm1120, %v2322, %v2318
        %v2327 = vsel %vm1121, %v2323, %v2319
        %v2328 = vsel %vm1122, %v2324, %v2320
        %v2329 = vxor.u32 %v2325, 2147483648
        %v2330 = vxor.u32 %v2326, 2147483648
        %v2331 = vxor.u32 %v2327, 2147483648
        %v2332 = vxor.u32 %v2328, 2147483648
        %v2333 = vmul.f32 %v2329, 1.442695
        %v2334 = vpow.pop %v2333
        %v2335 = vmul.f32 %v2330, 1.442695
        %v2336 = vpow.pop %v2335
        %v2337 = vmul.f32 %v2331, 1.442695
        %v2338 = vpow.pop %v2337
        %v2339 = vmul.f32 %v2332, 1.442695
        %v2340 = vpow.pop %v2339
        %v2341 = vadd.f32 %v2334, 1.0
        %v2342 = vadd.f32 %v2336, 1.0
        %v2343 = vadd.f32 %v2338, 1.0
        %v2344 = vadd.f32 %v2340, 1.0
        %v2345 = vrcp.pop %v2341
        %v2346 = vmul.f32 %v2341, %v2345
        %v2347 = vsub.f32 1.0, %v2346
        %v2348 = vmul.f32 %v2345, %v2347
        %v2349 = vadd.f32 %v2345, %v2348
        %vm2350 = vweird.f32 %v2341
        %vm2351 = vweird.f32 %v2345
        %vm2352 = vmor %vm2350, %vm2351
        %v2353 = vsel %vm2352, %v2345, %v2349
        %v2354 = vand.u32 2147483647, %v2341
        %vm2355 = vcmp.eq.f32.partialorder %v2354, 8.507059e+37
        %v2356 = vand.u32 %v2341, 2147483648
        %v2357 = vor.u32 1.1754944e-38, %v2356
        %v2358 = vsel %vm2355, %v2357, %v2353
        %v2359 = vmul.f32 1.0, %v2358
        %v2360 = vrcp.pop %v2342
        %v2361 = vmul.f32 %v2342, %v2360
        %v2362 = vsub.f32 1.0, %v2361
        %v2363 = vmul.f32 %v2360, %v2362
        %v2364 = vadd.f32 %v2360, %v2363
        %vm2365 = vweird.f32 %v2342
        %vm2366 = vweird.f32 %v2360
        %vm2367 = vmor %vm2365, %vm2366
        %v2368 = vsel %vm2367, %v2360, %v2364
        %v2369 = vand.u32 2147483647, %v2342
        %vm2370 = vcmp.eq.f32.partialorder %v2369, 8.507059e+37
        %v2371 = vand.u32 %v2342, 2147483648
        %v2372 = vor.u32 1.1754944e-38, %v2371
        %v2373 = vsel %vm2370, %v2372, %v2368
        %v2374 = vmul.f32 1.0, %v2373
        %v2375 = vrcp.pop %v2343
        %v2376 = vmul.f32 %v2343, %v2375
        %v2377 = vsub.f32 1.0, %v2376
        %v2378 = vmul.f32 %v2375, %v2377
        %v2379 = vadd.f32 %v2375, %v2378
        %vm2380 = vweird.f32 %v2343
        %vm2381 = vweird.f32 %v2375
        %vm2382 = vmor %vm2380, %vm2381
        %v2383 = vsel %vm2382, %v2375, %v2379
        %v2384 = vand.u32 2147483647, %v2343
        %vm2385 = vcmp.eq.f32.partialorder %v2384, 8.507059e+37
        %v2386 = vand.u32 %v2343, 2147483648
        %v2387 = vor.u32 1.1754944e-38, %v2386
        %v2388 = vsel %vm2385, %v2387, %v2383
        %v2389 = vmul.f32 1.0, %v2388
        %v2390 = vrcp.pop %v2344
        %v2391 = vmul.f32 %v2344, %v2390
        %v2392 = vsub.f32 1.0, %v2391
        %v2393 = vmul.f32 %v2390, %v2392
        %v2394 = vadd.f32 %v2390, %v2393
        %vm2395 = vweird.f32 %v2344
        %vm2396 = vweird.f32 %v2390
        %vm2397 = vmor %vm2395, %vm2396
        %v2398 = vsel %vm2397, %v2390, %v2394
        %v2399 = vand.u32 2147483647, %v2344
        %vm2400 = vcmp.eq.f32.partialorder %v2399, 8.507059e+37
        %v2401 = vand.u32 %v2344, 2147483648
        %v2402 = vor.u32 1.1754944e-38, %v2401
        %v2403 = vsel %vm2400, %v2402, %v2398
        %v2404 = vmul.f32 1.0, %v2403
        %v2405 = vmul.f32 %v2359, 2.0
        %v2406 = vmul.f32 %v2374, 2.0
        %v2407 = vmul.f32 %v2389, 2.0
        %v2408 = vmul.f32 %v2404, 2.0
        %v2409 = vsub.f32 %v2405, 1.0
        %v2410 = vsub.f32 %v2406, 1.0
        %v2411 = vsub.f32 %v2407, 1.0
        %v2412 = vsub.f32 %v2408, 1.0
        %v2413 = vsel %vm1119, %v2409, %v2359
        %v2414 = vsel %vm1120, %v2410, %v2374
        %v2415 = vsel %vm1121, %v2411, %v2389
        %v2416 = vsel %vm1122, %v2412, %v2404
        %v2417 = vmul.f32 %v2414, %v2256
        %v2418 = vmul.f32 %v2413, %v2415
        %v2419 = vadd.f32 %v2417, %v2418
        %v2420 = vtanh.pop %v2419
        %v2421 = vmul.f32 %v2416, %v2420
        %v2422 = vpack.c.bf16 %v2421, %v2421
        %2423 = vst [vmem:[#allocation3 + $0x18] sm:$0xf] %v2422
        %v2424 = vld [vmem:[#allocation2 + $0xe0] sm:$0xff]
        %v2425 = vld [vmem:[#allocation2 + $0xe8] sm:$0xff]
        %v2426 = vld [vmem:[#allocation2 + $0xf0] sm:$0xff]
        %v2427 = vld [vmem:[#allocation2 + $0xf8] sm:$0xff]
        %2428 = vmatpush.bf16.msra.mxu0 %v1251
        %2429 = vmatpush.bf16.msra.mxu0 %v1247
        %2430 = vmatpush.bf16.msra.mxu0 %v1243
        %2431 = vmatpush.bf16.msra.mxu0 %v1239
        %2432 = vmatpush.bf16.msra.mxu0 %v1235
        %2433 = vmatpush.bf16.msra.mxu0 %v1231
        %2434 = vmatpush.bf16.msra.mxu0 %v1227
        %2435 = vmatpush.bf16.msra.mxu0 %v1223
        %2436 = vmatmul.bf16.gmra.mxu0 %v2422
        %v2437 = vpop.f32.mrf.mxu0
        %v2438 = vadd.f32 0.0, %v2437
        %v2439 = vpop.f32.mrf.mxu0
        %2440 = vdwg.mxu0
        %2441 = vmatpush.bf16.msra.mxu0 %v1252
        %2442 = vmatpush.bf16.msra.mxu0 %v1248
        %2443 = vmatpush.bf16.msra.mxu0 %v1244
        %2444 = vmatpush.bf16.msra.mxu0 %v1240
        %2445 = vmatpush.bf16.msra.mxu0 %v1236
        %2446 = vmatpush.bf16.msra.mxu0 %v1232
        %2447 = vmatpush.bf16.msra.mxu0 %v1228
        %2448 = vmatpush.bf16.msra.mxu0 %v1224
        %2449 = vmatmul.bf16.gmra.mxu0 %v2422
        %v2450 = vpop.f32.mrf.mxu0
        %v2451 = vadd.f32 0.0, %v2450
        %v2452 = vpop.f32.mrf.mxu0
        %2453 = vdwg.mxu0
        %2454 = vmatpush.bf16.msra.mxu0 %v1253
        %2455 = vmatpush.bf16.msra.mxu0 %v1249
        %2456 = vmatpush.bf16.msra.mxu0 %v1245
        %2457 = vmatpush.bf16.msra.mxu0 %v1241
        %2458 = vmatpush.bf16.msra.mxu0 %v1237
        %2459 = vmatpush.bf16.msra.mxu0 %v1233
        %2460 = vmatpush.bf16.msra.mxu0 %v1229
        %2461 = vmatpush.bf16.msra.mxu0 %v1225
        %2462 = vmatmul.bf16.gmra.mxu0 %v2422
        %v2463 = vpop.f32.mrf.mxu0
        %v2464 = vadd.f32 0.0, %v2463
        %v2465 = vpop.f32.mrf.mxu0
        %2466 = vdwg.mxu0
        %2467 = vmatpush.bf16.msra.mxu0 %v1254
        %2468 = vmatpush.bf16.msra.mxu0 %v1250
        %2469 = vmatpush.bf16.msra.mxu0 %v1246
        %2470 = vmatpush.bf16.msra.mxu0 %v1242
        %2471 = vmatpush.bf16.msra.mxu0 %v1238
        %2472 = vmatpush.bf16.msra.mxu0 %v1234
        %2473 = vmatpush.bf16.msra.mxu0 %v1230
        %2474 = vmatpush.bf16.msra.mxu0 %v1226
        %2475 = vmatmul.bf16.gmra.mxu0 %v2422
        %v2476 = vpop.f32.mrf.mxu0
        %v2477 = vadd.f32 0.0, %v2476
        %v2478 = vpop.f32.mrf.mxu0
        %2479 = vdwg.mxu0
        %v2480 = vadd.f32 %v2424, %v2438
        %v2481 = vadd.f32 %v2425, %v2451
        %v2482 = vadd.f32 %v2426, %v2464
        %v2483 = vadd.f32 %v2427, %v2477
        %v2484 = vmul.f32 %v2480, 2.0
        %v2485 = vmul.f32 %v2481, 2.0
        %v2486 = vmul.f32 %v2482, 2.0
        %v2487 = vmul.f32 %v2483, 2.0
        %v2488 = vsel %vm1119, %v2484, %v2480
        %v2489 = vsel %vm1120, %v2485, %v2481
        %v2490 = vsel %vm1121, %v2486, %v2482
        %v2491 = vsel %vm1122, %v2487, %v2483
        %v2492 = vxor.u32 %v2488, 2147483648
        %v2493 = vxor.u32 %v2489, 2147483648
        %v2494 = vxor.u32 %v2490, 2147483648
        %v2495 = vxor.u32 %v2491, 2147483648
        %v2496 = vmul.f32 %v2492, 1.442695
        %v2497 = vpow.pop %v2496
        %v2498 = vmul.f32 %v2493, 1.442695
        %v2499 = vpow.pop %v2498
        %v2500 = vmul.f32 %v2494, 1.442695
        %v2501 = vpow.pop %v2500
        %v2502 = vmul.f32 %v2495, 1.442695
        %v2503 = vpow.pop %v2502
        %v2504 = vadd.f32 %v2497, 1.0
        %v2505 = vadd.f32 %v2499, 1.0
        %v2506 = vadd.f32 %v2501, 1.0
        %v2507 = vadd.f32 %v2503, 1.0
        %v2508 = vrcp.pop %v2504
        %v2509 = vmul.f32 %v2504, %v2508
        %v2510 = vsub.f32 1.0, %v2509
        %v2511 = vmul.f32 %v2508, %v2510
        %v2512 = vadd.f32 %v2508, %v2511
        %vm2513 = vweird.f32 %v2504
        %vm2514 = vweird.f32 %v2508
        %vm2515 = vmor %vm2513, %vm2514
        %v2516 = vsel %vm2515, %v2508, %v2512
        %v2517 = vand.u32 2147483647, %v2504
        %vm2518 = vcmp.eq.f32.partialorder %v2517, 8.507059e+37
        %v2519 = vand.u32 %v2504, 2147483648
        %v2520 = vor.u32 1.1754944e-38, %v2519
        %v2521 = vsel %vm2518, %v2520, %v2516
        %v2522 = vmul.f32 1.0, %v2521
        %v2523 = vrcp.pop %v2505
        %v2524 = vmul.f32 %v2505, %v2523
        %v2525 = vsub.f32 1.0, %v2524
        %v2526 = vmul.f32 %v2523, %v2525
        %v2527 = vadd.f32 %v2523, %v2526
        %vm2528 = vweird.f32 %v2505
        %vm2529 = vweird.f32 %v2523
        %vm2530 = vmor %vm2528, %vm2529
        %v2531 = vsel %vm2530, %v2523, %v2527
        %v2532 = vand.u32 2147483647, %v2505
        %vm2533 = vcmp.eq.f32.partialorder %v2532, 8.507059e+37
        %v2534 = vand.u32 %v2505, 2147483648
        %v2535 = vor.u32 1.1754944e-38, %v2534
        %v2536 = vsel %vm2533, %v2535, %v2531
        %v2537 = vmul.f32 1.0, %v2536
        %v2538 = vrcp.pop %v2506
        %v2539 = vmul.f32 %v2506, %v2538
        %v2540 = vsub.f32 1.0, %v2539
        %v2541 = vmul.f32 %v2538, %v2540
        %v2542 = vadd.f32 %v2538, %v2541
        %vm2543 = vweird.f32 %v2506
        %vm2544 = vweird.f32 %v2538
        %vm2545 = vmor %vm2543, %vm2544
        %v2546 = vsel %vm2545, %v2538, %v2542
        %v2547 = vand.u32 2147483647, %v2506
        %vm2548 = vcmp.eq.f32.partialorder %v2547, 8.507059e+37
        %v2549 = vand.u32 %v2506, 2147483648
        %v2550 = vor.u32 1.1754944e-38, %v2549
        %v2551 = vsel %vm2548, %v2550, %v2546
        %v2552 = vmul.f32 1.0, %v2551
        %v2553 = vrcp.pop %v2507
        %v2554 = vmul.f32 %v2507, %v2553
        %v2555 = vsub.f32 1.0, %v2554
        %v2556 = vmul.f32 %v2553, %v2555
        %v2557 = vadd.f32 %v2553, %v2556
        %vm2558 = vweird.f32 %v2507
        %vm2559 = vweird.f32 %v2553
        %vm2560 = vmor %vm2558, %vm2559
        %v2561 = vsel %vm2560, %v2553, %v2557
        %v2562 = vand.u32 2147483647, %v2507
        %vm2563 = vcmp.eq.f32.partialorder %v2562, 8.507059e+37
        %v2564 = vand.u32 %v2507, 2147483648
        %v2565 = vor.u32 1.1754944e-38, %v2564
        %v2566 = vsel %vm2563, %v2565, %v2561
        %v2567 = vmul.f32 1.0, %v2566
        %v2568 = vmul.f32 %v2522, 2.0
        %v2569 = vmul.f32 %v2537, 2.0
        %v2570 = vmul.f32 %v2552, 2.0
        %v2571 = vmul.f32 %v2567, 2.0
        %v2572 = vsub.f32 %v2568, 1.0
        %v2573 = vsub.f32 %v2569, 1.0
        %v2574 = vsub.f32 %v2570, 1.0
        %v2575 = vsub.f32 %v2571, 1.0
        %v2576 = vsel %vm1119, %v2572, %v2522
        %v2577 = vsel %vm1120, %v2573, %v2537
        %v2578 = vsel %vm1121, %v2574, %v2552
        %v2579 = vsel %vm1122, %v2575, %v2567
        %v2580 = vmul.f32 %v2577, %v2419
        %v2581 = vmul.f32 %v2576, %v2578
        %v2582 = vadd.f32 %v2580, %v2581
        %v2583 = vtanh.pop %v2582
        %v2584 = vmul.f32 %v2579, %v2583
        %v2585 = vpack.c.bf16 %v2584, %v2584
        %2586 = vst [vmem:[#allocation3 + $0x1c] sm:$0xf] %v2585
        %p2587 = scmp.eq.s32.totalorder %s19, 2
        // Predicated region
        $region57: #{language_model_forward.1} parent=47 // pred_check
          %p2588 = pneg %p2587
        $region58: #{language_model_forward.1} parent=47 // pred_check_branch
          %2590 = sbr.rel (%p2588) target = $region60
        $region59: #{language_model_forward.1} parent=47 // pred_region
          %v2591 = vld [vmem:[#allocation3] sm:$0xf]
          %v2592 = vld [vmem:[#allocation3 + $0x4] sm:$0xf]
          %v2593 = vld [vmem:[#allocation3 + $0x8] sm:$0xf]
          %v2594 = vld [vmem:[#allocation3 + $0xc] sm:$0xf]
          %v2595 = vld [vmem:[#allocation3 + $0x10] sm:$0xf]
          %v2596 = vld [vmem:[#allocation3 + $0x14] sm:$0xf]
          %v2597 = vld [vmem:[#allocation3 + $0x18] sm:$0xf]
          %v2598 = vld [vmem:[#allocation3 + $0x1c] sm:$0xf]
          %v2599 = vld [vmem:[%s5] sm:$0xff]
          %v2600 = vld [vmem:[%s5 + $0x8] sm:$0xff]
          %v2601 = vld [vmem:[%s5 + $0x10] sm:$0xff]
          %v2602 = vld [vmem:[%s5 + $0x18] sm:$0xff]
          %v2603 = vld [vmem:[%s5 + $0x20] sm:$0xff]
          %v2604 = vld [vmem:[%s5 + $0x28] sm:$0xff]
          %v2605 = vld [vmem:[%s5 + $0x30] sm:$0xff]
          %v2606 = vld [vmem:[%s5 + $0x38] sm:$0xff]
          %v2607 = vld [vmem:[%s5 + $0x40] sm:$0xff]
          %v2608 = vld [vmem:[%s5 + $0x48] sm:$0xff]
          %v2609 = vld [vmem:[%s5 + $0x50] sm:$0xff]
          %v2610 = vld [vmem:[%s5 + $0x58] sm:$0xff]
          %v2611 = vld [vmem:[%s5 + $0x60] sm:$0xff]
          %v2612 = vld [vmem:[%s5 + $0x68] sm:$0xff]
          %v2613 = vld [vmem:[%s5 + $0x70] sm:$0xff]
          %v2614 = vld [vmem:[%s5 + $0x78] sm:$0xff]
          %v2615 = vld [vmem:[%s6] sm:$0x3]
          %v2617 = vperm.slane %v2615, 0
          %v2618 = vperm.slane %v2615, 1
          %v2629 = vunpack.c.l.b16 %v2591
          %v2630 = vunpack.c.l.b16 %v2592
          %v2631 = vunpack.c.l.b16 %v2593
          %v2632 = vunpack.c.l.b16 %v2594
          %v2633 = vunpack.c.l.b16 %v2595
          %v2634 = vunpack.c.l.b16 %v2596
          %v2635 = vunpack.c.l.b16 %v2597
          %v2636 = vunpack.c.l.b16 %v2598
          %v2637 = vpack.c.b16 %v2630, %v2629
          %v2638 = vpack.c.b16 %v2632, %v2631
          %v2639 = vpack.c.b16 %v2634, %v2633
          %v2640 = vpack.c.b16 %v2636, %v2635
          %v2661 = vunpack.c.l.b16 %v2599
          %v2662 = vunpack.c.h.b16 %v2599
          %v2663 = vunpack.c.l.b16 %v2600
          %v2664 = vunpack.c.h.b16 %v2600
          %v2665 = vunpack.c.l.b16 %v2601
          %v2666 = vunpack.c.h.b16 %v2601
          %v2667 = vunpack.c.l.b16 %v2602
          %v2668 = vunpack.c.h.b16 %v2602
          %v2669 = vunpack.c.l.b16 %v2603
          %v2670 = vunpack.c.h.b16 %v2603
          %v2671 = vunpack.c.l.b16 %v2604
          %v2672 = vunpack.c.h.b16 %v2604
          %v2673 = vunpack.c.l.b16 %v2605
          %v2674 = vunpack.c.h.b16 %v2605
          %v2675 = vunpack.c.l.b16 %v2606
          %v2676 = vunpack.c.h.b16 %v2606
          %v2677 = vunpack.c.l.b16 %v2607
          %v2678 = vunpack.c.h.b16 %v2607
          %v2679 = vunpack.c.l.b16 %v2608
          %v2680 = vunpack.c.h.b16 %v2608
          %v2681 = vunpack.c.l.b16 %v2609
          %v2682 = vunpack.c.h.b16 %v2609
          %v2683 = vunpack.c.l.b16 %v2610
          %v2684 = vunpack.c.h.b16 %v2610
          %v2685 = vunpack.c.l.b16 %v2611
          %v2686 = vunpack.c.h.b16 %v2611
          %v2687 = vunpack.c.l.b16 %v2612
          %v2688 = vunpack.c.h.b16 %v2612
          %v2689 = vunpack.c.l.b16 %v2613
          %v2690 = vunpack.c.h.b16 %v2613
          %v2691 = vunpack.c.l.b16 %v2614
          %v2692 = vunpack.c.h.b16 %v2614
          %v2693 = vpack.c.b16 %v2663, %v2661
          %v2694 = vpack.c.b16 %v2664, %v2662
          %v2695 = vpack.c.b16 %v2667, %v2665
          %v2696 = vpack.c.b16 %v2668, %v2666
          %v2697 = vpack.c.b16 %v2671, %v2669
          %v2698 = vpack.c.b16 %v2672, %v2670
          %v2699 = vpack.c.b16 %v2675, %v2673
          %v2700 = vpack.c.b16 %v2676, %v2674
          %v2701 = vpack.c.b16 %v2679, %v2677
          %v2702 = vpack.c.b16 %v2680, %v2678
          %v2703 = vpack.c.b16 %v2683, %v2681
          %v2704 = vpack.c.b16 %v2684, %v2682
          %v2705 = vpack.c.b16 %v2687, %v2685
          %v2706 = vpack.c.b16 %v2688, %v2686
          %v2707 = vpack.c.b16 %v2691, %v2689
          %v2708 = vpack.c.b16 %v2692, %v2690
          %2725 = vmatpush.bf16.msra.mxu0 %v2707
          %2726 = vmatpush.bf16.msra.mxu0 %v2705
          %2727 = vmatpush.bf16.msra.mxu0 %v2703
          %2728 = vmatpush.bf16.msra.mxu0 %v2701
          %2729 = vmatpush.bf16.msra.mxu0 %v2699
          %2730 = vmatpush.bf16.msra.mxu0 %v2697
          %2731 = vmatpush.bf16.msra.mxu0 %v2695
          %2732 = vmatpush.bf16.msra.mxu0 %v2693
          %2733 = vmatmul.bf16.gmra.mxu0 %v2637
          %v2734 = vpop.f32.mrf.mxu0
          %v2735 = vadd.f32 %v2617, %v2734
          %v2736 = vpop.f32.mrf.mxu0
          %v2737 = vadd.f32 %v2617, %v2736
          %2738 = vmatmul.bf16.gmra.mxu0 %v2638
          %v2739 = vpop.f32.mrf.mxu0
          %v2740 = vadd.f32 %v2617, %v2739
          %v2741 = vpop.f32.mrf.mxu0
          %v2742 = vadd.f32 %v2617, %v2741
          %2743 = vmatmul.bf16.gmra.mxu0 %v2639
          %v2744 = vpop.f32.mrf.mxu0
          %v2745 = vadd.f32 %v2617, %v2744
          %v2746 = vpop.f32.mrf.mxu0
          %v2747 = vadd.f32 %v2617, %v2746
          %2748 = vmatmul.bf16.gmra.mxu0 %v2640
          %v2749 = vpop.f32.mrf.mxu0
          %v2750 = vadd.f32 %v2617, %v2749
          %v2751 = vpop.f32.mrf.mxu0
          %v2752 = vadd.f32 %v2617, %v2751
          %2753 = vdwg.mxu0
          %2754 = vmatpush.bf16.msra.mxu0 %v2708
          %2755 = vmatpush.bf16.msra.mxu0 %v2706
          %2756 = vmatpush.bf16.msra.mxu0 %v2704
          %2757 = vmatpush.bf16.msra.mxu0 %v2702
          %2758 = vmatpush.bf16.msra.mxu0 %v2700
          %2759 = vmatpush.bf16.msra.mxu0 %v2698
          %2760 = vmatpush.bf16.msra.mxu0 %v2696
          %2761 = vmatpush.bf16.msra.mxu0 %v2694
          %2762 = vmatmul.bf16.gmra.mxu0 %v2637
          %v2763 = vpop.f32.mrf.mxu0
          %v2764 = vadd.f32 %v2618, %v2763
          %v2765 = vpop.f32.mrf.mxu0
          %v2766 = vadd.f32 %v2618, %v2765
          %2767 = vmatmul.bf16.gmra.mxu0 %v2638
          %v2768 = vpop.f32.mrf.mxu0
          %v2769 = vadd.f32 %v2618, %v2768
          %v2770 = vpop.f32.mrf.mxu0
          %v2771 = vadd.f32 %v2618, %v2770
          %2772 = vmatmul.bf16.gmra.mxu0 %v2639
          %v2773 = vpop.f32.mrf.mxu0
          %v2774 = vadd.f32 %v2618, %v2773
          %v2775 = vpop.f32.mrf.mxu0
          %v2776 = vadd.f32 %v2618, %v2775
          %2777 = vmatmul.bf16.gmra.mxu0 %v2640
          %v2778 = vpop.f32.mrf.mxu0
          %v2779 = vadd.f32 %v2618, %v2778
          %v2780 = vpop.f32.mrf.mxu0
          %v2781 = vadd.f32 %v2618, %v2780
          %2782 = vdwg.mxu0
          %2783 = vst [vmem:[#allocation4] sm:$0xff] %v2735
          %2784 = vst [vmem:[#allocation4 + $0x8] sm:$0xff] %v2764
          %2785 = vst [vmem:[#allocation4 + $0x10] sm:$0xff] %v2737
          %2786 = vst [vmem:[#allocation4 + $0x18] sm:$0xff] %v2766
          %2787 = vst [vmem:[#allocation4 + $0x20] sm:$0xff] %v2740
          %2788 = vst [vmem:[#allocation4 + $0x28] sm:$0xff] %v2769
          %2789 = vst [vmem:[#allocation4 + $0x30] sm:$0xff] %v2742
          %2790 = vst [vmem:[#allocation4 + $0x38] sm:$0xff] %v2771
          %2791 = vst [vmem:[#allocation4 + $0x40] sm:$0xff] %v2745
          %2792 = vst [vmem:[#allocation4 + $0x48] sm:$0xff] %v2774
          %2793 = vst [vmem:[#allocation4 + $0x50] sm:$0xff] %v2747
          %2794 = vst [vmem:[#allocation4 + $0x58] sm:$0xff] %v2776
          %2795 = vst [vmem:[#allocation4 + $0x60] sm:$0xff] %v2750
          %2796 = vst [vmem:[#allocation4 + $0x68] sm:$0xff] %v2779
          %2797 = vst [vmem:[#allocation4 + $0x70] sm:$0xff] %v2752
          %2798 = vst [vmem:[#allocation4 + $0x78] sm:$0xff] %v2781
        $region60: #{language_model_forward.1} parent=47 // pred_fallthru
          _
        // Predicated region
        $region61: #{language_model_forward.1} parent=47 // pred_check
          %p2799 = pneg %p194
        $region62: #{language_model_forward.1} parent=47 // pred_check_branch
          %2801 = sbr.rel (%p2799) target = $region64
        $region63: #{language_model_forward.1} parent=47 // pred_region
          %2803 = vsyncadd [#allocation5], 0
          %s2804 = sshll.u32 [#allocation4], 4
          %s2805 = int_to_ptr.vmem [resolvable:$true] %s2804
          %s2806 = sshll.u32 %s7, 4
          %s2807 = int_to_ptr.hbm [resolvable:$true] %s2806
          %2812 = dma.vmem_to_hbm [thread:$0]  %s2805, 2048, %s2807, [#allocation5], 256, 256, 16
        $region64: #{language_model_forward.1} parent=47 // pred_fallthru
          _
        // Predicated region
        $region65: #{language_model_forward.1} parent=47 // pred_check
          %p2813 = pneg %p194
        $region66: #{language_model_forward.1} parent=47 // pred_check_branch
          %2815 = sbr.rel (%p2813) target = $region68
        $region67: #{language_model_forward.1} parent=47 // pred_region
          %2817 = dma.done [#allocation5], 2048
        $region68: #{language_model_forward.1} parent=47 // pred_fallthru
          _
      $region48: #{language_model_forward.1} parent=5 // pred_fallthru
        _
      %p2818 = scmp.le.s32.totalorder 2, %s14
      // Predicated region
      $region69: #{language_model_forward.1} parent=5 // pred_check
        %p2819 = pneg %p2818
      $region70: #{language_model_forward.1} parent=5 // pred_check_branch
        %2821 = sbr.rel (%p2819) target = $region72
      $region71: #{language_model_forward.1} parent=5 // pred_region
        %s2822 = ssub.s32 %s14, 2
      $region72: #{language_model_forward.1} parent=5 // pred_fallthru
        _
    $region6: #{language_model_forward.1} parent=1 // loop_footer
      %s18 = sadd.s32 1, %s14
    $region7: #{language_model_forward.1} parent=1 // loop_footer_branch
      %13 = sbr.rel target = $region3
    $region8: #{language_model_forward.1} parent=1 // loop_exit
      _
    %2823 = vsyncpa [#allocation5], 1
    %s2824 = scalar_lea.sflag [#allocation5], 1
    %2825 = vsyncpa %s2824, 1

</llo_original>
